<compile_context>
chip_gen: v6e
topology: v6e:2x2x1
jax: 0.10.0
libtpu: 0.0.40
codegen_flags: <defaults>
</compile_context>

<pallas_src>
import functools

import jax
import jax.numpy as jnp
from jax import lax
from jax.experimental import pallas as pl
from jax.experimental.pallas import tpu as pltpu

_BIG = 1e30  # padding sentinel (f32-safe, survives the >=0 clamp)


def _chamfer_loss_kernel(planes_ref, pts_chunk_ref, pts_kn_ref, out_ref,
                         bwd_ref, *, num_heads, n_valid, reg_coef):
    c = pl.program_id(1)
    n_chunks = pl.num_programs(1)

    plane_all = planes_ref[0]          # (HP, 128); rows >= num_heads are zero pad
    pk = pts_kn_ref[0]                 # (3, N_pad)  lane-dense point cloud (columns)
    pc = pts_chunk_ref[0]              # (CHUNK, 3)  rows of this chunk

    chunk = pc.shape[0]
    n_pad = pk.shape[1]
    masked = n_valid < n_pad           # static Python bool

    px_row = pk[0:1, :]                # (1, N) each, lane-dense
    py_row = pk[1:2, :]
    pz_row = pk[2:3, :]

    # ---- head-batched column-side work on (HP, N) slabs ----------------------
    # (full vreg occupancy; cheap enough to recompute every chunk step)
    n0 = plane_all[:, 0:1]             # (HP, 1) raw (un-normalized) normal coords
    n1 = plane_all[:, 1:2]
    n2 = plane_all[:, 2:3]
    doff = plane_all[:, 3:4]           # (HP, 1) plane offsets
    s2 = n0 * n0 + n1 * n1 + n2 * n2
    inv_s = lax.rsqrt(jnp.where(s2 > 0.0, s2, 1.0))     # guard zero pad-head rows
    u_all = n0 * px_row + n1 * py_row + n2 * pz_row     # (HP, N)  p_j . n (raw)
    dist_all = u_all * inv_s + doff                     # p_j . n_hat + d
    t_all = (2.0 * inv_s) * dist_all                    # r_j = p_j - t_j * n
    r0 = px_row - t_all * n0
    r1 = py_row - t_all * n1
    r2 = pz_row - t_all * n2
    r_sq_all = r0 * r0 + r1 * r1 + r2 * r2              # (HP, N)  ||r_j||^2

    if masked:
        col_valid = lax.broadcasted_iota(jnp.int32, (1, n_pad), 1) < n_valid
        # fold the padded-column sentinel in once (head-batched)
        r_sq_all = r_sq_all + jnp.where(col_valid, 0.0, _BIG)

    # ---- head-independent row-chunk work -------------------------------------
    px_c = pc[:, 0:1]                   # (CHUNK, 1)
    py_c = pc[:, 1:2]
    pz_c = pc[:, 2:3]
    p_sq_c = px_c * px_c + py_c * py_c + pz_c * pz_c    # (CHUNK, 1)  ||p_i||^2
    base = (p_sq_c
            + (-2.0 * px_c) * px_row                     # rank-1 VALU outer products
            + (-2.0 * py_c) * py_row                     # (no K=3 MXU pass)
            + (-2.0 * pz_c) * pz_row)                    # (CHUNK, N) = |p_i|^2 - 2 p_i.p_j
    if masked:
        row_ids = c * chunk + lax.broadcasted_iota(jnp.int32, (chunk, 1), 0)
        row_valid = row_ids < n_valid
        base = base + jnp.where(row_valid, 0.0, _BIG)    # padded-row sentinel

    @pl.when(c == 0)
    def _():
        out_ref[...] = jnp.zeros_like(out_ref)
        bwd_ref[...] = jnp.full(bwd_ref.shape, _BIG, bwd_ref.dtype)

    # ---- bidirectional chamfer term, all heads on this row chunk -------------
    fwd_sum = jnp.zeros((1, 1), jnp.float32)
    for h in range(num_heads):          # static unroll, H is small
        nh0 = plane_all[h:h + 1, 0:1]
        nh1 = plane_all[h:h + 1, 1:2]
        nh2 = plane_all[h:h + 1, 2:3]
        u2_c = 2.0 * (px_c * nh0 + py_c * nh1 + pz_c * nh2)   # (CHUNK, 1) = 2 p_i.n
        # ||p_i - r_j||^2 = base + ||r_j||^2 + 2 (p_i.n) t_j   (no reflected cloud)
        dmat = base + r_sq_all[h:h + 1, :] + u2_c * t_all[h:h + 1, :]
        dmat = jnp.maximum(dmat, 0.0)    # clamp cancellation error; sentinels stay huge

        fwd = jnp.min(dmat, axis=1, keepdims=True)       # (CHUNK, 1) forward row-min
        if masked:
            fwd = jnp.where(row_valid, fwd, 0.0)
        fwd_sum = fwd_sum + jnp.sum(fwd, axis=0, keepdims=True)

        cmin = jnp.min(dmat, axis=0, keepdims=True)      # (1, N) partial backward col-min
        bwd_ref[h:h + 1, :] = jnp.minimum(bwd_ref[h:h + 1, :], cmin)

    # accumulate the forward contribution in the resident (lane-dense) output block
    out_ref[0] = out_ref[0] + jnp.broadcast_to(fwd_sum, out_ref.shape[1:])

    # ---- finalize on the last chunk: backward term + fused regularization ----
    @pl.when(c == n_chunks - 1)
    def _():
        bwd = bwd_ref[...]                               # (HP, N_pad)
        valid = lax.broadcasted_iota(jnp.int32, bwd.shape, 0) < num_heads
        if masked:
            valid = valid & (lax.broadcasted_iota(jnp.int32, bwd.shape, 1) < n_valid)
        bwd_sum = jnp.sum(jnp.sum(jnp.where(valid, bwd, 0.0), axis=1, keepdims=True),
                          axis=0, keepdims=True)         # (1, 1)

        # ||n_hat n_hat^T - I||_F  (pad-head rows are zero -> contribute nothing)
        normals = plane_all[:, 0:3]
        row2 = jnp.sum(normals * normals, axis=1, keepdims=True)
        invn = lax.rsqrt(jnp.where(row2 > 0.0, row2, 1.0))
        nn = normals * invn
        gram = lax.dot_general(nn, nn, (((1,), (1,)), ((), ())),
                               preferred_element_type=jnp.float32)   # (HP, HP)
        rows = lax.broadcasted_iota(jnp.int32, gram.shape, 0)
        cols = lax.broadcasted_iota(jnp.int32, gram.shape, 1)
        eye = jnp.where((rows == cols) & (rows < num_heads), 1.0, 0.0)
        a = gram - eye
        frob = jnp.sqrt(jnp.sum(jnp.sum(a * a, axis=1, keepdims=True),
                                axis=0, keepdims=True))  # (1, 1)

        tail = bwd_sum + jnp.float32(reg_coef) * frob
        out_ref[0] = out_ref[0] + jnp.broadcast_to(tail, out_ref.shape[1:])


class ChamferLoss:
    """JAX/Pallas port of model.prsnet.losses.ChamferLoss (forward only)."""

    def __init__(self, reg_coef):
        self.reg_coef = float(reg_coef)

    def __call__(self, batch, y_pred):
        _, _, sample_points, _, _, _ = batch
        points = sample_points.astype(jnp.float32)
        planes = y_pred.astype(jnp.float32)
        B, N, _ = points.shape
        _, H, _ = planes.shape

        # pad N up to a lane-friendly multiple of 128 (sentinel-masked in-kernel)
        n_pad = max(128, ((N + 127) // 128) * 128)
        if n_pad != N:
            points = jnp.pad(points, ((0, 0), (0, n_pad - N), (0, 0)))

        # row-chunk size for the (chunk x N_pad) distance tiles
        chunk = 256 if n_pad % 256 == 0 else 128
        n_chunks = n_pad // chunk

        pts_nk = points                                # (B, N_pad, 3)  row chunks
        pts_kn = jnp.transpose(points, (0, 2, 1))      # (B, 3, N_pad)  lane-dense

        hp = max(8, ((H + 7) // 8) * 8)
        planes_pad = jnp.zeros((B, hp, 128), jnp.float32).at[:, :H, :4].set(planes)

        kernel = functools.partial(_chamfer_loss_kernel, num_heads=H,
                                   n_valid=N, reg_coef=self.reg_coef)

        per_batch = pl.pallas_call(
            kernel,
            out_shape=jax.ShapeDtypeStruct((B, 1, 128), jnp.float32),
            grid_spec=pltpu.PrefetchScalarGridSpec(
                num_scalar_prefetch=0,
                grid=(B, n_chunks),
                in_specs=[
                    pl.BlockSpec((1, hp, 128), lambda b, c: (b, 0, 0)),
                    pl.BlockSpec((1, chunk, 3), lambda b, c: (b, c, 0)),
                    pl.BlockSpec((1, 3, n_pad), lambda b, c: (b, 0, 0)),
                ],
                out_specs=pl.BlockSpec((1, 1, 128), lambda b, c: (b, 0, 0)),
                # running backward col-min per head, persists across chunk steps
                scratch_shapes=[pltpu.VMEM((hp, n_pad), jnp.float32)],
            ),
            compiler_params=pltpu.CompilerParams(
                dimension_semantics=("parallel", "arbitrary"),
                vmem_limit_bytes=32 * 1024 * 1024),
        )(planes_pad, pts_nk, pts_kn)

        # every lane of a batch row holds the same per-batch total; take lane 0
        # and reduce over the batch in the wrapper (matches torch (1,) output).
        return jnp.sum(per_batch[:, 0, 0]).reshape((1,))


def _reference(sample_points, y_pred, reg_coef):
    """Pure-JAX reference of the PyTorch forward."""
    normals = y_pred[:, :, 0:3]
    normals = normals / jnp.linalg.norm(normals, axis=2, keepdims=True)
    a = jnp.einsum('bhd,bkd->bhk', normals, normals) - jnp.eye(y_pred.shape[1])
    reg = jnp.sum(jnp.sqrt(jnp.sum(a * a, axis=(1, 2))))

    total = 0.0
    for h in range(y_pred.shape[1]):
        planes = y_pred[:, h, :]
        n = planes[:, 0:3] / jnp.linalg.norm(planes[:, 0:3], axis=1, keepdims=True)
        d = planes[:, 3]
        dist = jnp.einsum('bd,bnd->bn', n, sample_points) + d[:, None]
        refl = sample_points - 2.0 * dist[:, :, None] * n[:, None, :]
        diff = sample_points[:, :, None, :] - refl[:, None, :, :]
        dsq = jnp.sum(diff * diff, axis=-1)
        total = total + jnp.sum(jnp.min(dsq, axis=2)) + jnp.sum(jnp.min(dsq, axis=1))
    return total + reg_coef * reg


if __name__ == "__main__":
    key = jax.random.PRNGKey(0)
    k_pts, k_planes = jax.random.split(key)

    # N=300 is not a multiple of 128 -> exercises padding sentinels AND multi-chunk
    # (n_pad=384, chunk=128, 3 chunks per batch) while staying small.
    B, H, N = 2, 3, 300
    sample_points = jax.random.normal(k_pts, (B, N, 3), dtype=jnp.float32)
    y_pred = jax.random.normal(k_planes, (B, H, 4), dtype=jnp.float32)
    reg_coef = 25.0  # fixed "parameter" of the loss module

    # batch tuple mirrors (idx, transformation_params, sample_points,
    #                      voxel_grids, voxel_grids_cp, y_true)
    batch = (
        jnp.arange(B, dtype=jnp.int32),
        jnp.zeros((B, 4), jnp.float32),
        sample_points,
        jnp.zeros((B, 1, 4, 4, 4), jnp.float32),
        jnp.zeros((B, 1, 4, 4, 4), jnp.float32),
        jnp.zeros((B, H, 4), jnp.float32),
    )

    loss_mod = ChamferLoss(reg_coef)
    out = jax.block_until_ready(loss_mod(batch, y_pred))

    ref = _reference(sample_points, y_pred, reg_coef)
    assert out.shape == (1,)
    assert jnp.allclose(out[0], ref, rtol=2e-3, atol=1e-2), (out, ref)
    print("KERNEL_OK")
</pallas_src>

<mosaic_0001>
module attributes {stable_mosaic.version = 11 : i64} {
  func.func @_chamfer_loss_kernel(%arg0: i32, %arg1: i32, %arg2: memref<1x8x128xf32, #tpu.memory_space<vmem>>, %arg3: memref<1x128x3xf32, #tpu.memory_space<vmem>>, %arg4: memref<1x3x384xf32, #tpu.memory_space<vmem>>, %arg5: memref<1x1x128xf32, #tpu.memory_space<vmem>>, %arg6: memref<8x384xf32, #tpu.memory_space<vmem>>) attributes {dimension_semantics = [#tpu.dimension_semantics<parallel>, #tpu.dimension_semantics<arbitrary>], iteration_bounds = array<i64: 2, 3>, scalar_prefetch = 0 : i64, scratch_operands = 1 : i64, tpu.core_type = #tpu.core_type<tc>, window_params = [{transform_indices = @transform_0, window_bounds = array<i64: 1, 8, 128>}, {transform_indices = @transform_1, window_bounds = array<i64: 1, 128, 3>}, {transform_indices = @transform_2, window_bounds = array<i64: 1, 3, 384>}, {transform_indices = @transform_3, window_bounds = array<i64: 1, 1, 128>}]} {
    %c0 = arith.constant 0 : index
    %c0_0 = arith.constant 0 : index
    %c0_1 = arith.constant 0 : index
    %0 = vector.load %arg2[%c0, %c0_0, %c0_1] : memref<1x8x128xf32, #tpu.memory_space<vmem>>, vector<1x8x128xf32>
    %1 = vector.shape_cast %0 : vector<1x8x128xf32> to vector<8x128xf32>
    %c0_2 = arith.constant 0 : index
    %c0_3 = arith.constant 0 : index
    %c0_4 = arith.constant 0 : index
    %2 = vector.load %arg4[%c0_2, %c0_3, %c0_4] : memref<1x3x384xf32, #tpu.memory_space<vmem>>, vector<1x3x384xf32>
    %3 = vector.shape_cast %2 : vector<1x3x384xf32> to vector<3x384xf32>
    %c0_5 = arith.constant 0 : index
    %c0_6 = arith.constant 0 : index
    %c0_7 = arith.constant 0 : index
    %4 = vector.load %arg3[%c0_5, %c0_6, %c0_7] : memref<1x128x3xf32, #tpu.memory_space<vmem>>, vector<1x128x3xf32>
    %5 = vector.shape_cast %4 : vector<1x128x3xf32> to vector<128x3xf32>
    %6 = vector.extract_strided_slice %3 {offsets = [0, 0], sizes = [1, 384], strides = [1, 1]} : vector<3x384xf32> to vector<1x384xf32>
    %7 = vector.extract_strided_slice %3 {offsets = [1, 0], sizes = [1, 384], strides = [1, 1]} : vector<3x384xf32> to vector<1x384xf32>
    %8 = vector.extract_strided_slice %3 {offsets = [2, 0], sizes = [1, 384], strides = [1, 1]} : vector<3x384xf32> to vector<1x384xf32>
    %9 = vector.extract_strided_slice %1 {offsets = [0, 0], sizes = [8, 1], strides = [1, 1]} : vector<8x128xf32> to vector<8x1xf32>
    %10 = vector.extract_strided_slice %1 {offsets = [0, 1], sizes = [8, 1], strides = [1, 1]} : vector<8x128xf32> to vector<8x1xf32>
    %11 = vector.extract_strided_slice %1 {offsets = [0, 2], sizes = [8, 1], strides = [1, 1]} : vector<8x128xf32> to vector<8x1xf32>
    %12 = vector.extract_strided_slice %1 {offsets = [0, 3], sizes = [8, 1], strides = [1, 1]} : vector<8x128xf32> to vector<8x1xf32>
    %13 = arith.mulf %9, %9 : vector<8x1xf32>
    %14 = arith.mulf %10, %10 : vector<8x1xf32>
    %15 = arith.addf %13, %14 : vector<8x1xf32>
    %16 = arith.mulf %11, %11 : vector<8x1xf32>
    %17 = arith.addf %15, %16 : vector<8x1xf32>
    %cst = arith.constant 0.000000e+00 : f32
    %18 = vector.broadcast %cst : f32 to vector<8x1xf32>
    %19 = arith.cmpf ogt, %17, %18 : vector<8x1xf32>
    %cst_8 = arith.constant 1.000000e+00 : f32
    %20 = vector.broadcast %cst_8 : f32 to vector<8x1xf32>
    %21 = arith.select %19, %17, %20 : vector<8x1xi1>, vector<8x1xf32>
    %22 = math.rsqrt %21 : vector<8x1xf32>
    %23 = vector.broadcast %9 : vector<8x1xf32> to vector<8x384xf32>
    %24 = vector.broadcast %6 : vector<1x384xf32> to vector<8x384xf32>
    %25 = arith.mulf %23, %24 : vector<8x384xf32>
    %26 = vector.broadcast %10 : vector<8x1xf32> to vector<8x384xf32>
    %27 = vector.broadcast %7 : vector<1x384xf32> to vector<8x384xf32>
    %28 = arith.mulf %26, %27 : vector<8x384xf32>
    %29 = arith.addf %25, %28 : vector<8x384xf32>
    %30 = vector.broadcast %11 : vector<8x1xf32> to vector<8x384xf32>
    %31 = vector.broadcast %8 : vector<1x384xf32> to vector<8x384xf32>
    %32 = arith.mulf %30, %31 : vector<8x384xf32>
    %33 = arith.addf %29, %32 : vector<8x384xf32>
    %34 = vector.broadcast %22 : vector<8x1xf32> to vector<8x384xf32>
    %35 = arith.mulf %33, %34 : vector<8x384xf32>
    %36 = vector.broadcast %12 : vector<8x1xf32> to vector<8x384xf32>
    %37 = arith.addf %35, %36 : vector<8x384xf32>
    %cst_9 = arith.constant 2.000000e+00 : f32
    %38 = vector.broadcast %cst_9 : f32 to vector<8x1xf32>
    %39 = arith.mulf %38, %22 : vector<8x1xf32>
    %40 = vector.broadcast %39 : vector<8x1xf32> to vector<8x384xf32>
    %41 = arith.mulf %40, %37 : vector<8x384xf32>
    %42 = vector.broadcast %9 : vector<8x1xf32> to vector<8x384xf32>
    %43 = arith.mulf %41, %42 : vector<8x384xf32>
    %44 = vector.broadcast %6 : vector<1x384xf32> to vector<8x384xf32>
    %45 = arith.subf %44, %43 : vector<8x384xf32>
    %46 = vector.broadcast %10 : vector<8x1xf32> to vector<8x384xf32>
    %47 = arith.mulf %41, %46 : vector<8x384xf32>
    %48 = vector.broadcast %7 : vector<1x384xf32> to vector<8x384xf32>
    %49 = arith.subf %48, %47 : vector<8x384xf32>
    %50 = vector.broadcast %11 : vector<8x1xf32> to vector<8x384xf32>
    %51 = arith.mulf %41, %50 : vector<8x384xf32>
    %52 = vector.broadcast %8 : vector<1x384xf32> to vector<8x384xf32>
    %53 = arith.subf %52, %51 : vector<8x384xf32>
    %54 = arith.mulf %45, %45 : vector<8x384xf32>
    %55 = arith.mulf %49, %49 : vector<8x384xf32>
    %56 = arith.addf %54, %55 : vector<8x384xf32>
    %57 = arith.mulf %53, %53 : vector<8x384xf32>
    %58 = arith.addf %56, %57 : vector<8x384xf32>
    %59 = tpu.iota {dimensions = array<i32: 1>} : vector<1x384xi32>
    %c300_i32 = arith.constant 300 : i32
    %60 = vector.broadcast %c300_i32 : i32 to vector<1x384xi32>
    %61 = arith.cmpi slt, %59, %60 : vector<1x384xi32>
    %cst_10 = arith.constant 0.000000e+00 : f32
    %cst_11 = arith.constant 1.000000e+30 : f32
    %62 = vector.broadcast %cst_10 : f32 to vector<1x384xf32>
    %63 = vector.broadcast %cst_11 : f32 to vector<1x384xf32>
    %64 = arith.select %61, %62, %63 : vector<1x384xi1>, vector<1x384xf32>
    %65 = vector.broadcast %64 : vector<1x384xf32> to vector<8x384xf32>
    %66 = arith.addf %58, %65 : vector<8x384xf32>
    %67 = vector.extract_strided_slice %5 {offsets = [0, 0], sizes = [128, 1], strides = [1, 1]} : vector<128x3xf32> to vector<128x1xf32>
    %68 = vector.extract_strided_slice %5 {offsets = [0, 1], sizes = [128, 1], strides = [1, 1]} : vector<128x3xf32> to vector<128x1xf32>
    %69 = vector.extract_strided_slice %5 {offsets = [0, 2], sizes = [128, 1], strides = [1, 1]} : vector<128x3xf32> to vector<128x1xf32>
    %70 = arith.mulf %67, %67 : vector<128x1xf32>
    %71 = arith.mulf %68, %68 : vector<128x1xf32>
    %72 = arith.addf %70, %71 : vector<128x1xf32>
    %73 = arith.mulf %69, %69 : vector<128x1xf32>
    %74 = arith.addf %72, %73 : vector<128x1xf32>
    %cst_12 = arith.constant -2.000000e+00 : f32
    %75 = vector.broadcast %cst_12 : f32 to vector<128x1xf32>
    %76 = arith.mulf %75, %67 : vector<128x1xf32>
    %77 = vector.broadcast %76 : vector<128x1xf32> to vector<128x384xf32>
    %78 = vector.broadcast %6 : vector<1x384xf32> to vector<128x384xf32>
    %79 = arith.mulf %77, %78 : vector<128x384xf32>
    %80 = vector.broadcast %74 : vector<128x1xf32> to vector<128x384xf32>
    %81 = arith.addf %80, %79 : vector<128x384xf32>
    %cst_13 = arith.constant -2.000000e+00 : f32
    %82 = vector.broadcast %cst_13 : f32 to vector<128x1xf32>
    %83 = arith.mulf %82, %68 : vector<128x1xf32>
    %84 = vector.broadcast %83 : vector<128x1xf32> to vector<128x384xf32>
    %85 = vector.broadcast %7 : vector<1x384xf32> to vector<128x384xf32>
    %86 = arith.mulf %84, %85 : vector<128x384xf32>
    %87 = arith.addf %81, %86 : vector<128x384xf32>
    %cst_14 = arith.constant -2.000000e+00 : f32
    %88 = vector.broadcast %cst_14 : f32 to vector<128x1xf32>
    %89 = arith.mulf %88, %69 : vector<128x1xf32>
    %90 = vector.broadcast %89 : vector<128x1xf32> to vector<128x384xf32>
    %91 = vector.broadcast %8 : vector<1x384xf32> to vector<128x384xf32>
    %92 = arith.mulf %90, %91 : vector<128x384xf32>
    %93 = arith.addf %87, %92 : vector<128x384xf32>
    %c128_i32 = arith.constant 128 : i32
    %94 = arith.muli %arg1, %c128_i32 : i32
    %95 = tpu.iota {dimensions = array<i32: 0>} : vector<128x1xi32>
    %96 = vector.broadcast %94 : i32 to vector<128x1xi32>
    %97 = arith.addi %96, %95 : vector<128x1xi32>
    %c300_i32_15 = arith.constant 300 : i32
    %98 = vector.broadcast %c300_i32_15 : i32 to vector<128x1xi32>
    %99 = arith.cmpi slt, %97, %98 : vector<128x1xi32>
    %cst_16 = arith.constant 0.000000e+00 : f32
    %cst_17 = arith.constant 1.000000e+30 : f32
    %100 = vector.broadcast %cst_16 : f32 to vector<128x1xf32>
    %101 = vector.broadcast %cst_17 : f32 to vector<128x1xf32>
    %102 = arith.select %99, %100, %101 : vector<128x1xi1>, vector<128x1xf32>
    %103 = vector.broadcast %102 : vector<128x1xf32> to vector<128x384xf32>
    %104 = arith.addf %93, %103 : vector<128x384xf32>
    %c0_i32 = arith.constant 0 : i32
    %105 = arith.cmpi eq, %arg1, %c0_i32 : i32
    %106 = arith.extui %105 : i1 to i32
    %c0_i32_18 = arith.constant 0 : i32
    %107 = arith.cmpi ne, %106, %c0_i32_18 : i32
    scf.if %107 {
      %cst_55 = arith.constant 0.000000e+00 : f32
      %225 = vector.broadcast %cst_55 : f32 to vector<1x1x128xf32>
      %c0_56 = arith.constant 0 : index
      %c0_57 = arith.constant 0 : index
      %c0_58 = arith.constant 0 : index
      %226 = vector.load %arg5[%c0_56, %c0_57, %c0_58] : memref<1x1x128xf32, #tpu.memory_space<vmem>>, vector<1x1x128xf32>
      tpu.vector_store %arg5[%c0_56, %c0_57, %c0_58], %225 {strides = array<i32>} : memref<1x1x128xf32, #tpu.memory_space<vmem>>, vector<1x1x128xf32>,
      %cst_59 = arith.constant 1.000000e+30 : f32
      %227 = vector.broadcast %cst_59 : f32 to vector<8x384xf32>
      %c0_60 = arith.constant 0 : index
      %c0_61 = arith.constant 0 : index
      %228 = vector.load %arg6[%c0_60, %c0_61] : memref<8x384xf32, #tpu.memory_space<vmem>>, vector<8x384xf32>
      tpu.vector_store %arg6[%c0_60, %c0_61], %227 {strides = array<i32>} : memref<8x384xf32, #tpu.memory_space<vmem>>, vector<8x384xf32>,
    } else {
    }
    %cst_19 = arith.constant 0.000000e+00 : f32
    %108 = vector.broadcast %cst_19 : f32 to vector<1x1xf32>
    %109 = vector.extract_strided_slice %1 {offsets = [0, 0], sizes = [1, 1], strides = [1, 1]} : vector<8x128xf32> to vector<1x1xf32>
    %110 = vector.extract_strided_slice %1 {offsets = [0, 1], sizes = [1, 1], strides = [1, 1]} : vector<8x128xf32> to vector<1x1xf32>
    %111 = vector.extract_strided_slice %1 {offsets = [0, 2], sizes = [1, 1], strides = [1, 1]} : vector<8x128xf32> to vector<1x1xf32>
    %112 = vector.broadcast %109 : vector<1x1xf32> to vector<128x1xf32>
    %113 = arith.mulf %67, %112 : vector<128x1xf32>
    %114 = vector.broadcast %110 : vector<1x1xf32> to vector<128x1xf32>
    %115 = arith.mulf %68, %114 : vector<128x1xf32>
    %116 = arith.addf %113, %115 : vector<128x1xf32>
    %117 = vector.broadcast %111 : vector<1x1xf32> to vector<128x1xf32>
    %118 = arith.mulf %69, %117 : vector<128x1xf32>
    %119 = arith.addf %116, %118 : vector<128x1xf32>
    %cst_20 = arith.constant 2.000000e+00 : f32
    %120 = vector.broadcast %cst_20 : f32 to vector<128x1xf32>
    %121 = arith.mulf %120, %119 : vector<128x1xf32>
    %122 = vector.extract_strided_slice %66 {offsets = [0, 0], sizes = [1, 384], strides = [1, 1]} : vector<8x384xf32> to vector<1x384xf32>
    %123 = vector.broadcast %122 : vector<1x384xf32> to vector<128x384xf32>
    %124 = arith.addf %104, %123 : vector<128x384xf32>
    %125 = vector.extract_strided_slice %41 {offsets = [0, 0], sizes = [1, 384], strides = [1, 1]} : vector<8x384xf32> to vector<1x384xf32>
    %126 = vector.broadcast %121 : vector<128x1xf32> to vector<128x384xf32>
    %127 = vector.broadcast %125 : vector<1x384xf32> to vector<128x384xf32>
    %128 = arith.mulf %126, %127 : vector<128x384xf32>
    %129 = arith.addf %124, %128 : vector<128x384xf32>
    %cst_21 = arith.constant 0.000000e+00 : f32
    %130 = vector.broadcast %cst_21 : f32 to vector<128x384xf32>
    %131 = arith.maximumf %129, %130 : vector<128x384xf32>
    %cst_22 = arith.constant dense<0x7F800000> : vector<128xf32>
    %132 = vector.multi_reduction <minimumf>, %131, %cst_22 [1] : vector<128x384xf32> to vector<128xf32>
    %133 = vector.shape_cast %132 : vector<128xf32> to vector<128x1xf32>
    %cst_23 = arith.constant 0.000000e+00 : f32
    %134 = vector.broadcast %cst_23 : f32 to vector<128x1xf32>
    %135 = arith.select %99, %133, %134 : vector<128x1xi1>, vector<128x1xf32>
    %cst_24 = arith.constant dense<0.000000e+00> : vector<1xf32>
    %136 = vector.multi_reduction <add>, %135, %cst_24 [0] : vector<128x1xf32> to vector<1xf32>
    %137 = vector.shape_cast %136 : vector<1xf32> to vector<1x1xf32>
    %138 = arith.addf %108, %137 : vector<1x1xf32>
    %cst_25 = arith.constant dense<0x7F800000> : vector<384xf32>
    %139 = vector.multi_reduction <minimumf>, %131, %cst_25 [0] : vector<128x384xf32> to vector<384xf32>
    %140 = vector.shape_cast %139 : vector<384xf32> to vector<1x384xf32>
    %c0_26 = arith.constant 0 : index
    %c0_27 = arith.constant 0 : index
    %141 = vector.load %arg6[%c0_26, %c0_27] : memref<8x384xf32, #tpu.memory_space<vmem>>, vector<1x384xf32>
    %142 = arith.minimumf %141, %140 : vector<1x384xf32>
    %c0_28 = arith.constant 0 : index
    %c0_29 = arith.constant 0 : index
    %143 = vector.load %arg6[%c0_28, %c0_29] : memref<8x384xf32, #tpu.memory_space<vmem>>, vector<1x384xf32>
    tpu.vector_store %arg6[%c0_28, %c0_29], %142 {strides = array<i32>} : memref<8x384xf32, #tpu.memory_space<vmem>>, vector<1x384xf32>,
    %144 = vector.extract_strided_slice %1 {offsets = [1, 0], sizes = [1, 1], strides = [1, 1]} : vector<8x128xf32> to vector<1x1xf32>
    %145 = vector.extract_strided_slice %1 {offsets = [1, 1], sizes = [1, 1], strides = [1, 1]} : vector<8x128xf32> to vector<1x1xf32>
    %146 = vector.extract_strided_slice %1 {offsets = [1, 2], sizes = [1, 1], strides = [1, 1]} : vector<8x128xf32> to vector<1x1xf32>
    %147 = vector.broadcast %144 : vector<1x1xf32> to vector<128x1xf32>
    %148 = arith.mulf %67, %147 : vector<128x1xf32>
    %149 = vector.broadcast %145 : vector<1x1xf32> to vector<128x1xf32>
    %150 = arith.mulf %68, %149 : vector<128x1xf32>
    %151 = arith.addf %148, %150 : vector<128x1xf32>
    %152 = vector.broadcast %146 : vector<1x1xf32> to vector<128x1xf32>
    %153 = arith.mulf %69, %152 : vector<128x1xf32>
    %154 = arith.addf %151, %153 : vector<128x1xf32>
    %cst_30 = arith.constant 2.000000e+00 : f32
    %155 = vector.broadcast %cst_30 : f32 to vector<128x1xf32>
    %156 = arith.mulf %155, %154 : vector<128x1xf32>
    %157 = vector.extract_strided_slice %66 {offsets = [1, 0], sizes = [1, 384], strides = [1, 1]} : vector<8x384xf32> to vector<1x384xf32>
    %158 = vector.broadcast %157 : vector<1x384xf32> to vector<128x384xf32>
    %159 = arith.addf %104, %158 : vector<128x384xf32>
    %160 = vector.extract_strided_slice %41 {offsets = [1, 0], sizes = [1, 384], strides = [1, 1]} : vector<8x384xf32> to vector<1x384xf32>
    %161 = vector.broadcast %156 : vector<128x1xf32> to vector<128x384xf32>
    %162 = vector.broadcast %160 : vector<1x384xf32> to vector<128x384xf32>
    %163 = arith.mulf %161, %162 : vector<128x384xf32>
    %164 = arith.addf %159, %163 : vector<128x384xf32>
    %cst_31 = arith.constant 0.000000e+00 : f32
    %165 = vector.broadcast %cst_31 : f32 to vector<128x384xf32>
    %166 = arith.maximumf %164, %165 : vector<128x384xf32>
    %cst_32 = arith.constant dense<0x7F800000> : vector<128xf32>
    %167 = vector.multi_reduction <minimumf>, %166, %cst_32 [1] : vector<128x384xf32> to vector<128xf32>
    %168 = vector.shape_cast %167 : vector<128xf32> to vector<128x1xf32>
    %cst_33 = arith.constant 0.000000e+00 : f32
    %169 = vector.broadcast %cst_33 : f32 to vector<128x1xf32>
    %170 = arith.select %99, %168, %169 : vector<128x1xi1>, vector<128x1xf32>
    %cst_34 = arith.constant dense<0.000000e+00> : vector<1xf32>
    %171 = vector.multi_reduction <add>, %170, %cst_34 [0] : vector<128x1xf32> to vector<1xf32>
    %172 = vector.shape_cast %171 : vector<1xf32> to vector<1x1xf32>
    %173 = arith.addf %138, %172 : vector<1x1xf32>
    %cst_35 = arith.constant dense<0x7F800000> : vector<384xf32>
    %174 = vector.multi_reduction <minimumf>, %166, %cst_35 [0] : vector<128x384xf32> to vector<384xf32>
    %175 = vector.shape_cast %174 : vector<384xf32> to vector<1x384xf32>
    %c1 = arith.constant 1 : index
    %c0_36 = arith.constant 0 : index
    %176 = vector.load %arg6[%c1, %c0_36] : memref<8x384xf32, #tpu.memory_space<vmem>>, vector<1x384xf32>
    %177 = arith.minimumf %176, %175 : vector<1x384xf32>
    %c1_37 = arith.constant 1 : index
    %c0_38 = arith.constant 0 : index
    %178 = vector.load %arg6[%c1_37, %c0_38] : memref<8x384xf32, #tpu.memory_space<vmem>>, vector<1x384xf32>
    tpu.vector_store %arg6[%c1_37, %c0_38], %177 {strides = array<i32>} : memref<8x384xf32, #tpu.memory_space<vmem>>, vector<1x384xf32>,
    %179 = vector.extract_strided_slice %1 {offsets = [2, 0], sizes = [1, 1], strides = [1, 1]} : vector<8x128xf32> to vector<1x1xf32>
    %180 = vector.extract_strided_slice %1 {offsets = [2, 1], sizes = [1, 1], strides = [1, 1]} : vector<8x128xf32> to vector<1x1xf32>
    %181 = vector.extract_strided_slice %1 {offsets = [2, 2], sizes = [1, 1], strides = [1, 1]} : vector<8x128xf32> to vector<1x1xf32>
    %182 = vector.broadcast %179 : vector<1x1xf32> to vector<128x1xf32>
    %183 = arith.mulf %67, %182 : vector<128x1xf32>
    %184 = vector.broadcast %180 : vector<1x1xf32> to vector<128x1xf32>
    %185 = arith.mulf %68, %184 : vector<128x1xf32>
    %186 = arith.addf %183, %185 : vector<128x1xf32>
    %187 = vector.broadcast %181 : vector<1x1xf32> to vector<128x1xf32>
    %188 = arith.mulf %69, %187 : vector<128x1xf32>
    %189 = arith.addf %186, %188 : vector<128x1xf32>
    %cst_39 = arith.constant 2.000000e+00 : f32
    %190 = vector.broadcast %cst_39 : f32 to vector<128x1xf32>
    %191 = arith.mulf %190, %189 : vector<128x1xf32>
    %192 = vector.extract_strided_slice %66 {offsets = [2, 0], sizes = [1, 384], strides = [1, 1]} : vector<8x384xf32> to vector<1x384xf32>
    %193 = vector.broadcast %192 : vector<1x384xf32> to vector<128x384xf32>
    %194 = arith.addf %104, %193 : vector<128x384xf32>
    %195 = vector.extract_strided_slice %41 {offsets = [2, 0], sizes = [1, 384], strides = [1, 1]} : vector<8x384xf32> to vector<1x384xf32>
    %196 = vector.broadcast %191 : vector<128x1xf32> to vector<128x384xf32>
    %197 = vector.broadcast %195 : vector<1x384xf32> to vector<128x384xf32>
    %198 = arith.mulf %196, %197 : vector<128x384xf32>
    %199 = arith.addf %194, %198 : vector<128x384xf32>
    %cst_40 = arith.constant 0.000000e+00 : f32
    %200 = vector.broadcast %cst_40 : f32 to vector<128x384xf32>
    %201 = arith.maximumf %199, %200 : vector<128x384xf32>
    %cst_41 = arith.constant dense<0x7F800000> : vector<128xf32>
    %202 = vector.multi_reduction <minimumf>, %201, %cst_41 [1] : vector<128x384xf32> to vector<128xf32>
    %203 = vector.shape_cast %202 : vector<128xf32> to vector<128x1xf32>
    %cst_42 = arith.constant 0.000000e+00 : f32
    %204 = vector.broadcast %cst_42 : f32 to vector<128x1xf32>
    %205 = arith.select %99, %203, %204 : vector<128x1xi1>, vector<128x1xf32>
    %cst_43 = arith.constant dense<0.000000e+00> : vector<1xf32>
    %206 = vector.multi_reduction <add>, %205, %cst_43 [0] : vector<128x1xf32> to vector<1xf32>
    %207 = vector.shape_cast %206 : vector<1xf32> to vector<1x1xf32>
    %208 = arith.addf %173, %207 : vector<1x1xf32>
    %cst_44 = arith.constant dense<0x7F800000> : vector<384xf32>
    %209 = vector.multi_reduction <minimumf>, %201, %cst_44 [0] : vector<128x384xf32> to vector<384xf32>
    %210 = vector.shape_cast %209 : vector<384xf32> to vector<1x384xf32>
    %c2 = arith.constant 2 : index
    %c0_45 = arith.constant 0 : index
    %211 = vector.load %arg6[%c2, %c0_45] : memref<8x384xf32, #tpu.memory_space<vmem>>, vector<1x384xf32>
    %212 = arith.minimumf %211, %210 : vector<1x384xf32>
    %c2_46 = arith.constant 2 : index
    %c0_47 = arith.constant 0 : index
    %213 = vector.load %arg6[%c2_46, %c0_47] : memref<8x384xf32, #tpu.memory_space<vmem>>, vector<1x384xf32>
    tpu.vector_store %arg6[%c2_46, %c0_47], %212 {strides = array<i32>} : memref<8x384xf32, #tpu.memory_space<vmem>>, vector<1x384xf32>,
    %c0_48 = arith.constant 0 : index
    %c0_49 = arith.constant 0 : index
    %c0_50 = arith.constant 0 : index
    %214 = vector.load %arg5[%c0_48, %c0_49, %c0_50] : memref<1x1x128xf32, #tpu.memory_space<vmem>>, vector<1x1x128xf32>
    %215 = vector.shape_cast %214 : vector<1x1x128xf32> to vector<1x128xf32>
    %216 = vector.shape_cast %208 : vector<1x1xf32> to vector<1x1xf32>
    %217 = vector.broadcast %216 : vector<1x1xf32> to vector<1x128xf32>
    %218 = arith.addf %215, %217 : vector<1x128xf32>
    %c0_51 = arith.constant 0 : index
    %c0_52 = arith.constant 0 : index
    %c0_53 = arith.constant 0 : index
    %219 = vector.load %arg5[%c0_51, %c0_52, %c0_53] : memref<1x1x128xf32, #tpu.memory_space<vmem>>, vector<1x1x128xf32>
    %220 = vector.shape_cast %219 : vector<1x1x128xf32> to vector<1x128xf32>
    %221 = vector.shape_cast %218 : vector<1x128xf32> to vector<1x1x128xf32>
    tpu.vector_store %arg5[%c0_51, %c0_52, %c0_53], %221 {strides = array<i32>} : memref<1x1x128xf32, #tpu.memory_space<vmem>>, vector<1x1x128xf32>,
    %c2_i32 = arith.constant 2 : i32
    %222 = arith.cmpi eq, %arg1, %c2_i32 : i32
    %223 = arith.extui %222 : i1 to i32
    %c0_i32_54 = arith.constant 0 : i32
    %224 = arith.cmpi ne, %223, %c0_i32_54 : i32
    scf.if %224 {
      %c0_55 = arith.constant 0 : index
      %c0_56 = arith.constant 0 : index
      %225 = vector.load %arg6[%c0_55, %c0_56] : memref<8x384xf32, #tpu.memory_space<vmem>>, vector<8x384xf32>
      %226 = tpu.iota {dimensions = array<i32: 0>} : vector<8x384xi32>
      %c3_i32 = arith.constant 3 : i32
      %227 = vector.broadcast %c3_i32 : i32 to vector<8x384xi32>
      %228 = arith.cmpi slt, %226, %227 : vector<8x384xi32>
      %229 = tpu.iota {dimensions = array<i32: 1>} : vector<8x384xi32>
      %c300_i32_57 = arith.constant 300 : i32
      %230 = vector.broadcast %c300_i32_57 : i32 to vector<8x384xi32>
      %231 = arith.cmpi slt, %229, %230 : vector<8x384xi32>
      %232 = arith.andi %228, %231 : vector<8x384xi1>
      %cst_58 = arith.constant 0.000000e+00 : f32
      %233 = vector.broadcast %cst_58 : f32 to vector<8x384xf32>
      %234 = arith.select %232, %225, %233 : vector<8x384xi1>, vector<8x384xf32>
      %cst_59 = arith.constant dense<0.000000e+00> : vector<8xf32>
      %235 = vector.multi_reduction <add>, %234, %cst_59 [1] : vector<8x384xf32> to vector<8xf32>
      %236 = vector.shape_cast %235 : vector<8xf32> to vector<8x1xf32>
      %cst_60 = arith.constant dense<0.000000e+00> : vector<1xf32>
      %237 = vector.multi_reduction <add>, %236, %cst_60 [0] : vector<8x1xf32> to vector<1xf32>
      %238 = vector.shape_cast %237 : vector<1xf32> to vector<1x1xf32>
      %239 = vector.extract_strided_slice %1 {offsets = [0, 0], sizes = [8, 3], strides = [1, 1]} : vector<8x128xf32> to vector<8x3xf32>
      %240 = arith.mulf %239, %239 : vector<8x3xf32>
      %cst_61 = arith.constant dense<0.000000e+00> : vector<8xf32>
      %241 = vector.multi_reduction <add>, %240, %cst_61 [1] : vector<8x3xf32> to vector<8xf32>
      %242 = vector.shape_cast %241 : vector<8xf32> to vector<8x1xf32>
      %cst_62 = arith.constant 0.000000e+00 : f32
      %243 = vector.broadcast %cst_62 : f32 to vector<8x1xf32>
      %244 = arith.cmpf ogt, %242, %243 : vector<8x1xf32>
      %cst_63 = arith.constant 1.000000e+00 : f32
      %245 = vector.broadcast %cst_63 : f32 to vector<8x1xf32>
      %246 = arith.select %244, %242, %245 : vector<8x1xi1>, vector<8x1xf32>
      %247 = math.rsqrt %246 : vector<8x1xf32>
      %248 = vector.broadcast %247 : vector<8x1xf32> to vector<8x3xf32>
      %249 = arith.mulf %239, %248 : vector<8x3xf32>
      %cst_64 = arith.constant dense<0.000000e+00> : vector<8x8xf32>
      %250 = tpu.matmul %249, %249, %cst_64 {dimension_numbers = #tpu.dot_dimension_numbers<[1], [1], [0], [0], [0, 0, 1, 0], [], []>} : vector<8x3xf32>, vector<8x3xf32>, vector<8x8xf32> -> vector<8x8xf32>
      %251 = tpu.iota {dimensions = array<i32: 0>} : vector<8x8xi32>
      %252 = tpu.iota {dimensions = array<i32: 1>} : vector<8x8xi32>
      %253 = arith.cmpi eq, %251, %252 : vector<8x8xi32>
      %c3_i32_65 = arith.constant 3 : i32
      %254 = vector.broadcast %c3_i32_65 : i32 to vector<8x8xi32>
      %255 = arith.cmpi slt, %251, %254 : vector<8x8xi32>
      %256 = arith.andi %253, %255 : vector<8x8xi1>
      %cst_66 = arith.constant 1.000000e+00 : f32
      %cst_67 = arith.constant 0.000000e+00 : f32
      %257 = vector.broadcast %cst_66 : f32 to vector<8x8xf32>
      %258 = vector.broadcast %cst_67 : f32 to vector<8x8xf32>
      %259 = arith.select %256, %257, %258 : vector<8x8xi1>, vector<8x8xf32>
      %260 = arith.subf %250, %259 : vector<8x8xf32>
      %261 = arith.mulf %260, %260 : vector<8x8xf32>
      %cst_68 = arith.constant dense<0.000000e+00> : vector<8xf32>
      %262 = vector.multi_reduction <add>, %261, %cst_68 [1] : vector<8x8xf32> to vector<8xf32>
      %263 = vector.shape_cast %262 : vector<8xf32> to vector<8x1xf32>
      %cst_69 = arith.constant dense<0.000000e+00> : vector<1xf32>
      %264 = vector.multi_reduction <add>, %263, %cst_69 [0] : vector<8x1xf32> to vector<1xf32>
      %265 = vector.shape_cast %264 : vector<1xf32> to vector<1x1xf32>
      %266 = math.sqrt %265 : vector<1x1xf32>
      %cst_70 = arith.constant 2.500000e+01 : f32
      %267 = vector.broadcast %cst_70 : f32 to vector<1x1xf32>
      %268 = arith.mulf %267, %266 : vector<1x1xf32>
      %269 = arith.addf %238, %268 : vector<1x1xf32>
      %c0_71 = arith.constant 0 : index
      %c0_72 = arith.constant 0 : index
      %c0_73 = arith.constant 0 : index
      %270 = vector.load %arg5[%c0_71, %c0_72, %c0_73] : memref<1x1x128xf32, #tpu.memory_space<vmem>>, vector<1x1x128xf32>
      %271 = vector.shape_cast %270 : vector<1x1x128xf32> to vector<1x128xf32>
      %272 = vector.shape_cast %269 : vector<1x1xf32> to vector<1x1xf32>
      %273 = vector.broadcast %272 : vector<1x1xf32> to vector<1x128xf32>
      %274 = arith.addf %271, %273 : vector<1x128xf32>
      %c0_74 = arith.constant 0 : index
      %c0_75 = arith.constant 0 : index
      %c0_76 = arith.constant 0 : index
      %275 = vector.load %arg5[%c0_74, %c0_75, %c0_76] : memref<1x1x128xf32, #tpu.memory_space<vmem>>, vector<1x1x128xf32>
      %276 = vector.shape_cast %275 : vector<1x1x128xf32> to vector<1x128xf32>
      %277 = vector.shape_cast %274 : vector<1x128xf32> to vector<1x1x128xf32>
      tpu.vector_store %arg5[%c0_74, %c0_75, %c0_76], %277 {strides = array<i32>} : memref<1x1x128xf32, #tpu.memory_space<vmem>>, vector<1x1x128xf32>,
    } else {
    }
    return
  }
  func.func @transform_0(%arg0: i32, %arg1: i32) -> (i32, i32, i32) {
    %c0_i32 = arith.constant 0 : i32
    %c0_i32_0 = arith.constant 0 : i32
    %c0_i32_1 = arith.constant 0 : i32
    return %arg0, %c0_i32, %c0_i32_0 : i32, i32, i32
  }
  func.func @transform_1(%arg0: i32, %arg1: i32) -> (i32, i32, i32) {
    %c0_i32 = arith.constant 0 : i32
    %c0_i32_0 = arith.constant 0 : i32
    return %arg0, %arg1, %c0_i32 : i32, i32, i32
  }
  func.func @transform_2(%arg0: i32, %arg1: i32) -> (i32, i32, i32) {
    %c0_i32 = arith.constant 0 : i32
    %c0_i32_0 = arith.constant 0 : i32
    %c0_i32_1 = arith.constant 0 : i32
    return %arg0, %c0_i32, %c0_i32_0 : i32, i32, i32
  }
  func.func @transform_3(%arg0: i32, %arg1: i32) -> (i32, i32, i32) {
    %c0_i32 = arith.constant 0 : i32
    %c0_i32_0 = arith.constant 0 : i32
    %c0_i32_1 = arith.constant 0 : i32
    return %arg0, %c0_i32, %c0_i32_0 : i32, i32, i32
  }
}

</mosaic_0001>

<llo_original>
// kernel: tpu_custom_call.1
$region0: #{tpu_custom_call.1}
  #allocation0 [shape = 'u32[]', space=smem, size = 0x4, offset = 0x4, fixed_abs, tag = 'smem constant byte address 0x4 - core index']
  #allocation1 [shape = 'u32[144,128]{1,0:T(1,128)}', space=vmem, size = 0x12000, scoped, tag = 'internal scratch']
  #allocation2 [shape = 'f32[8,384]{1,0:T(8,128)}', space=vmem, size = 0x3000, scoped, tag = 'scratch operand']
  %s0 = inlined_call_operand.vmem [shape: f32[2,8,128], index: 0, kind: input, shape index: {}]
  %s1 = inlined_call_operand.vmem [shape: f32[2,384,3], index: 1, kind: input, shape index: {}]
  %s2 = inlined_call_operand.vmem [shape: f32[2,3,384], index: 2, kind: input, shape index: {}]
  %s3 = inlined_call_operand.hbm [shape: f32[2,1,128], index: 3, kind: output, shape index: {}]
  %s4 = sld [smem:[#allocation0]]
  $region53: #{tpu_custom_call.1} parent=0
    _
  %s6 = ssub.s32 1, %s4
  %s7 = scalar_select 0, %s6, %s4
  $region1: #{tpu_custom_call.1} parent=0
    #allocation3 [shape = 'u8[1024]{0}', space=vmem, size = 0x400, scoped, tag = 'output window, operand 0']
    #allocation4 [shape = 's32[2]{0}', space=sflag, size = 0x8, scoped, tag = 'scoped memory for tpu_custom_call.1']
    %8 = vsyncpa [#allocation4], 0
    %s9 = scalar_lea.sflag [#allocation4], 1
    %10 = vsyncpa %s9, 0
    loop: start=0, step=1, limit=8
    $region2: #{tpu_custom_call.1} parent=1 // loop_pre_header
      _
    $region3: #{tpu_custom_call.1} parent=1 // loop_header
      %s12 = sphi 0, %s16
      %p13 = scmp.ge.s32.totalorder %s12, 8
      %s19 = sphi 0, %s31
      %s20 = sphi 0, %s27
      %s21 = sphi 0, %s19
      %s22 = sphi 0, %s20
      %s23 = sphi 0, %s21
      %s24 = sphi 0, %s22
      %s34 = sphi 0, %s36
      %s37 = sphi 0, %s34
      %s38 = sphi 0, %s37
      %s54 = sphi 0, %s38
      %s62 = sphi 0, %s64
      %s65 = sphi 0, %s62
      %s66 = sphi 0, %s65
      %s82 = sphi 0, %s66
      %s88 = sphi 0, %s90
      %s91 = sphi 0, %s88
      %s92 = sphi 0, %s91
      %s108 = sphi 0, %s92
      %s114 = sphi 0, %s116
      %s117 = sphi 0, %s114
      %s118 = sphi 0, %s117
      %s134 = sphi 0, %s118
    $region4: #{tpu_custom_call.1} parent=1 // loop_header_branch
      %15 = sbr.rel (%p13) target = $region8
    $region5: #{tpu_custom_call.1} parent=1 // loop_body
      %s17 = ssub.s32 %s12, 1
      %s18 = ssub.s32 %s12, 2
      %s25 = sadd.s32 1, %s20
      %p26 = scmp.ge.s32.totalorder %s25, 3
      %s27 = scalar_select %p26, 0, %s25
      %s28 = sadd.s32 1, %s19
      %s29 = scalar_select %p26, %s28, %s19
      %p30 = scmp.ge.s32.totalorder %s29, 2
      %s31 = scalar_select %p30, 0, %s29
      %s32 = ssub.s32 %s19, %s31
      %p33 = scmp.eq.s32.totalorder %s32, 0
      %s35 = sadd.s32 %s34, 1
      %s36 = scalar_select %p33, %s34, %s35
      %p39 = pneg %p33
      %p40 = scmp.eq.s32.totalorder %s12, 5
      %p41 = por %p39, %p40
      %p42 = scmp.ne.s32.totalorder %s34, %s37
      %p43 = scmp.eq.s32.totalorder %s12, 0
      %p44 = por %p42, %p43
      %p45 = scmp.ne.s32.totalorder %s34, %s37
      %p46 = scmp.eq.s32.totalorder %s17, 5
      %p47 = por %p45, %p46
      %p48 = scmp.ne.s32.totalorder %s37, %s38
      %p49 = scmp.eq.s32.totalorder %s17, 0
      %p50 = por %p48, %p49
      %p51 = scmp.ne.s32.totalorder %s37, %s38
      %p52 = scmp.eq.s32.totalorder %s18, 5
      %p53 = por %p51, %p52
      %p55 = scmp.ne.s32.totalorder %s38, %s54
      %p56 = scmp.eq.s32.totalorder %s18, 0
      %p57 = por %p55, %p56
      %s58 = ssub.s32 %s19, %s31
      %s59 = ssub.s32 %s20, %s27
      %s60 = sor.u32 %s58, %s59
      %p61 = scmp.eq.s32.totalorder %s60, 0
      %s63 = sadd.s32 %s62, 1
      %s64 = scalar_select %p61, %s62, %s63
      %p67 = pneg %p61
      %p68 = scmp.eq.s32.totalorder %s12, 5
      %p69 = por %p67, %p68
      %p70 = scmp.ne.s32.totalorder %s62, %s65
      %p71 = scmp.eq.s32.totalorder %s12, 0
      %p72 = por %p70, %p71
      %p73 = scmp.ne.s32.totalorder %s62, %s65
      %p74 = scmp.eq.s32.totalorder %s17, 5
      %p75 = por %p73, %p74
      %p76 = scmp.ne.s32.totalorder %s65, %s66
      %p77 = scmp.eq.s32.totalorder %s17, 0
      %p78 = por %p76, %p77
      %p79 = scmp.ne.s32.totalorder %s65, %s66
      %p80 = scmp.eq.s32.totalorder %s18, 5
      %p81 = por %p79, %p80
      %p83 = scmp.ne.s32.totalorder %s66, %s82
      %p84 = scmp.eq.s32.totalorder %s18, 0
      %p85 = por %p83, %p84
      %s86 = ssub.s32 %s19, %s31
      %p87 = scmp.eq.s32.totalorder %s86, 0
      %s89 = sadd.s32 %s88, 1
      %s90 = scalar_select %p87, %s88, %s89
      %p93 = pneg %p87
      %p94 = scmp.eq.s32.totalorder %s12, 5
      %p95 = por %p93, %p94
      %p96 = scmp.ne.s32.totalorder %s88, %s91
      %p97 = scmp.eq.s32.totalorder %s12, 0
      %p98 = por %p96, %p97
      %p99 = scmp.ne.s32.totalorder %s88, %s91
      %p100 = scmp.eq.s32.totalorder %s17, 5
      %p101 = por %p99, %p100
      %p102 = scmp.ne.s32.totalorder %s91, %s92
      %p103 = scmp.eq.s32.totalorder %s17, 0
      %p104 = por %p102, %p103
      %p105 = scmp.ne.s32.totalorder %s91, %s92
      %p106 = scmp.eq.s32.totalorder %s18, 5
      %p107 = por %p105, %p106
      %p109 = scmp.ne.s32.totalorder %s92, %s108
      %p110 = scmp.eq.s32.totalorder %s18, 0
      %p111 = por %p109, %p110
      %s112 = ssub.s32 %s19, %s31
      %p113 = scmp.eq.s32.totalorder %s112, 0
      %s115 = sadd.s32 %s114, 1
      %s116 = scalar_select %p113, %s114, %s115
      %p119 = pneg %p113
      %p120 = scmp.eq.s32.totalorder %s12, 5
      %p121 = por %p119, %p120
      %p122 = scmp.ne.s32.totalorder %s114, %s117
      %p123 = scmp.eq.s32.totalorder %s12, 0
      %p124 = por %p122, %p123
      %p125 = scmp.ne.s32.totalorder %s114, %s117
      %p126 = scmp.eq.s32.totalorder %s17, 5
      %p127 = por %p125, %p126
      %p128 = scmp.ne.s32.totalorder %s117, %s118
      %p129 = scmp.eq.s32.totalorder %s17, 0
      %p130 = por %p128, %p129
      %p131 = scmp.ne.s32.totalorder %s117, %s118
      %p132 = scmp.eq.s32.totalorder %s18, 5
      %p133 = por %p131, %p132
      %p135 = scmp.ne.s32.totalorder %s118, %s134
      %p136 = scmp.eq.s32.totalorder %s18, 0
      %p137 = por %p135, %p136
      %p138 = scmp.le.s32.totalorder 1, %s12
      %p139 = scmp.lt.s32.totalorder %s12, 7
      %p140 = pnand %p138, %p139
      %p141 = pneg %p140
      // Predicated region
      $region9: #{tpu_custom_call.1} parent=5 // pred_check
        _
      $region10: #{tpu_custom_call.1} parent=5 // pred_check_branch
        %143 = sbr.rel (%p140) target = $region12
      $region11: #{tpu_custom_call.1} parent=5 // pred_region
        %s144 = ssub.s32 %s12, 1
      $region12: #{tpu_custom_call.1} parent=5 // pred_fallthru
        _
      %p145 = scmp.lt.s32.totalorder %s12, 6
      // Predicated region
      $region13: #{tpu_custom_call.1} parent=5 // pred_check
        %p146 = pneg %p145
      $region14: #{tpu_custom_call.1} parent=5 // pred_check_branch
        %148 = sbr.rel (%p146) target = $region16
      $region15: #{tpu_custom_call.1} parent=5 // pred_region
        // Predicated region
        $region17: #{tpu_custom_call.1} parent=15 // pred_check
          %p149 = pneg %p44
        $region18: #{tpu_custom_call.1} parent=15 // pred_check_branch
          %151 = sbr.rel (%p149) target = $region20
        $region19: #{tpu_custom_call.1} parent=15 // pred_region
          %p152 = scmp.lt.s32.totalorder %s19, 1
          %s153 = scalar_select %p152, %s19, 1
          %s154 = smul.addr %s153, 8
          %s155 = scalar_lea.vmem %s0, %s154
        $region20: #{tpu_custom_call.1} parent=15 // pred_fallthru
          _
        // Predicated region
        $region21: #{tpu_custom_call.1} parent=15 // pred_check
          %p156 = pneg %p72
        $region22: #{tpu_custom_call.1} parent=15 // pred_check_branch
          %158 = sbr.rel (%p156) target = $region24
        $region23: #{tpu_custom_call.1} parent=15 // pred_region
          %s159 = smul.u32 16, %s20
          %p160 = scmp.lt.s32.totalorder %s19, 1
          %s161 = scalar_select %p160, %s19, 1
          %p162 = scmp.lt.s32.totalorder %s159, 47
          %s163 = scalar_select %p162, %s159, 47
          %s164 = smul.addr %s161, 48
          %s165 = sadd.s32 %s163, %s164
          %s166 = smul.addr %s165, 8
          %s167 = scalar_lea.vmem %s1, %s166
          %s168 = smul.u32 16, %s20
        $region24: #{tpu_custom_call.1} parent=15 // pred_fallthru
          _
        // Predicated region
        $region25: #{tpu_custom_call.1} parent=15 // pred_check
          %p169 = pneg %p98
        $region26: #{tpu_custom_call.1} parent=15 // pred_check_branch
          %171 = sbr.rel (%p169) target = $region28
        $region27: #{tpu_custom_call.1} parent=15 // pred_region
          %p172 = scmp.lt.s32.totalorder %s19, 1
          %s173 = scalar_select %p172, %s19, 1
          %s174 = smul.addr %s173, 3
          %s175 = smul.addr %s174, 4
          %s176 = scalar_lea.vmem %s2, %s175
        $region28: #{tpu_custom_call.1} parent=15 // pred_fallthru
          _
      $region16: #{tpu_custom_call.1} parent=5 // pred_fallthru
        _
      %p177 = scmp.le.s32.totalorder 1, %s12
      %p178 = scmp.lt.s32.totalorder %s12, 7
      %p179 = pnand %p177, %p178
      %p180 = pneg %p179
      // Predicated region
      $region29: #{tpu_custom_call.1} parent=5 // pred_check
        _
      $region30: #{tpu_custom_call.1} parent=5 // pred_check_branch
        %182 = sbr.rel (%p179) target = $region32
      $region31: #{tpu_custom_call.1} parent=5 // pred_region
        %s183 = ssub.s32 %s12, 1
        %p184 = scmp.lt.s32.totalorder %s21, 1
        %s185 = scalar_select %p184, %s21, 1
        %s186 = smul.addr %s185, 8
        %s187 = scalar_lea.vmem %s0, %s186
        %p188 = pneg %p50
        %p189 = pneg %p47
        %s190 = smul.u32 16, %s22
        %p191 = scmp.lt.s32.totalorder %s21, 1
        %s192 = scalar_select %p191, %s21, 1
        %p193 = scmp.lt.s32.totalorder %s190, 47
        %s194 = scalar_select %p193, %s190, 47
        %s195 = smul.addr %s192, 48
        %s196 = sadd.s32 %s194, %s195
        %s197 = smul.addr %s196, 8
        %s198 = scalar_lea.vmem %s1, %s197
        %p199 = pneg %p78
        %p200 = pneg %p75
        %p201 = scmp.lt.s32.totalorder %s21, 1
        %s202 = scalar_select %p201, %s21, 1
        %s203 = smul.addr %s202, 3
        %s204 = smul.addr %s203, 4
        %s205 = scalar_lea.vmem %s2, %s204
        %p206 = pneg %p104
        %p207 = pneg %p101
        %p208 = pneg %p130
        %p209 = pneg %p127
        %s210 = sand.u32 %s117, 1
        %s211 = scalar_lea.sflag [#allocation4], %s210
        %s212 = sand.u32 %s117, 1
        %s213 = scalar_lea.vmem [#allocation3], %s212
        %p214 = scmp.lt.s32.totalorder %s21, 1
        %s215 = scalar_select %p214, %s21, 1
        %s216 = smul.addr %s215, 8
        %s217 = scalar_lea.vmem %s0, %s216
        %s218 = smul.u32 16, %s22
        %p219 = scmp.lt.s32.totalorder %s21, 1
        %s220 = scalar_select %p219, %s21, 1
        %p221 = scmp.lt.s32.totalorder %s218, 47
        %s222 = scalar_select %p221, %s218, 47
        %s223 = smul.addr %s220, 48
        %s224 = sadd.s32 %s222, %s223
        %s225 = smul.addr %s224, 8
        %s226 = scalar_lea.vmem %s1, %s225
        %s227 = smul.u32 16, %s22
        %p228 = scmp.lt.s32.totalorder %s21, 1
        %s229 = scalar_select %p228, %s21, 1
        %s230 = smul.addr %s229, 3
        %s231 = smul.addr %s230, 4
        %s232 = scalar_lea.vmem %s2, %s231
        %v233 = vld [vmem:[%s217] sm:$0xff]
        %v234 = vld [vmem:[%s232] sm:$0x77]
        %v235 = vld [vmem:[%s232 + $0x8] sm:$0x7]
        %v236 = vld [vmem:[%s226] sm:$0xff]
        %v237 = vld [vmem:[%s226 + $0x8] sm:$0xff]
        %v238 = vld [vmem:[%s226 + $0x10] sm:$0xff]
        %v239 = vld [vmem:[%s226 + $0x18] sm:$0xff]
        %v240 = vld [vmem:[%s226 + $0x20] sm:$0xff]
        %v241 = vld [vmem:[%s226 + $0x28] sm:$0xff]
        %v242 = vld [vmem:[%s226 + $0x30] sm:$0xff]
        %v243 = vld [vmem:[%s226 + $0x38] sm:$0xff]
        %v244 = vld [vmem:[%s226 + $0x40] sm:$0xff]
        %v245 = vld [vmem:[%s226 + $0x48] sm:$0xff]
        %v246 = vld [vmem:[%s226 + $0x50] sm:$0xff]
        %v247 = vld [vmem:[%s226 + $0x58] sm:$0xff]
        %v248 = vld [vmem:[%s226 + $0x60] sm:$0xff]
        %v249 = vld [vmem:[%s226 + $0x68] sm:$0xff]
        %v250 = vld [vmem:[%s226 + $0x70] sm:$0xff]
        %v251 = vld [vmem:[%s226 + $0x78] sm:$0xff]
        %v252 = vmul.f32 %v233, %v233
        %254 = vrot.lane.b32.xlu0 %v252, 127
        %v255 = vpop.permute.xlu0 %254
        %v257 = vadd.f32 %v252, %v255
        %258 = vrot.lane.b32.xlu0 %v252, 126
        %v259 = vpop.permute.xlu0 %258
        %v261 = vadd.f32 %v257, %v259
        %vm262 = vcmp.gt.f32.partialorder %v261, 0.0
        %v263 = vsel %vm262, %v261, 1.0
        %v264 = vrsqrt.pop %v263
        %266 = vset.pattern.permute.xlu0 0
        %267 = vperm.xlu0 %266, %v233
        %v268 = vpop.permute.xlu0 %267
        %v272 = vlaneseq
        %v273 = vshrl.u32 %v272, 7
        %v274 = vsub.s32 0, %v273
        %v275 = vrot.slane %v234, %v274
        %v276 = vlaneseq
        %v277 = vshrl.u32 %v276, 7
        %v278 = vsub.s32 4, %v277
        %v279 = vrot.slane %v234, %v278
        %v280 = vlaneseq
        %v281 = vshrl.u32 %v280, 7
        %v282 = vsub.s32 0, %v281
        %v283 = vrot.slane %v235, %v282
        %v287 = vlaneseq
        %v288 = vshrl.u32 %v287, 7
        %v289 = vsub.s32 0, %v288
        %v290 = vrot.slane %v275, %v289
        %v291 = vlaneseq
        %v292 = vshrl.u32 %v291, 7
        %v293 = vsub.s32 0, %v292
        %v294 = vrot.slane %v279, %v293
        %v295 = vlaneseq
        %v296 = vshrl.u32 %v295, 7
        %v297 = vsub.s32 0, %v296
        %v298 = vrot.slane %v283, %v297
        %v299 = vmul.f32 %v268, %v290
        %v300 = vmul.f32 %v268, %v294
        %v301 = vmul.f32 %v268, %v298
        %302 = vset.pattern.permute.xlu0 1
        %303 = vperm.xlu0 %302, %v233
        %v304 = vpop.permute.xlu0 %303
        %v306 = vlaneseq
        %v307 = vshrl.u32 %v306, 7
        %v308 = vsub.s32 1, %v307
        %v309 = vrot.slane %v234, %v308
        %v310 = vlaneseq
        %v311 = vshrl.u32 %v310, 7
        %v312 = vsub.s32 5, %v311
        %v313 = vrot.slane %v234, %v312
        %v314 = vlaneseq
        %v315 = vshrl.u32 %v314, 7
        %v316 = vsub.s32 1, %v315
        %v317 = vrot.slane %v235, %v316
        %v321 = vlaneseq
        %v322 = vshrl.u32 %v321, 7
        %v323 = vsub.s32 1, %v322
        %v324 = vrot.slane %v309, %v323
        %v325 = vlaneseq
        %v326 = vshrl.u32 %v325, 7
        %v327 = vsub.s32 1, %v326
        %v328 = vrot.slane %v313, %v327
        %v329 = vlaneseq
        %v330 = vshrl.u32 %v329, 7
        %v331 = vsub.s32 1, %v330
        %v332 = vrot.slane %v317, %v331
        %v333 = vmul.f32 %v304, %v324
        %v334 = vmul.f32 %v304, %v328
        %v335 = vmul.f32 %v304, %v332
        %v336 = vadd.f32 %v299, %v333
        %v337 = vadd.f32 %v300, %v334
        %v338 = vadd.f32 %v301, %v335
        %339 = vset.pattern.permute.xlu0 2
        %340 = vperm.xlu0 %339, %v233
        %v341 = vpop.permute.xlu0 %340
        %v343 = vlaneseq
        %v344 = vshrl.u32 %v343, 7
        %v345 = vsub.s32 2, %v344
        %v346 = vrot.slane %v234, %v345
        %v347 = vlaneseq
        %v348 = vshrl.u32 %v347, 7
        %v349 = vsub.s32 6, %v348
        %v350 = vrot.slane %v234, %v349
        %v351 = vlaneseq
        %v352 = vshrl.u32 %v351, 7
        %v353 = vsub.s32 2, %v352
        %v354 = vrot.slane %v235, %v353
        %v358 = vlaneseq
        %v359 = vshrl.u32 %v358, 7
        %v360 = vsub.s32 2, %v359
        %v361 = vrot.slane %v346, %v360
        %v362 = vlaneseq
        %v363 = vshrl.u32 %v362, 7
        %v364 = vsub.s32 2, %v363
        %v365 = vrot.slane %v350, %v364
        %v366 = vlaneseq
        %v367 = vshrl.u32 %v366, 7
        %v368 = vsub.s32 2, %v367
        %v369 = vrot.slane %v354, %v368
        %v370 = vmul.f32 %v341, %v361
        %v371 = vmul.f32 %v341, %v365
        %v372 = vmul.f32 %v341, %v369
        %v373 = vadd.f32 %v336, %v370
        %v374 = vadd.f32 %v337, %v371
        %v375 = vadd.f32 %v338, %v372
        %377 = vset.pattern.permute.xlu0 0
        %378 = vperm.xlu0 %377, %v264
        %v379 = vpop.permute.xlu0 %378
        %v381 = vmul.f32 %v373, %v379
        %v382 = vmul.f32 %v374, %v379
        %v383 = vmul.f32 %v375, %v379
        %384 = vset.pattern.permute.xlu0 3
        %385 = vperm.xlu0 %384, %v233
        %v386 = vpop.permute.xlu0 %385
        %v388 = vadd.f32 %v381, %v386
        %v389 = vadd.f32 %v382, %v386
        %v390 = vadd.f32 %v383, %v386
        %v391 = vmul.f32 %v264, 2.0
        %393 = vset.pattern.permute.xlu0 0
        %394 = vperm.xlu0 %393, %v391
        %v395 = vpop.permute.xlu0 %394
        %v397 = vmul.f32 %v395, %v388
        %v398 = vmul.f32 %v395, %v389
        %v399 = vmul.f32 %v395, %v390
        %v400 = vmul.f32 %v397, %v268
        %v401 = vmul.f32 %v398, %v268
        %v402 = vmul.f32 %v399, %v268
        %v403 = vsub.f32 %v290, %v400
        %v404 = vsub.f32 %v294, %v401
        %v405 = vsub.f32 %v298, %v402
        %v406 = vmul.f32 %v397, %v304
        %v407 = vmul.f32 %v398, %v304
        %v408 = vmul.f32 %v399, %v304
        %v409 = vsub.f32 %v324, %v406
        %v410 = vsub.f32 %v328, %v407
        %v411 = vsub.f32 %v332, %v408
        %v412 = vmul.f32 %v397, %v341
        %v413 = vmul.f32 %v398, %v341
        %v414 = vmul.f32 %v399, %v341
        %v415 = vsub.f32 %v361, %v412
        %v416 = vsub.f32 %v365, %v413
        %v417 = vsub.f32 %v369, %v414
        %v418 = vmul.f32 %v403, %v403
        %v419 = vmul.f32 %v404, %v404
        %v420 = vmul.f32 %v405, %v405
        %v421 = vmul.f32 %v409, %v409
        %v422 = vmul.f32 %v410, %v410
        %v423 = vmul.f32 %v411, %v411
        %v424 = vadd.f32 %v418, %v421
        %v425 = vadd.f32 %v419, %v422
        %v426 = vadd.f32 %v420, %v423
        %v427 = vmul.f32 %v415, %v415
        %v428 = vmul.f32 %v416, %v416
        %v429 = vmul.f32 %v417, %v417
        %v430 = vadd.f32 %v424, %v427
        %v431 = vadd.f32 %v425, %v428
        %v432 = vadd.f32 %v426, %v429
        %v433 = vlaneseq
        %v434 = vand.u32 %v433, 127
        %v435 = vadd.s32 %v434, 128
        %v436 = vadd.s32 %v434, 256
        %vm437 = vcmp.lt.s32.totalorder %v434, 300
        %vm438 = vcmp.lt.s32.totalorder %v435, 300
        %vm439 = vcmp.lt.s32.totalorder %v436, 300
        %v440 = vsel %vm437, 0.0, 1e+30
        %v441 = vsel %vm438, 0.0, 1e+30
        %v442 = vsel %vm439, 0.0, 1e+30
        %v443 = vadd.f32 %v430, %v440
        %v444 = vadd.f32 %v431, %v441
        %v445 = vadd.f32 %v432, %v442
        %v446 = vmul.f32 %v236, %v236
        %v447 = vmul.f32 %v237, %v237
        %v448 = vmul.f32 %v238, %v238
        %v449 = vmul.f32 %v239, %v239
        %v450 = vmul.f32 %v240, %v240
        %v451 = vmul.f32 %v241, %v241
        %v452 = vmul.f32 %v242, %v242
        %v453 = vmul.f32 %v243, %v243
        %v454 = vmul.f32 %v244, %v244
        %v455 = vmul.f32 %v245, %v245
        %v456 = vmul.f32 %v246, %v246
        %v457 = vmul.f32 %v247, %v247
        %v458 = vmul.f32 %v248, %v248
        %v459 = vmul.f32 %v249, %v249
        %v460 = vmul.f32 %v250, %v250
        %v461 = vmul.f32 %v251, %v251
        %478 = vrot.lane.b32.xlu0 %v446, 127
        %v479 = vpop.permute.xlu0 %478
        %480 = vrot.lane.b32.xlu0 %v447, 127
        %v481 = vpop.permute.xlu0 %480
        %482 = vrot.lane.b32.xlu0 %v448, 127
        %v483 = vpop.permute.xlu0 %482
        %484 = vrot.lane.b32.xlu0 %v449, 127
        %v485 = vpop.permute.xlu0 %484
        %486 = vrot.lane.b32.xlu0 %v450, 127
        %v487 = vpop.permute.xlu0 %486
        %488 = vrot.lane.b32.xlu0 %v451, 127
        %v489 = vpop.permute.xlu0 %488
        %490 = vrot.lane.b32.xlu0 %v452, 127
        %v491 = vpop.permute.xlu0 %490
        %492 = vrot.lane.b32.xlu0 %v453, 127
        %v493 = vpop.permute.xlu0 %492
        %494 = vrot.lane.b32.xlu0 %v454, 127
        %v495 = vpop.permute.xlu0 %494
        %496 = vrot.lane.b32.xlu0 %v455, 127
        %v497 = vpop.permute.xlu0 %496
        %498 = vrot.lane.b32.xlu0 %v456, 127
        %v499 = vpop.permute.xlu0 %498
        %500 = vrot.lane.b32.xlu0 %v457, 127
        %v501 = vpop.permute.xlu0 %500
        %502 = vrot.lane.b32.xlu0 %v458, 127
        %v503 = vpop.permute.xlu0 %502
        %504 = vrot.lane.b32.xlu0 %v459, 127
        %v505 = vpop.permute.xlu0 %504
        %506 = vrot.lane.b32.xlu0 %v460, 127
        %v507 = vpop.permute.xlu0 %506
        %508 = vrot.lane.b32.xlu0 %v461, 127
        %v509 = vpop.permute.xlu0 %508
        %v526 = vadd.f32 %v446, %v479
        %v527 = vadd.f32 %v447, %v481
        %v528 = vadd.f32 %v448, %v483
        %v529 = vadd.f32 %v449, %v485
        %v530 = vadd.f32 %v450, %v487
        %v531 = vadd.f32 %v451, %v489
        %v532 = vadd.f32 %v452, %v491
        %v533 = vadd.f32 %v453, %v493
        %v534 = vadd.f32 %v454, %v495
        %v535 = vadd.f32 %v455, %v497
        %v536 = vadd.f32 %v456, %v499
        %v537 = vadd.f32 %v457, %v501
        %v538 = vadd.f32 %v458, %v503
        %v539 = vadd.f32 %v459, %v505
        %v540 = vadd.f32 %v460, %v507
        %v541 = vadd.f32 %v461, %v509
        %542 = vrot.lane.b32.xlu0 %v446, 126
        %v543 = vpop.permute.xlu0 %542
        %544 = vrot.lane.b32.xlu0 %v447, 126
        %v545 = vpop.permute.xlu0 %544
        %546 = vrot.lane.b32.xlu0 %v448, 126
        %v547 = vpop.permute.xlu0 %546
        %548 = vrot.lane.b32.xlu0 %v449, 126
        %v549 = vpop.permute.xlu0 %548
        %550 = vrot.lane.b32.xlu0 %v450, 126
        %v551 = vpop.permute.xlu0 %550
        %552 = vrot.lane.b32.xlu0 %v451, 126
        %v553 = vpop.permute.xlu0 %552
        %554 = vrot.lane.b32.xlu0 %v452, 126
        %v555 = vpop.permute.xlu0 %554
        %556 = vrot.lane.b32.xlu0 %v453, 126
        %v557 = vpop.permute.xlu0 %556
        %558 = vrot.lane.b32.xlu0 %v454, 126
        %v559 = vpop.permute.xlu0 %558
        %560 = vrot.lane.b32.xlu0 %v455, 126
        %v561 = vpop.permute.xlu0 %560
        %562 = vrot.lane.b32.xlu0 %v456, 126
        %v563 = vpop.permute.xlu0 %562
        %564 = vrot.lane.b32.xlu0 %v457, 126
        %v565 = vpop.permute.xlu0 %564
        %566 = vrot.lane.b32.xlu0 %v458, 126
        %v567 = vpop.permute.xlu0 %566
        %568 = vrot.lane.b32.xlu0 %v459, 126
        %v569 = vpop.permute.xlu0 %568
        %570 = vrot.lane.b32.xlu0 %v460, 126
        %v571 = vpop.permute.xlu0 %570
        %572 = vrot.lane.b32.xlu0 %v461, 126
        %v573 = vpop.permute.xlu0 %572
        %v590 = vadd.f32 %v526, %v543
        %v591 = vadd.f32 %v527, %v545
        %v592 = vadd.f32 %v528, %v547
        %v593 = vadd.f32 %v529, %v549
        %v594 = vadd.f32 %v530, %v551
        %v595 = vadd.f32 %v531, %v553
        %v596 = vadd.f32 %v532, %v555
        %v597 = vadd.f32 %v533, %v557
        %v598 = vadd.f32 %v534, %v559
        %v599 = vadd.f32 %v535, %v561
        %v600 = vadd.f32 %v536, %v563
        %v601 = vadd.f32 %v537, %v565
        %v602 = vadd.f32 %v538, %v567
        %v603 = vadd.f32 %v539, %v569
        %v604 = vadd.f32 %v540, %v571
        %v605 = vadd.f32 %v541, %v573
        %v606 = vmul.f32 %v236, -2.0
        %v607 = vmul.f32 %v237, -2.0
        %v608 = vmul.f32 %v238, -2.0
        %v609 = vmul.f32 %v239, -2.0
        %v610 = vmul.f32 %v240, -2.0
        %v611 = vmul.f32 %v241, -2.0
        %v612 = vmul.f32 %v242, -2.0
        %v613 = vmul.f32 %v243, -2.0
        %v614 = vmul.f32 %v244, -2.0
        %v615 = vmul.f32 %v245, -2.0
        %v616 = vmul.f32 %v246, -2.0
        %v617 = vmul.f32 %v247, -2.0
        %v618 = vmul.f32 %v248, -2.0
        %v619 = vmul.f32 %v249, -2.0
        %v620 = vmul.f32 %v250, -2.0
        %v621 = vmul.f32 %v251, -2.0
        %623 = vset.pattern.permute.xlu0 0
        %624 = vperm.xlu0 %623, %v606
        %v625 = vpop.permute.xlu0 %624
        %628 = vset.pattern.permute.xlu0 0
        %629 = vperm.xlu0 %628, %v607
        %v630 = vpop.permute.xlu0 %629
        %633 = vset.pattern.permute.xlu0 0
        %634 = vperm.xlu0 %633, %v608
        %v635 = vpop.permute.xlu0 %634
        %638 = vset.pattern.permute.xlu0 0
        %639 = vperm.xlu0 %638, %v609
        %v640 = vpop.permute.xlu0 %639
        %643 = vset.pattern.permute.xlu0 0
        %644 = vperm.xlu0 %643, %v610
        %v645 = vpop.permute.xlu0 %644
        %648 = vset.pattern.permute.xlu0 0
        %649 = vperm.xlu0 %648, %v611
        %v650 = vpop.permute.xlu0 %649
        %653 = vset.pattern.permute.xlu0 0
        %654 = vperm.xlu0 %653, %v612
        %v655 = vpop.permute.xlu0 %654
        %658 = vset.pattern.permute.xlu0 0
        %659 = vperm.xlu0 %658, %v613
        %v660 = vpop.permute.xlu0 %659
        %663 = vset.pattern.permute.xlu0 0
        %664 = vperm.xlu0 %663, %v614
        %v665 = vpop.permute.xlu0 %664
        %668 = vset.pattern.permute.xlu0 0
        %669 = vperm.xlu0 %668, %v615
        %v670 = vpop.permute.xlu0 %669
        %673 = vset.pattern.permute.xlu0 0
        %674 = vperm.xlu0 %673, %v616
        %v675 = vpop.permute.xlu0 %674
        %678 = vset.pattern.permute.xlu0 0
        %679 = vperm.xlu0 %678, %v617
        %v680 = vpop.permute.xlu0 %679
        %683 = vset.pattern.permute.xlu0 0
        %684 = vperm.xlu0 %683, %v618
        %v685 = vpop.permute.xlu0 %684
        %688 = vset.pattern.permute.xlu0 0
        %689 = vperm.xlu0 %688, %v619
        %v690 = vpop.permute.xlu0 %689
        %693 = vset.pattern.permute.xlu0 0
        %694 = vperm.xlu0 %693, %v620
        %v695 = vpop.permute.xlu0 %694
        %698 = vset.pattern.permute.xlu0 0
        %699 = vperm.xlu0 %698, %v621
        %v700 = vpop.permute.xlu0 %699
        %v702 = vmul.f32 %v625, %v290
        %v703 = vmul.f32 %v625, %v294
        %v704 = vmul.f32 %v625, %v298
        %v705 = vmul.f32 %v630, %v290
        %v706 = vmul.f32 %v630, %v294
        %v707 = vmul.f32 %v630, %v298
        %v708 = vmul.f32 %v635, %v290
        %v709 = vmul.f32 %v635, %v294
        %v710 = vmul.f32 %v635, %v298
        %v711 = vmul.f32 %v640, %v290
        %v712 = vmul.f32 %v640, %v294
        %v713 = vmul.f32 %v640, %v298
        %v714 = vmul.f32 %v645, %v290
        %v715 = vmul.f32 %v645, %v294
        %v716 = vmul.f32 %v645, %v298
        %v717 = vmul.f32 %v650, %v290
        %v718 = vmul.f32 %v650, %v294
        %v719 = vmul.f32 %v650, %v298
        %v720 = vmul.f32 %v655, %v290
        %v721 = vmul.f32 %v655, %v294
        %v722 = vmul.f32 %v655, %v298
        %v723 = vmul.f32 %v660, %v290
        %v724 = vmul.f32 %v660, %v294
        %v725 = vmul.f32 %v660, %v298
        %v726 = vmul.f32 %v665, %v290
        %v727 = vmul.f32 %v665, %v294
        %v728 = vmul.f32 %v665, %v298
        %v729 = vmul.f32 %v670, %v290
        %v730 = vmul.f32 %v670, %v294
        %v731 = vmul.f32 %v670, %v298
        %v732 = vmul.f32 %v675, %v290
        %v733 = vmul.f32 %v675, %v294
        %v734 = vmul.f32 %v675, %v298
        %v735 = vmul.f32 %v680, %v290
        %v736 = vmul.f32 %v680, %v294
        %v737 = vmul.f32 %v680, %v298
        %v738 = vmul.f32 %v685, %v290
        %v739 = vmul.f32 %v685, %v294
        %v740 = vmul.f32 %v685, %v298
        %v741 = vmul.f32 %v690, %v290
        %v742 = vmul.f32 %v690, %v294
        %v743 = vmul.f32 %v690, %v298
        %v744 = vmul.f32 %v695, %v290
        %v745 = vmul.f32 %v695, %v294
        %v746 = vmul.f32 %v695, %v298
        %v747 = vmul.f32 %v700, %v290
        %v748 = vmul.f32 %v700, %v294
        %v749 = vmul.f32 %v700, %v298
        %751 = vset.pattern.permute.xlu0 0
        %752 = vperm.xlu0 %751, %v590
        %v753 = vpop.permute.xlu0 %752
        %756 = vset.pattern.permute.xlu0 0
        %757 = vperm.xlu0 %756, %v591
        %v758 = vpop.permute.xlu0 %757
        %761 = vset.pattern.permute.xlu0 0
        %762 = vperm.xlu0 %761, %v592
        %v763 = vpop.permute.xlu0 %762
        %766 = vset.pattern.permute.xlu0 0
        %767 = vperm.xlu0 %766, %v593
        %v768 = vpop.permute.xlu0 %767
        %771 = vset.pattern.permute.xlu0 0
        %772 = vperm.xlu0 %771, %v594
        %v773 = vpop.permute.xlu0 %772
        %776 = vset.pattern.permute.xlu0 0
        %777 = vperm.xlu0 %776, %v595
        %v778 = vpop.permute.xlu0 %777
        %781 = vset.pattern.permute.xlu0 0
        %782 = vperm.xlu0 %781, %v596
        %v783 = vpop.permute.xlu0 %782
        %786 = vset.pattern.permute.xlu0 0
        %787 = vperm.xlu0 %786, %v597
        %v788 = vpop.permute.xlu0 %787
        %791 = vset.pattern.permute.xlu0 0
        %792 = vperm.xlu0 %791, %v598
        %v793 = vpop.permute.xlu0 %792
        %796 = vset.pattern.permute.xlu0 0
        %797 = vperm.xlu0 %796, %v599
        %v798 = vpop.permute.xlu0 %797
        %801 = vset.pattern.permute.xlu0 0
        %802 = vperm.xlu0 %801, %v600
        %v803 = vpop.permute.xlu0 %802
        %806 = vset.pattern.permute.xlu0 0
        %807 = vperm.xlu0 %806, %v601
        %v808 = vpop.permute.xlu0 %807
        %811 = vset.pattern.permute.xlu0 0
        %812 = vperm.xlu0 %811, %v602
        %v813 = vpop.permute.xlu0 %812
        %816 = vset.pattern.permute.xlu0 0
        %817 = vperm.xlu0 %816, %v603
        %v818 = vpop.permute.xlu0 %817
        %821 = vset.pattern.permute.xlu0 0
        %822 = vperm.xlu0 %821, %v604
        %v823 = vpop.permute.xlu0 %822
        %826 = vset.pattern.permute.xlu0 0
        %827 = vperm.xlu0 %826, %v605
        %v828 = vpop.permute.xlu0 %827
        %v830 = vadd.f32 %v753, %v702
        %v831 = vadd.f32 %v753, %v703
        %v832 = vadd.f32 %v753, %v704
        %v833 = vadd.f32 %v758, %v705
        %v834 = vadd.f32 %v758, %v706
        %v835 = vadd.f32 %v758, %v707
        %v836 = vadd.f32 %v763, %v708
        %v837 = vadd.f32 %v763, %v709
        %v838 = vadd.f32 %v763, %v710
        %v839 = vadd.f32 %v768, %v711
        %v840 = vadd.f32 %v768, %v712
        %v841 = vadd.f32 %v768, %v713
        %v842 = vadd.f32 %v773, %v714
        %v843 = vadd.f32 %v773, %v715
        %v844 = vadd.f32 %v773, %v716
        %v845 = vadd.f32 %v778, %v717
        %v846 = vadd.f32 %v778, %v718
        %v847 = vadd.f32 %v778, %v719
        %v848 = vadd.f32 %v783, %v720
        %v849 = vadd.f32 %v783, %v721
        %v850 = vadd.f32 %v783, %v722
        %v851 = vadd.f32 %v788, %v723
        %v852 = vadd.f32 %v788, %v724
        %v853 = vadd.f32 %v788, %v725
        %v854 = vadd.f32 %v793, %v726
        %v855 = vadd.f32 %v793, %v727
        %v856 = vadd.f32 %v793, %v728
        %v857 = vadd.f32 %v798, %v729
        %v858 = vadd.f32 %v798, %v730
        %v859 = vadd.f32 %v798, %v731
        %v860 = vadd.f32 %v803, %v732
        %v861 = vadd.f32 %v803, %v733
        %v862 = vadd.f32 %v803, %v734
        %v863 = vadd.f32 %v808, %v735
        %v864 = vadd.f32 %v808, %v736
        %v865 = vadd.f32 %v808, %v737
        %v866 = vadd.f32 %v813, %v738
        %v867 = vadd.f32 %v813, %v739
        %v868 = vadd.f32 %v813, %v740
        %v869 = vadd.f32 %v818, %v741
        %v870 = vadd.f32 %v818, %v742
        %v871 = vadd.f32 %v818, %v743
        %v872 = vadd.f32 %v823, %v744
        %v873 = vadd.f32 %v823, %v745
        %v874 = vadd.f32 %v823, %v746
        %v875 = vadd.f32 %v828, %v747
        %v876 = vadd.f32 %v828, %v748
        %v877 = vadd.f32 %v828, %v749
        %878 = vset.pattern.permute.xlu0 1
        %879 = vperm.xlu0 %878, %v606
        %v880 = vpop.permute.xlu0 %879
        %882 = vset.pattern.permute.xlu0 1
        %883 = vperm.xlu0 %882, %v607
        %v884 = vpop.permute.xlu0 %883
        %886 = vset.pattern.permute.xlu0 1
        %887 = vperm.xlu0 %886, %v608
        %v888 = vpop.permute.xlu0 %887
        %890 = vset.pattern.permute.xlu0 1
        %891 = vperm.xlu0 %890, %v609
        %v892 = vpop.permute.xlu0 %891
        %894 = vset.pattern.permute.xlu0 1
        %895 = vperm.xlu0 %894, %v610
        %v896 = vpop.permute.xlu0 %895
        %898 = vset.pattern.permute.xlu0 1
        %899 = vperm.xlu0 %898, %v611
        %v900 = vpop.permute.xlu0 %899
        %902 = vset.pattern.permute.xlu0 1
        %903 = vperm.xlu0 %902, %v612
        %v904 = vpop.permute.xlu0 %903
        %906 = vset.pattern.permute.xlu0 1
        %907 = vperm.xlu0 %906, %v613
        %v908 = vpop.permute.xlu0 %907
        %910 = vset.pattern.permute.xlu0 1
        %911 = vperm.xlu0 %910, %v614
        %v912 = vpop.permute.xlu0 %911
        %914 = vset.pattern.permute.xlu0 1
        %915 = vperm.xlu0 %914, %v615
        %v916 = vpop.permute.xlu0 %915
        %918 = vset.pattern.permute.xlu0 1
        %919 = vperm.xlu0 %918, %v616
        %v920 = vpop.permute.xlu0 %919
        %922 = vset.pattern.permute.xlu0 1
        %923 = vperm.xlu0 %922, %v617
        %v924 = vpop.permute.xlu0 %923
        %926 = vset.pattern.permute.xlu0 1
        %927 = vperm.xlu0 %926, %v618
        %v928 = vpop.permute.xlu0 %927
        %930 = vset.pattern.permute.xlu0 1
        %931 = vperm.xlu0 %930, %v619
        %v932 = vpop.permute.xlu0 %931
        %934 = vset.pattern.permute.xlu0 1
        %935 = vperm.xlu0 %934, %v620
        %v936 = vpop.permute.xlu0 %935
        %938 = vset.pattern.permute.xlu0 1
        %939 = vperm.xlu0 %938, %v621
        %v940 = vpop.permute.xlu0 %939
        %v942 = vmul.f32 %v880, %v324
        %v943 = vmul.f32 %v880, %v328
        %v944 = vmul.f32 %v880, %v332
        %v945 = vmul.f32 %v884, %v324
        %v946 = vmul.f32 %v884, %v328
        %v947 = vmul.f32 %v884, %v332
        %v948 = vmul.f32 %v888, %v324
        %v949 = vmul.f32 %v888, %v328
        %v950 = vmul.f32 %v888, %v332
        %v951 = vmul.f32 %v892, %v324
        %v952 = vmul.f32 %v892, %v328
        %v953 = vmul.f32 %v892, %v332
        %v954 = vmul.f32 %v896, %v324
        %v955 = vmul.f32 %v896, %v328
        %v956 = vmul.f32 %v896, %v332
        %v957 = vmul.f32 %v900, %v324
        %v958 = vmul.f32 %v900, %v328
        %v959 = vmul.f32 %v900, %v332
        %v960 = vmul.f32 %v904, %v324
        %v961 = vmul.f32 %v904, %v328
        %v962 = vmul.f32 %v904, %v332
        %v963 = vmul.f32 %v908, %v324
        %v964 = vmul.f32 %v908, %v328
        %v965 = vmul.f32 %v908, %v332
        %v966 = vmul.f32 %v912, %v324
        %v967 = vmul.f32 %v912, %v328
        %v968 = vmul.f32 %v912, %v332
        %v969 = vmul.f32 %v916, %v324
        %v970 = vmul.f32 %v916, %v328
        %v971 = vmul.f32 %v916, %v332
        %v972 = vmul.f32 %v920, %v324
        %v973 = vmul.f32 %v920, %v328
        %v974 = vmul.f32 %v920, %v332
        %v975 = vmul.f32 %v924, %v324
        %v976 = vmul.f32 %v924, %v328
        %v977 = vmul.f32 %v924, %v332
        %v978 = vmul.f32 %v928, %v324
        %v979 = vmul.f32 %v928, %v328
        %v980 = vmul.f32 %v928, %v332
        %v981 = vmul.f32 %v932, %v324
        %v982 = vmul.f32 %v932, %v328
        %v983 = vmul.f32 %v932, %v332
        %v984 = vmul.f32 %v936, %v324
        %v985 = vmul.f32 %v936, %v328
        %v986 = vmul.f32 %v936, %v332
        %v987 = vmul.f32 %v940, %v324
        %v988 = vmul.f32 %v940, %v328
        %v989 = vmul.f32 %v940, %v332
        %v990 = vadd.f32 %v830, %v942
        %v991 = vadd.f32 %v831, %v943
        %v992 = vadd.f32 %v832, %v944
        %v993 = vadd.f32 %v833, %v945
        %v994 = vadd.f32 %v834, %v946
        %v995 = vadd.f32 %v835, %v947
        %v996 = vadd.f32 %v836, %v948
        %v997 = vadd.f32 %v837, %v949
        %v998 = vadd.f32 %v838, %v950
        %v999 = vadd.f32 %v839, %v951
        %v1000 = vadd.f32 %v840, %v952
        %v1001 = vadd.f32 %v841, %v953
        %v1002 = vadd.f32 %v842, %v954
        %v1003 = vadd.f32 %v843, %v955
        %v1004 = vadd.f32 %v844, %v956
        %v1005 = vadd.f32 %v845, %v957
        %v1006 = vadd.f32 %v846, %v958
        %v1007 = vadd.f32 %v847, %v959
        %v1008 = vadd.f32 %v848, %v960
        %v1009 = vadd.f32 %v849, %v961
        %v1010 = vadd.f32 %v850, %v962
        %v1011 = vadd.f32 %v851, %v963
        %v1012 = vadd.f32 %v852, %v964
        %v1013 = vadd.f32 %v853, %v965
        %v1014 = vadd.f32 %v854, %v966
        %v1015 = vadd.f32 %v855, %v967
        %v1016 = vadd.f32 %v856, %v968
        %v1017 = vadd.f32 %v857, %v969
        %v1018 = vadd.f32 %v858, %v970
        %v1019 = vadd.f32 %v859, %v971
        %v1020 = vadd.f32 %v860, %v972
        %v1021 = vadd.f32 %v861, %v973
        %v1022 = vadd.f32 %v862, %v974
        %v1023 = vadd.f32 %v863, %v975
        %v1024 = vadd.f32 %v864, %v976
        %v1025 = vadd.f32 %v865, %v977
        %v1026 = vadd.f32 %v866, %v978
        %v1027 = vadd.f32 %v867, %v979
        %v1028 = vadd.f32 %v868, %v980
        %v1029 = vadd.f32 %v869, %v981
        %v1030 = vadd.f32 %v870, %v982
        %v1031 = vadd.f32 %v871, %v983
        %v1032 = vadd.f32 %v872, %v984
        %v1033 = vadd.f32 %v873, %v985
        %v1034 = vadd.f32 %v874, %v986
        %v1035 = vadd.f32 %v875, %v987
        %v1036 = vadd.f32 %v876, %v988
        %v1037 = vadd.f32 %v877, %v989
        %1038 = vset.pattern.permute.xlu0 2
        %1039 = vperm.xlu0 %1038, %v606
        %v1040 = vpop.permute.xlu0 %1039
        %1042 = vset.pattern.permute.xlu0 2
        %1043 = vperm.xlu0 %1042, %v607
        %v1044 = vpop.permute.xlu0 %1043
        %1046 = vset.pattern.permute.xlu0 2
        %1047 = vperm.xlu0 %1046, %v608
        %v1048 = vpop.permute.xlu0 %1047
        %1050 = vset.pattern.permute.xlu0 2
        %1051 = vperm.xlu0 %1050, %v609
        %v1052 = vpop.permute.xlu0 %1051
        %1054 = vset.pattern.permute.xlu0 2
        %1055 = vperm.xlu0 %1054, %v610
        %v1056 = vpop.permute.xlu0 %1055
        %1058 = vset.pattern.permute.xlu0 2
        %1059 = vperm.xlu0 %1058, %v611
        %v1060 = vpop.permute.xlu0 %1059
        %1062 = vset.pattern.permute.xlu0 2
        %1063 = vperm.xlu0 %1062, %v612
        %v1064 = vpop.permute.xlu0 %1063
        %1066 = vset.pattern.permute.xlu0 2
        %1067 = vperm.xlu0 %1066, %v613
        %v1068 = vpop.permute.xlu0 %1067
        %1070 = vset.pattern.permute.xlu0 2
        %1071 = vperm.xlu0 %1070, %v614
        %v1072 = vpop.permute.xlu0 %1071
        %1074 = vset.pattern.permute.xlu0 2
        %1075 = vperm.xlu0 %1074, %v615
        %v1076 = vpop.permute.xlu0 %1075
        %1078 = vset.pattern.permute.xlu0 2
        %1079 = vperm.xlu0 %1078, %v616
        %v1080 = vpop.permute.xlu0 %1079
        %1082 = vset.pattern.permute.xlu0 2
        %1083 = vperm.xlu0 %1082, %v617
        %v1084 = vpop.permute.xlu0 %1083
        %1086 = vset.pattern.permute.xlu0 2
        %1087 = vperm.xlu0 %1086, %v618
        %v1088 = vpop.permute.xlu0 %1087
        %1090 = vset.pattern.permute.xlu0 2
        %1091 = vperm.xlu0 %1090, %v619
        %v1092 = vpop.permute.xlu0 %1091
        %1094 = vset.pattern.permute.xlu0 2
        %1095 = vperm.xlu0 %1094, %v620
        %v1096 = vpop.permute.xlu0 %1095
        %1098 = vset.pattern.permute.xlu0 2
        %1099 = vperm.xlu0 %1098, %v621
        %v1100 = vpop.permute.xlu0 %1099
        %v1102 = vmul.f32 %v1040, %v361
        %v1103 = vmul.f32 %v1040, %v365
        %v1104 = vmul.f32 %v1040, %v369
        %v1105 = vmul.f32 %v1044, %v361
        %v1106 = vmul.f32 %v1044, %v365
        %v1107 = vmul.f32 %v1044, %v369
        %v1108 = vmul.f32 %v1048, %v361
        %v1109 = vmul.f32 %v1048, %v365
        %v1110 = vmul.f32 %v1048, %v369
        %v1111 = vmul.f32 %v1052, %v361
        %v1112 = vmul.f32 %v1052, %v365
        %v1113 = vmul.f32 %v1052, %v369
        %v1114 = vmul.f32 %v1056, %v361
        %v1115 = vmul.f32 %v1056, %v365
        %v1116 = vmul.f32 %v1056, %v369
        %v1117 = vmul.f32 %v1060, %v361
        %v1118 = vmul.f32 %v1060, %v365
        %v1119 = vmul.f32 %v1060, %v369
        %v1120 = vmul.f32 %v1064, %v361
        %v1121 = vmul.f32 %v1064, %v365
        %v1122 = vmul.f32 %v1064, %v369
        %v1123 = vmul.f32 %v1068, %v361
        %v1124 = vmul.f32 %v1068, %v365
        %v1125 = vmul.f32 %v1068, %v369
        %v1126 = vmul.f32 %v1072, %v361
        %v1127 = vmul.f32 %v1072, %v365
        %v1128 = vmul.f32 %v1072, %v369
        %v1129 = vmul.f32 %v1076, %v361
        %v1130 = vmul.f32 %v1076, %v365
        %v1131 = vmul.f32 %v1076, %v369
        %v1132 = vmul.f32 %v1080, %v361
        %v1133 = vmul.f32 %v1080, %v365
        %v1134 = vmul.f32 %v1080, %v369
        %v1135 = vmul.f32 %v1084, %v361
        %v1136 = vmul.f32 %v1084, %v365
        %v1137 = vmul.f32 %v1084, %v369
        %v1138 = vmul.f32 %v1088, %v361
        %v1139 = vmul.f32 %v1088, %v365
        %v1140 = vmul.f32 %v1088, %v369
        %v1141 = vmul.f32 %v1092, %v361
        %v1142 = vmul.f32 %v1092, %v365
        %v1143 = vmul.f32 %v1092, %v369
        %v1144 = vmul.f32 %v1096, %v361
        %v1145 = vmul.f32 %v1096, %v365
        %v1146 = vmul.f32 %v1096, %v369
        %v1147 = vmul.f32 %v1100, %v361
        %v1148 = vmul.f32 %v1100, %v365
        %v1149 = vmul.f32 %v1100, %v369
        %v1150 = vadd.f32 %v990, %v1102
        %v1151 = vadd.f32 %v991, %v1103
        %v1152 = vadd.f32 %v992, %v1104
        %v1153 = vadd.f32 %v993, %v1105
        %v1154 = vadd.f32 %v994, %v1106
        %v1155 = vadd.f32 %v995, %v1107
        %v1156 = vadd.f32 %v996, %v1108
        %v1157 = vadd.f32 %v997, %v1109
        %v1158 = vadd.f32 %v998, %v1110
        %v1159 = vadd.f32 %v999, %v1111
        %v1160 = vadd.f32 %v1000, %v1112
        %v1161 = vadd.f32 %v1001, %v1113
        %v1162 = vadd.f32 %v1002, %v1114
        %v1163 = vadd.f32 %v1003, %v1115
        %v1164 = vadd.f32 %v1004, %v1116
        %v1165 = vadd.f32 %v1005, %v1117
        %v1166 = vadd.f32 %v1006, %v1118
        %v1167 = vadd.f32 %v1007, %v1119
        %v1168 = vadd.f32 %v1008, %v1120
        %v1169 = vadd.f32 %v1009, %v1121
        %v1170 = vadd.f32 %v1010, %v1122
        %v1171 = vadd.f32 %v1011, %v1123
        %v1172 = vadd.f32 %v1012, %v1124
        %v1173 = vadd.f32 %v1013, %v1125
        %v1174 = vadd.f32 %v1014, %v1126
        %v1175 = vadd.f32 %v1015, %v1127
        %v1176 = vadd.f32 %v1016, %v1128
        %v1177 = vadd.f32 %v1017, %v1129
        %v1178 = vadd.f32 %v1018, %v1130
        %v1179 = vadd.f32 %v1019, %v1131
        %v1180 = vadd.f32 %v1020, %v1132
        %v1181 = vadd.f32 %v1021, %v1133
        %v1182 = vadd.f32 %v1022, %v1134
        %v1183 = vadd.f32 %v1023, %v1135
        %v1184 = vadd.f32 %v1024, %v1136
        %v1185 = vadd.f32 %v1025, %v1137
        %v1186 = vadd.f32 %v1026, %v1138
        %v1187 = vadd.f32 %v1027, %v1139
        %v1188 = vadd.f32 %v1028, %v1140
        %v1189 = vadd.f32 %v1029, %v1141
        %v1190 = vadd.f32 %v1030, %v1142
        %v1191 = vadd.f32 %v1031, %v1143
        %v1192 = vadd.f32 %v1032, %v1144
        %v1193 = vadd.f32 %v1033, %v1145
        %v1194 = vadd.f32 %v1034, %v1146
        %v1195 = vadd.f32 %v1035, %v1147
        %v1196 = vadd.f32 %v1036, %v1148
        %v1197 = vadd.f32 %v1037, %v1149
        %s1198 = smul.u32 %s22, 128
        %v1199 = vlaneseq
        %v1200 = vshrl.u32 %v1199, 7
        %v1201 = vadd.s32 %v1200, 8
        %v1202 = vadd.s32 %v1200, 16
        %v1203 = vadd.s32 %v1200, 24
        %v1204 = vadd.s32 %v1200, 32
        %v1205 = vadd.s32 %v1200, 40
        %v1206 = vadd.s32 %v1200, 48
        %v1207 = vadd.s32 %v1200, 56
        %v1208 = vadd.s32 %v1200, 64
        %v1209 = vadd.s32 %v1200, 72
        %v1210 = vadd.s32 %v1200, 80
        %v1211 = vadd.s32 %v1200, 88
        %v1212 = vadd.s32 %v1200, 96
        %v1213 = vadd.s32 %v1200, 104
        %v1214 = vadd.s32 %v1200, 112
        %v1215 = vadd.s32 %v1200, 120
        %v1216 = vstv %s1198
        %v1217 = vadd.s32 %v1216, %v1200
        %v1218 = vadd.s32 %v1216, %v1201
        %v1219 = vadd.s32 %v1216, %v1202
        %v1220 = vadd.s32 %v1216, %v1203
        %v1221 = vadd.s32 %v1216, %v1204
        %v1222 = vadd.s32 %v1216, %v1205
        %v1223 = vadd.s32 %v1216, %v1206
        %v1224 = vadd.s32 %v1216, %v1207
        %v1225 = vadd.s32 %v1216, %v1208
        %v1226 = vadd.s32 %v1216, %v1209
        %v1227 = vadd.s32 %v1216, %v1210
        %v1228 = vadd.s32 %v1216, %v1211
        %v1229 = vadd.s32 %v1216, %v1212
        %v1230 = vadd.s32 %v1216, %v1213
        %v1231 = vadd.s32 %v1216, %v1214
        %v1232 = vadd.s32 %v1216, %v1215
        %vm1233 = vcmp.lt.s32.totalorder %v1217, 300
        %vm1234 = vcmp.lt.s32.totalorder %v1218, 300
        %vm1235 = vcmp.lt.s32.totalorder %v1219, 300
        %vm1236 = vcmp.lt.s32.totalorder %v1220, 300
        %vm1237 = vcmp.lt.s32.totalorder %v1221, 300
        %vm1238 = vcmp.lt.s32.totalorder %v1222, 300
        %vm1239 = vcmp.lt.s32.totalorder %v1223, 300
        %vm1240 = vcmp.lt.s32.totalorder %v1224, 300
        %vm1241 = vcmp.lt.s32.totalorder %v1225, 300
        %vm1242 = vcmp.lt.s32.totalorder %v1226, 300
        %vm1243 = vcmp.lt.s32.totalorder %v1227, 300
        %vm1244 = vcmp.lt.s32.totalorder %v1228, 300
        %vm1245 = vcmp.lt.s32.totalorder %v1229, 300
        %vm1246 = vcmp.lt.s32.totalorder %v1230, 300
        %vm1247 = vcmp.lt.s32.totalorder %v1231, 300
        %vm1248 = vcmp.lt.s32.totalorder %v1232, 300
        %v1249 = vsel %vm1233, 0.0, 1e+30
        %v1250 = vsel %vm1234, 0.0, 1e+30
        %v1251 = vsel %vm1235, 0.0, 1e+30
        %v1252 = vsel %vm1236, 0.0, 1e+30
        %v1253 = vsel %vm1237, 0.0, 1e+30
        %v1254 = vsel %vm1238, 0.0, 1e+30
        %v1255 = vsel %vm1239, 0.0, 1e+30
        %v1256 = vsel %vm1240, 0.0, 1e+30
        %v1257 = vsel %vm1241, 0.0, 1e+30
        %v1258 = vsel %vm1242, 0.0, 1e+30
        %v1259 = vsel %vm1243, 0.0, 1e+30
        %v1260 = vsel %vm1244, 0.0, 1e+30
        %v1261 = vsel %vm1245, 0.0, 1e+30
        %v1262 = vsel %vm1246, 0.0, 1e+30
        %v1263 = vsel %vm1247, 0.0, 1e+30
        %v1264 = vsel %vm1248, 0.0, 1e+30
        %v1265 = vadd.f32 %v1150, %v1249
        %v1266 = vadd.f32 %v1151, %v1249
        %v1267 = vadd.f32 %v1152, %v1249
        %v1268 = vadd.f32 %v1153, %v1250
        %v1269 = vadd.f32 %v1154, %v1250
        %v1270 = vadd.f32 %v1155, %v1250
        %v1271 = vadd.f32 %v1156, %v1251
        %v1272 = vadd.f32 %v1157, %v1251
        %v1273 = vadd.f32 %v1158, %v1251
        %v1274 = vadd.f32 %v1159, %v1252
        %v1275 = vadd.f32 %v1160, %v1252
        %v1276 = vadd.f32 %v1161, %v1252
        %v1277 = vadd.f32 %v1162, %v1253
        %v1278 = vadd.f32 %v1163, %v1253
        %v1279 = vadd.f32 %v1164, %v1253
        %v1280 = vadd.f32 %v1165, %v1254
        %v1281 = vadd.f32 %v1166, %v1254
        %v1282 = vadd.f32 %v1167, %v1254
        %v1283 = vadd.f32 %v1168, %v1255
        %v1284 = vadd.f32 %v1169, %v1255
        %v1285 = vadd.f32 %v1170, %v1255
        %v1286 = vadd.f32 %v1171, %v1256
        %v1287 = vadd.f32 %v1172, %v1256
        %v1288 = vadd.f32 %v1173, %v1256
        %v1289 = vadd.f32 %v1174, %v1257
        %v1290 = vadd.f32 %v1175, %v1257
        %v1291 = vadd.f32 %v1176, %v1257
        %v1292 = vadd.f32 %v1177, %v1258
        %v1293 = vadd.f32 %v1178, %v1258
        %v1294 = vadd.f32 %v1179, %v1258
        %v1295 = vadd.f32 %v1180, %v1259
        %v1296 = vadd.f32 %v1181, %v1259
        %v1297 = vadd.f32 %v1182, %v1259
        %v1298 = vadd.f32 %v1183, %v1260
        %v1299 = vadd.f32 %v1184, %v1260
        %v1300 = vadd.f32 %v1185, %v1260
        %v1301 = vadd.f32 %v1186, %v1261
        %v1302 = vadd.f32 %v1187, %v1261
        %v1303 = vadd.f32 %v1188, %v1261
        %v1304 = vadd.f32 %v1189, %v1262
        %v1305 = vadd.f32 %v1190, %v1262
        %v1306 = vadd.f32 %v1191, %v1262
        %v1307 = vadd.f32 %v1192, %v1263
        %v1308 = vadd.f32 %v1193, %v1263
        %v1309 = vadd.f32 %v1194, %v1263
        %v1310 = vadd.f32 %v1195, %v1264
        %v1311 = vadd.f32 %v1196, %v1264
        %v1312 = vadd.f32 %v1197, %v1264
        %p1313 = scmp.eq.s32.totalorder %s22, 0
        // Predicated region
        $region33: #{tpu_custom_call.1} parent=31 // pred_check
          %p1314 = pneg %p1313
        $region34: #{tpu_custom_call.1} parent=31 // pred_check_branch
          %1316 = sbr.rel (%p1314) target = $region36
        $region35: #{tpu_custom_call.1} parent=31 // pred_region
          %1317 = vst [vmem:[%s213] sm:$0x1] 0.0
          %1318 = vst [vmem:[#allocation2] sm:$0xff] 1e+30
          %1319 = vst [vmem:[#allocation2 + $0x8] sm:$0xff] 1e+30
          %1320 = vst [vmem:[#allocation2 + $0x10] sm:$0xff] 1e+30
        $region36: #{tpu_custom_call.1} parent=31 // pred_fallthru
          _
        %v1321 = vlaneseq
        %v1322 = vshrl.u32 %v1321, 7
        %v1323 = vsub.s32 0, %v1322
        %v1324 = vrot.slane %v233, %v1323
        %v1325 = vmul.f32 %v236, %v1324
        %v1326 = vmul.f32 %v237, %v1324
        %v1327 = vmul.f32 %v238, %v1324
        %v1328 = vmul.f32 %v239, %v1324
        %v1329 = vmul.f32 %v240, %v1324
        %v1330 = vmul.f32 %v241, %v1324
        %v1331 = vmul.f32 %v242, %v1324
        %v1332 = vmul.f32 %v243, %v1324
        %v1333 = vmul.f32 %v244, %v1324
        %v1334 = vmul.f32 %v245, %v1324
        %v1335 = vmul.f32 %v246, %v1324
        %v1336 = vmul.f32 %v247, %v1324
        %v1337 = vmul.f32 %v248, %v1324
        %v1338 = vmul.f32 %v249, %v1324
        %v1339 = vmul.f32 %v250, %v1324
        %v1340 = vmul.f32 %v251, %v1324
        %1357 = vrot.lane.b32.xlu0 %v1325, 127
        %v1358 = vpop.permute.xlu0 %1357
        %1359 = vrot.lane.b32.xlu0 %v1326, 127
        %v1360 = vpop.permute.xlu0 %1359
        %1361 = vrot.lane.b32.xlu0 %v1327, 127
        %v1362 = vpop.permute.xlu0 %1361
        %1363 = vrot.lane.b32.xlu0 %v1328, 127
        %v1364 = vpop.permute.xlu0 %1363
        %1365 = vrot.lane.b32.xlu0 %v1329, 127
        %v1366 = vpop.permute.xlu0 %1365
        %1367 = vrot.lane.b32.xlu0 %v1330, 127
        %v1368 = vpop.permute.xlu0 %1367
        %1369 = vrot.lane.b32.xlu0 %v1331, 127
        %v1370 = vpop.permute.xlu0 %1369
        %1371 = vrot.lane.b32.xlu0 %v1332, 127
        %v1372 = vpop.permute.xlu0 %1371
        %1373 = vrot.lane.b32.xlu0 %v1333, 127
        %v1374 = vpop.permute.xlu0 %1373
        %1375 = vrot.lane.b32.xlu0 %v1334, 127
        %v1376 = vpop.permute.xlu0 %1375
        %1377 = vrot.lane.b32.xlu0 %v1335, 127
        %v1378 = vpop.permute.xlu0 %1377
        %1379 = vrot.lane.b32.xlu0 %v1336, 127
        %v1380 = vpop.permute.xlu0 %1379
        %1381 = vrot.lane.b32.xlu0 %v1337, 127
        %v1382 = vpop.permute.xlu0 %1381
        %1383 = vrot.lane.b32.xlu0 %v1338, 127
        %v1384 = vpop.permute.xlu0 %1383
        %1385 = vrot.lane.b32.xlu0 %v1339, 127
        %v1386 = vpop.permute.xlu0 %1385
        %1387 = vrot.lane.b32.xlu0 %v1340, 127
        %v1388 = vpop.permute.xlu0 %1387
        %v1405 = vadd.f32 %v1325, %v1358
        %v1406 = vadd.f32 %v1326, %v1360
        %v1407 = vadd.f32 %v1327, %v1362
        %v1408 = vadd.f32 %v1328, %v1364
        %v1409 = vadd.f32 %v1329, %v1366
        %v1410 = vadd.f32 %v1330, %v1368
        %v1411 = vadd.f32 %v1331, %v1370
        %v1412 = vadd.f32 %v1332, %v1372
        %v1413 = vadd.f32 %v1333, %v1374
        %v1414 = vadd.f32 %v1334, %v1376
        %v1415 = vadd.f32 %v1335, %v1378
        %v1416 = vadd.f32 %v1336, %v1380
        %v1417 = vadd.f32 %v1337, %v1382
        %v1418 = vadd.f32 %v1338, %v1384
        %v1419 = vadd.f32 %v1339, %v1386
        %v1420 = vadd.f32 %v1340, %v1388
        %1421 = vrot.lane.b32.xlu0 %v1325, 126
        %v1422 = vpop.permute.xlu0 %1421
        %1423 = vrot.lane.b32.xlu0 %v1326, 126
        %v1424 = vpop.permute.xlu0 %1423
        %1425 = vrot.lane.b32.xlu0 %v1327, 126
        %v1426 = vpop.permute.xlu0 %1425
        %1427 = vrot.lane.b32.xlu0 %v1328, 126
        %v1428 = vpop.permute.xlu0 %1427
        %1429 = vrot.lane.b32.xlu0 %v1329, 126
        %v1430 = vpop.permute.xlu0 %1429
        %1431 = vrot.lane.b32.xlu0 %v1330, 126
        %v1432 = vpop.permute.xlu0 %1431
        %1433 = vrot.lane.b32.xlu0 %v1331, 126
        %v1434 = vpop.permute.xlu0 %1433
        %1435 = vrot.lane.b32.xlu0 %v1332, 126
        %v1436 = vpop.permute.xlu0 %1435
        %1437 = vrot.lane.b32.xlu0 %v1333, 126
        %v1438 = vpop.permute.xlu0 %1437
        %1439 = vrot.lane.b32.xlu0 %v1334, 126
        %v1440 = vpop.permute.xlu0 %1439
        %1441 = vrot.lane.b32.xlu0 %v1335, 126
        %v1442 = vpop.permute.xlu0 %1441
        %1443 = vrot.lane.b32.xlu0 %v1336, 126
        %v1444 = vpop.permute.xlu0 %1443
        %1445 = vrot.lane.b32.xlu0 %v1337, 126
        %v1446 = vpop.permute.xlu0 %1445
        %1447 = vrot.lane.b32.xlu0 %v1338, 126
        %v1448 = vpop.permute.xlu0 %1447
        %1449 = vrot.lane.b32.xlu0 %v1339, 126
        %v1450 = vpop.permute.xlu0 %1449
        %1451 = vrot.lane.b32.xlu0 %v1340, 126
        %v1452 = vpop.permute.xlu0 %1451
        %v1469 = vadd.f32 %v1405, %v1422
        %v1470 = vadd.f32 %v1406, %v1424
        %v1471 = vadd.f32 %v1407, %v1426
        %v1472 = vadd.f32 %v1408, %v1428
        %v1473 = vadd.f32 %v1409, %v1430
        %v1474 = vadd.f32 %v1410, %v1432
        %v1475 = vadd.f32 %v1411, %v1434
        %v1476 = vadd.f32 %v1412, %v1436
        %v1477 = vadd.f32 %v1413, %v1438
        %v1478 = vadd.f32 %v1414, %v1440
        %v1479 = vadd.f32 %v1415, %v1442
        %v1480 = vadd.f32 %v1416, %v1444
        %v1481 = vadd.f32 %v1417, %v1446
        %v1482 = vadd.f32 %v1418, %v1448
        %v1483 = vadd.f32 %v1419, %v1450
        %v1484 = vadd.f32 %v1420, %v1452
        %v1485 = vmul.f32 %v1469, 2.0
        %v1486 = vmul.f32 %v1470, 2.0
        %v1487 = vmul.f32 %v1471, 2.0
        %v1488 = vmul.f32 %v1472, 2.0
        %v1489 = vmul.f32 %v1473, 2.0
        %v1490 = vmul.f32 %v1474, 2.0
        %v1491 = vmul.f32 %v1475, 2.0
        %v1492 = vmul.f32 %v1476, 2.0
        %v1493 = vmul.f32 %v1477, 2.0
        %v1494 = vmul.f32 %v1478, 2.0
        %v1495 = vmul.f32 %v1479, 2.0
        %v1496 = vmul.f32 %v1480, 2.0
        %v1497 = vmul.f32 %v1481, 2.0
        %v1498 = vmul.f32 %v1482, 2.0
        %v1499 = vmul.f32 %v1483, 2.0
        %v1500 = vmul.f32 %v1484, 2.0
        %v1501 = vlaneseq
        %v1502 = vshrl.u32 %v1501, 7
        %v1503 = vsub.s32 0, %v1502
        %v1504 = vrot.slane %v443, %v1503
        %v1505 = vlaneseq
        %v1506 = vshrl.u32 %v1505, 7
        %v1507 = vsub.s32 0, %v1506
        %v1508 = vrot.slane %v444, %v1507
        %v1509 = vlaneseq
        %v1510 = vshrl.u32 %v1509, 7
        %v1511 = vsub.s32 0, %v1510
        %v1512 = vrot.slane %v445, %v1511
        %v1513 = vadd.f32 %v1265, %v1504
        %v1514 = vadd.f32 %v1266, %v1508
        %v1515 = vadd.f32 %v1267, %v1512
        %v1516 = vadd.f32 %v1268, %v1504
        %v1517 = vadd.f32 %v1269, %v1508
        %v1518 = vadd.f32 %v1270, %v1512
        %v1519 = vadd.f32 %v1271, %v1504
        %v1520 = vadd.f32 %v1272, %v1508
        %v1521 = vadd.f32 %v1273, %v1512
        %v1522 = vadd.f32 %v1274, %v1504
        %v1523 = vadd.f32 %v1275, %v1508
        %v1524 = vadd.f32 %v1276, %v1512
        %v1525 = vadd.f32 %v1277, %v1504
        %v1526 = vadd.f32 %v1278, %v1508
        %v1527 = vadd.f32 %v1279, %v1512
        %v1528 = vadd.f32 %v1280, %v1504
        %v1529 = vadd.f32 %v1281, %v1508
        %v1530 = vadd.f32 %v1282, %v1512
        %v1531 = vadd.f32 %v1283, %v1504
        %v1532 = vadd.f32 %v1284, %v1508
        %v1533 = vadd.f32 %v1285, %v1512
        %v1534 = vadd.f32 %v1286, %v1504
        %v1535 = vadd.f32 %v1287, %v1508
        %v1536 = vadd.f32 %v1288, %v1512
        %v1537 = vadd.f32 %v1289, %v1504
        %v1538 = vadd.f32 %v1290, %v1508
        %v1539 = vadd.f32 %v1291, %v1512
        %v1540 = vadd.f32 %v1292, %v1504
        %v1541 = vadd.f32 %v1293, %v1508
        %v1542 = vadd.f32 %v1294, %v1512
        %v1543 = vadd.f32 %v1295, %v1504
        %v1544 = vadd.f32 %v1296, %v1508
        %v1545 = vadd.f32 %v1297, %v1512
        %v1546 = vadd.f32 %v1298, %v1504
        %v1547 = vadd.f32 %v1299, %v1508
        %v1548 = vadd.f32 %v1300, %v1512
        %v1549 = vadd.f32 %v1301, %v1504
        %v1550 = vadd.f32 %v1302, %v1508
        %v1551 = vadd.f32 %v1303, %v1512
        %v1552 = vadd.f32 %v1304, %v1504
        %v1553 = vadd.f32 %v1305, %v1508
        %v1554 = vadd.f32 %v1306, %v1512
        %v1555 = vadd.f32 %v1307, %v1504
        %v1556 = vadd.f32 %v1308, %v1508
        %v1557 = vadd.f32 %v1309, %v1512
        %v1558 = vadd.f32 %v1310, %v1504
        %v1559 = vadd.f32 %v1311, %v1508
        %v1560 = vadd.f32 %v1312, %v1512
        %1562 = vset.pattern.permute.xlu0 0
        %1563 = vperm.xlu0 %1562, %v1485
        %v1564 = vpop.permute.xlu0 %1563
        %1567 = vset.pattern.permute.xlu0 0
        %1568 = vperm.xlu0 %1567, %v1486
        %v1569 = vpop.permute.xlu0 %1568
        %1572 = vset.pattern.permute.xlu0 0
        %1573 = vperm.xlu0 %1572, %v1487
        %v1574 = vpop.permute.xlu0 %1573
        %1577 = vset.pattern.permute.xlu0 0
        %1578 = vperm.xlu0 %1577, %v1488
        %v1579 = vpop.permute.xlu0 %1578
        %1582 = vset.pattern.permute.xlu0 0
        %1583 = vperm.xlu0 %1582, %v1489
        %v1584 = vpop.permute.xlu0 %1583
        %1587 = vset.pattern.permute.xlu0 0
        %1588 = vperm.xlu0 %1587, %v1490
        %v1589 = vpop.permute.xlu0 %1588
        %1592 = vset.pattern.permute.xlu0 0
        %1593 = vperm.xlu0 %1592, %v1491
        %v1594 = vpop.permute.xlu0 %1593
        %1597 = vset.pattern.permute.xlu0 0
        %1598 = vperm.xlu0 %1597, %v1492
        %v1599 = vpop.permute.xlu0 %1598
        %1602 = vset.pattern.permute.xlu0 0
        %1603 = vperm.xlu0 %1602, %v1493
        %v1604 = vpop.permute.xlu0 %1603
        %1607 = vset.pattern.permute.xlu0 0
        %1608 = vperm.xlu0 %1607, %v1494
        %v1609 = vpop.permute.xlu0 %1608
        %1612 = vset.pattern.permute.xlu0 0
        %1613 = vperm.xlu0 %1612, %v1495
        %v1614 = vpop.permute.xlu0 %1613
        %1617 = vset.pattern.permute.xlu0 0
        %1618 = vperm.xlu0 %1617, %v1496
        %v1619 = vpop.permute.xlu0 %1618
        %1622 = vset.pattern.permute.xlu0 0
        %1623 = vperm.xlu0 %1622, %v1497
        %v1624 = vpop.permute.xlu0 %1623
        %1627 = vset.pattern.permute.xlu0 0
        %1628 = vperm.xlu0 %1627, %v1498
        %v1629 = vpop.permute.xlu0 %1628
        %1632 = vset.pattern.permute.xlu0 0
        %1633 = vperm.xlu0 %1632, %v1499
        %v1634 = vpop.permute.xlu0 %1633
        %1637 = vset.pattern.permute.xlu0 0
        %1638 = vperm.xlu0 %1637, %v1500
        %v1639 = vpop.permute.xlu0 %1638
        %v1641 = vlaneseq
        %v1642 = vshrl.u32 %v1641, 7
        %v1643 = vsub.s32 0, %v1642
        %v1644 = vrot.slane %v397, %v1643
        %v1645 = vlaneseq
        %v1646 = vshrl.u32 %v1645, 7
        %v1647 = vsub.s32 0, %v1646
        %v1648 = vrot.slane %v398, %v1647
        %v1649 = vlaneseq
        %v1650 = vshrl.u32 %v1649, 7
        %v1651 = vsub.s32 0, %v1650
        %v1652 = vrot.slane %v399, %v1651
        %v1653 = vmul.f32 %v1564, %v1644
        %v1654 = vmul.f32 %v1564, %v1648
        %v1655 = vmul.f32 %v1564, %v1652
        %v1656 = vmul.f32 %v1569, %v1644
        %v1657 = vmul.f32 %v1569, %v1648
        %v1658 = vmul.f32 %v1569, %v1652
        %v1659 = vmul.f32 %v1574, %v1644
        %v1660 = vmul.f32 %v1574, %v1648
        %v1661 = vmul.f32 %v1574, %v1652
        %v1662 = vmul.f32 %v1579, %v1644
        %v1663 = vmul.f32 %v1579, %v1648
        %v1664 = vmul.f32 %v1579, %v1652
        %v1665 = vmul.f32 %v1584, %v1644
        %v1666 = vmul.f32 %v1584, %v1648
        %v1667 = vmul.f32 %v1584, %v1652
        %v1668 = vmul.f32 %v1589, %v1644
        %v1669 = vmul.f32 %v1589, %v1648
        %v1670 = vmul.f32 %v1589, %v1652
        %v1671 = vmul.f32 %v1594, %v1644
        %v1672 = vmul.f32 %v1594, %v1648
        %v1673 = vmul.f32 %v1594, %v1652
        %v1674 = vmul.f32 %v1599, %v1644
        %v1675 = vmul.f32 %v1599, %v1648
        %v1676 = vmul.f32 %v1599, %v1652
        %v1677 = vmul.f32 %v1604, %v1644
        %v1678 = vmul.f32 %v1604, %v1648
        %v1679 = vmul.f32 %v1604, %v1652
        %v1680 = vmul.f32 %v1609, %v1644
        %v1681 = vmul.f32 %v1609, %v1648
        %v1682 = vmul.f32 %v1609, %v1652
        %v1683 = vmul.f32 %v1614, %v1644
        %v1684 = vmul.f32 %v1614, %v1648
        %v1685 = vmul.f32 %v1614, %v1652
        %v1686 = vmul.f32 %v1619, %v1644
        %v1687 = vmul.f32 %v1619, %v1648
        %v1688 = vmul.f32 %v1619, %v1652
        %v1689 = vmul.f32 %v1624, %v1644
        %v1690 = vmul.f32 %v1624, %v1648
        %v1691 = vmul.f32 %v1624, %v1652
        %v1692 = vmul.f32 %v1629, %v1644
        %v1693 = vmul.f32 %v1629, %v1648
        %v1694 = vmul.f32 %v1629, %v1652
        %v1695 = vmul.f32 %v1634, %v1644
        %v1696 = vmul.f32 %v1634, %v1648
        %v1697 = vmul.f32 %v1634, %v1652
        %v1698 = vmul.f32 %v1639, %v1644
        %v1699 = vmul.f32 %v1639, %v1648
        %v1700 = vmul.f32 %v1639, %v1652
        %v1701 = vadd.f32 %v1513, %v1653
        %v1702 = vadd.f32 %v1514, %v1654
        %v1703 = vadd.f32 %v1515, %v1655
        %v1704 = vadd.f32 %v1516, %v1656
        %v1705 = vadd.f32 %v1517, %v1657
        %v1706 = vadd.f32 %v1518, %v1658
        %v1707 = vadd.f32 %v1519, %v1659
        %v1708 = vadd.f32 %v1520, %v1660
        %v1709 = vadd.f32 %v1521, %v1661
        %v1710 = vadd.f32 %v1522, %v1662
        %v1711 = vadd.f32 %v1523, %v1663
        %v1712 = vadd.f32 %v1524, %v1664
        %v1713 = vadd.f32 %v1525, %v1665
        %v1714 = vadd.f32 %v1526, %v1666
        %v1715 = vadd.f32 %v1527, %v1667
        %v1716 = vadd.f32 %v1528, %v1668
        %v1717 = vadd.f32 %v1529, %v1669
        %v1718 = vadd.f32 %v1530, %v1670
        %v1719 = vadd.f32 %v1531, %v1671
        %v1720 = vadd.f32 %v1532, %v1672
        %v1721 = vadd.f32 %v1533, %v1673
        %v1722 = vadd.f32 %v1534, %v1674
        %v1723 = vadd.f32 %v1535, %v1675
        %v1724 = vadd.f32 %v1536, %v1676
        %v1725 = vadd.f32 %v1537, %v1677
        %v1726 = vadd.f32 %v1538, %v1678
        %v1727 = vadd.f32 %v1539, %v1679
        %v1728 = vadd.f32 %v1540, %v1680
        %v1729 = vadd.f32 %v1541, %v1681
        %v1730 = vadd.f32 %v1542, %v1682
        %v1731 = vadd.f32 %v1543, %v1683
        %v1732 = vadd.f32 %v1544, %v1684
        %v1733 = vadd.f32 %v1545, %v1685
        %v1734 = vadd.f32 %v1546, %v1686
        %v1735 = vadd.f32 %v1547, %v1687
        %v1736 = vadd.f32 %v1548, %v1688
        %v1737 = vadd.f32 %v1549, %v1689
        %v1738 = vadd.f32 %v1550, %v1690
        %v1739 = vadd.f32 %v1551, %v1691
        %v1740 = vadd.f32 %v1552, %v1692
        %v1741 = vadd.f32 %v1553, %v1693
        %v1742 = vadd.f32 %v1554, %v1694
        %v1743 = vadd.f32 %v1555, %v1695
        %v1744 = vadd.f32 %v1556, %v1696
        %v1745 = vadd.f32 %v1557, %v1697
        %v1746 = vadd.f32 %v1558, %v1698
        %v1747 = vadd.f32 %v1559, %v1699
        %v1748 = vadd.f32 %v1560, %v1700
        %v1749 = vmax.f32 %v1701, 0.0
        %v1750 = vmax.f32 %v1702, 0.0
        %v1751 = vmax.f32 %v1703, 0.0
        %v1752 = vmax.f32 %v1704, 0.0
        %v1753 = vmax.f32 %v1705, 0.0
        %v1754 = vmax.f32 %v1706, 0.0
        %v1755 = vmax.f32 %v1707, 0.0
        %v1756 = vmax.f32 %v1708, 0.0
        %v1757 = vmax.f32 %v1709, 0.0
        %v1758 = vmax.f32 %v1710, 0.0
        %v1759 = vmax.f32 %v1711, 0.0
        %v1760 = vmax.f32 %v1712, 0.0
        %v1761 = vmax.f32 %v1713, 0.0
        %v1762 = vmax.f32 %v1714, 0.0
        %v1763 = vmax.f32 %v1715, 0.0
        %v1764 = vmax.f32 %v1716, 0.0
        %v1765 = vmax.f32 %v1717, 0.0
        %v1766 = vmax.f32 %v1718, 0.0
        %v1767 = vmax.f32 %v1719, 0.0
        %v1768 = vmax.f32 %v1720, 0.0
        %v1769 = vmax.f32 %v1721, 0.0
        %v1770 = vmax.f32 %v1722, 0.0
        %v1771 = vmax.f32 %v1723, 0.0
        %v1772 = vmax.f32 %v1724, 0.0
        %v1773 = vmax.f32 %v1725, 0.0
        %v1774 = vmax.f32 %v1726, 0.0
        %v1775 = vmax.f32 %v1727, 0.0
        %v1776 = vmax.f32 %v1728, 0.0
        %v1777 = vmax.f32 %v1729, 0.0
        %v1778 = vmax.f32 %v1730, 0.0
        %v1779 = vmax.f32 %v1731, 0.0
        %v1780 = vmax.f32 %v1732, 0.0
        %v1781 = vmax.f32 %v1733, 0.0
        %v1782 = vmax.f32 %v1734, 0.0
        %v1783 = vmax.f32 %v1735, 0.0
        %v1784 = vmax.f32 %v1736, 0.0
        %v1785 = vmax.f32 %v1737, 0.0
        %v1786 = vmax.f32 %v1738, 0.0
        %v1787 = vmax.f32 %v1739, 0.0
        %v1788 = vmax.f32 %v1740, 0.0
        %v1789 = vmax.f32 %v1741, 0.0
        %v1790 = vmax.f32 %v1742, 0.0
        %v1791 = vmax.f32 %v1743, 0.0
        %v1792 = vmax.f32 %v1744, 0.0
        %v1793 = vmax.f32 %v1745, 0.0
        %v1794 = vmax.f32 %v1746, 0.0
        %v1795 = vmax.f32 %v1747, 0.0
        %v1796 = vmax.f32 %v1748, 0.0
        %v1797 = vmin.f32 %v1749, %v1750
        %v1798 = vmin.f32 %v1797, %v1751
        %1799 = vmin.xlane.f32.xlu0 %v1798
        %v1800 = vpop.xlane.xlu0 %1799
        %v1801 = vmin.f32 %v1752, %v1753
        %v1802 = vmin.f32 %v1801, %v1754
        %1803 = vmin.xlane.f32.xlu0 %v1802
        %v1804 = vpop.xlane.xlu0 %1803
        %v1805 = vmin.f32 %v1755, %v1756
        %v1806 = vmin.f32 %v1805, %v1757
        %1807 = vmin.xlane.f32.xlu0 %v1806
        %v1808 = vpop.xlane.xlu0 %1807
        %v1809 = vmin.f32 %v1758, %v1759
        %v1810 = vmin.f32 %v1809, %v1760
        %1811 = vmin.xlane.f32.xlu0 %v1810
        %v1812 = vpop.xlane.xlu0 %1811
        %v1813 = vmin.f32 %v1761, %v1762
        %v1814 = vmin.f32 %v1813, %v1763
        %1815 = vmin.xlane.f32.xlu0 %v1814
        %v1816 = vpop.xlane.xlu0 %1815
        %v1817 = vmin.f32 %v1764, %v1765
        %v1818 = vmin.f32 %v1817, %v1766
        %1819 = vmin.xlane.f32.xlu0 %v1818
        %v1820 = vpop.xlane.xlu0 %1819
        %v1821 = vmin.f32 %v1767, %v1768
        %v1822 = vmin.f32 %v1821, %v1769
        %1823 = vmin.xlane.f32.xlu0 %v1822
        %v1824 = vpop.xlane.xlu0 %1823
        %v1825 = vmin.f32 %v1770, %v1771
        %v1826 = vmin.f32 %v1825, %v1772
        %1827 = vmin.xlane.f32.xlu0 %v1826
        %v1828 = vpop.xlane.xlu0 %1827
        %v1829 = vmin.f32 %v1773, %v1774
        %v1830 = vmin.f32 %v1829, %v1775
        %1831 = vmin.xlane.f32.xlu0 %v1830
        %v1832 = vpop.xlane.xlu0 %1831
        %v1833 = vmin.f32 %v1776, %v1777
        %v1834 = vmin.f32 %v1833, %v1778
        %1835 = vmin.xlane.f32.xlu0 %v1834
        %v1836 = vpop.xlane.xlu0 %1835
        %v1837 = vmin.f32 %v1779, %v1780
        %v1838 = vmin.f32 %v1837, %v1781
        %1839 = vmin.xlane.f32.xlu0 %v1838
        %v1840 = vpop.xlane.xlu0 %1839
        %v1841 = vmin.f32 %v1782, %v1783
        %v1842 = vmin.f32 %v1841, %v1784
        %1843 = vmin.xlane.f32.xlu0 %v1842
        %v1844 = vpop.xlane.xlu0 %1843
        %v1845 = vmin.f32 %v1785, %v1786
        %v1846 = vmin.f32 %v1845, %v1787
        %1847 = vmin.xlane.f32.xlu0 %v1846
        %v1848 = vpop.xlane.xlu0 %1847
        %v1849 = vmin.f32 %v1788, %v1789
        %v1850 = vmin.f32 %v1849, %v1790
        %1851 = vmin.xlane.f32.xlu0 %v1850
        %v1852 = vpop.xlane.xlu0 %1851
        %v1853 = vmin.f32 %v1791, %v1792
        %v1854 = vmin.f32 %v1853, %v1793
        %1855 = vmin.xlane.f32.xlu0 %v1854
        %v1856 = vpop.xlane.xlu0 %1855
        %v1857 = vmin.f32 %v1794, %v1795
        %v1858 = vmin.f32 %v1857, %v1796
        %1859 = vmin.xlane.f32.xlu0 %v1858
        %v1860 = vpop.xlane.xlu0 %1859
        %v1861 = vsel %vm1233, %v1800, 0.0
        %v1862 = vsel %vm1234, %v1804, 0.0
        %v1863 = vsel %vm1235, %v1808, 0.0
        %v1864 = vsel %vm1236, %v1812, 0.0
        %v1865 = vsel %vm1237, %v1816, 0.0
        %v1866 = vsel %vm1238, %v1820, 0.0
        %v1867 = vsel %vm1239, %v1824, 0.0
        %v1868 = vsel %vm1240, %v1828, 0.0
        %v1869 = vsel %vm1241, %v1832, 0.0
        %v1870 = vsel %vm1242, %v1836, 0.0
        %v1871 = vsel %vm1243, %v1840, 0.0
        %v1872 = vsel %vm1244, %v1844, 0.0
        %v1873 = vsel %vm1245, %v1848, 0.0
        %v1874 = vsel %vm1246, %v1852, 0.0
        %v1875 = vsel %vm1247, %v1856, 0.0
        %v1876 = vsel %vm1248, %v1860, 0.0
        %v1877 = vadd.f32 %v1861, %v1862
        %v1878 = vadd.f32 %v1877, %v1863
        %v1879 = vadd.f32 %v1878, %v1864
        %v1880 = vadd.f32 %v1879, %v1865
        %v1881 = vadd.f32 %v1880, %v1866
        %v1882 = vadd.f32 %v1881, %v1867
        %v1883 = vadd.f32 %v1882, %v1868
        %v1884 = vadd.f32 %v1883, %v1869
        %v1885 = vadd.f32 %v1884, %v1870
        %v1886 = vadd.f32 %v1885, %v1871
        %v1887 = vadd.f32 %v1886, %v1872
        %v1888 = vadd.f32 %v1887, %v1873
        %v1889 = vadd.f32 %v1888, %v1874
        %v1890 = vadd.f32 %v1889, %v1875
        %v1891 = vadd.f32 %v1890, %v1876
        %v1892 = vrot.slane %v1891, 4
        %v1893 = vadd.f32 %v1891, %v1892
        %v1894 = vrot.slane %v1893, 2
        %v1895 = vadd.f32 %v1893, %v1894
        %v1896 = vrot.slane %v1895, 1
        %v1897 = vadd.f32 %v1895, %v1896
        %v1898 = vadd.f32 %v1897, 0.0
        %v1899 = vmin.f32 %v1749, %v1755
        %v1900 = vmin.f32 %v1752, %v1758
        %v1901 = vmin.f32 %v1899, %v1761
        %v1902 = vmin.f32 %v1900, %v1764
        %v1903 = vmin.f32 %v1901, %v1767
        %v1904 = vmin.f32 %v1902, %v1770
        %v1905 = vmin.f32 %v1903, %v1773
        %v1906 = vmin.f32 %v1904, %v1776
        %v1907 = vmin.f32 %v1905, %v1779
        %v1908 = vmin.f32 %v1906, %v1782
        %v1909 = vmin.f32 %v1907, %v1785
        %v1910 = vmin.f32 %v1908, %v1788
        %v1911 = vmin.f32 %v1909, %v1791
        %v1912 = vmin.f32 %v1910, %v1794
        %v1913 = vmin.f32 %v1911, %v1912
        %v1914 = vrot.slane %v1913, 4
        %v1915 = vmin.f32 %v1913, %v1914
        %v1916 = vrot.slane %v1915, 2
        %v1917 = vmin.f32 %v1915, %v1916
        %v1918 = vrot.slane %v1917, 1
        %v1919 = vmin.f32 %v1917, %v1918
        %v1920 = vmin.f32 %v1750, %v1756
        %v1921 = vmin.f32 %v1753, %v1759
        %v1922 = vmin.f32 %v1920, %v1762
        %v1923 = vmin.f32 %v1921, %v1765
        %v1924 = vmin.f32 %v1922, %v1768
        %v1925 = vmin.f32 %v1923, %v1771
        %v1926 = vmin.f32 %v1924, %v1774
        %v1927 = vmin.f32 %v1925, %v1777
        %v1928 = vmin.f32 %v1926, %v1780
        %v1929 = vmin.f32 %v1927, %v1783
        %v1930 = vmin.f32 %v1928, %v1786
        %v1931 = vmin.f32 %v1929, %v1789
        %v1932 = vmin.f32 %v1930, %v1792
        %v1933 = vmin.f32 %v1931, %v1795
        %v1934 = vmin.f32 %v1932, %v1933
        %v1935 = vrot.slane %v1934, 4
        %v1936 = vmin.f32 %v1934, %v1935
        %v1937 = vrot.slane %v1936, 2
        %v1938 = vmin.f32 %v1936, %v1937
        %v1939 = vrot.slane %v1938, 1
        %v1940 = vmin.f32 %v1938, %v1939
        %v1941 = vmin.f32 %v1751, %v1757
        %v1942 = vmin.f32 %v1754, %v1760
        %v1943 = vmin.f32 %v1941, %v1763
        %v1944 = vmin.f32 %v1942, %v1766
        %v1945 = vmin.f32 %v1943, %v1769
        %v1946 = vmin.f32 %v1944, %v1772
        %v1947 = vmin.f32 %v1945, %v1775
        %v1948 = vmin.f32 %v1946, %v1778
        %v1949 = vmin.f32 %v1947, %v1781
        %v1950 = vmin.f32 %v1948, %v1784
        %v1951 = vmin.f32 %v1949, %v1787
        %v1952 = vmin.f32 %v1950, %v1790
        %v1953 = vmin.f32 %v1951, %v1793
        %v1954 = vmin.f32 %v1952, %v1796
        %v1955 = vmin.f32 %v1953, %v1954
        %v1956 = vrot.slane %v1955, 4
        %v1957 = vmin.f32 %v1955, %v1956
        %v1958 = vrot.slane %v1957, 2
        %v1959 = vmin.f32 %v1957, %v1958
        %v1960 = vrot.slane %v1959, 1
        %v1961 = vmin.f32 %v1959, %v1960
        %v1962 = vld [vmem:[#allocation2] ss:$8 sm:$0x7]
        %v1966 = vcombine.low %v1919, %v1940
        %v1968 = vunpack.c.l.s4 1966171168
        %v1969 = vunpack.c.0.s8 %v1968
        %v1970 = vlaneseq
        %v1971 = vshrl.u32 %v1970, 7
        %v1972 = vsub.s32 %v1969, %v1971
        %v1973 = vrot.slane %v1966, %v1972
        %v1975 = vunpack.c.l.s4 1966171168
        %v1976 = vunpack.c.0.s8 %v1975
        %v1977 = vlaneseq
        %v1978 = vshrl.u32 %v1977, 7
        %v1979 = vsub.s32 %v1976, %v1978
        %v1980 = vrot.slane %v1961, %v1979
        %v1981 = vcombine.low %v1973, %v1980
        %v1983 = vunpack.c.l.s4 1966171168
        %v1984 = vunpack.c.0.s8 %v1983
        %v1985 = vlaneseq
        %v1986 = vshrl.u32 %v1985, 7
        %v1987 = vsub.s32 %v1984, %v1986
        %v1988 = vrot.slane %v1981, %v1987
        %v1990 = vmin.f32 %v1962, %v1988
        %v1991 = vlaneseq
        %vm1992 = vcmp.ge.s32.totalorder %v1991, 0
        %vm1993 = vcmp.lt.s32.totalorder %v1991, 384
        %vm1994 = vmand %vm1992, %vm1993
        %1995 = vst.msk [vmem:[#allocation2] ss:$8 sm:$0x7] %vm1994, %v1990
        %1996 = vst.msk [vmem:[#allocation2] ss:$8 sm:$0x0] %vm1994, %v1990
        %v1997 = vlaneseq
        %v1998 = vshrl.u32 %v1997, 7
        %v1999 = vsub.s32 1, %v1998
        %v2000 = vrot.slane %v233, %v1999
        %v2001 = vmul.f32 %v236, %v2000
        %v2002 = vmul.f32 %v237, %v2000
        %v2003 = vmul.f32 %v238, %v2000
        %v2004 = vmul.f32 %v239, %v2000
        %v2005 = vmul.f32 %v240, %v2000
        %v2006 = vmul.f32 %v241, %v2000
        %v2007 = vmul.f32 %v242, %v2000
        %v2008 = vmul.f32 %v243, %v2000
        %v2009 = vmul.f32 %v244, %v2000
        %v2010 = vmul.f32 %v245, %v2000
        %v2011 = vmul.f32 %v246, %v2000
        %v2012 = vmul.f32 %v247, %v2000
        %v2013 = vmul.f32 %v248, %v2000
        %v2014 = vmul.f32 %v249, %v2000
        %v2015 = vmul.f32 %v250, %v2000
        %v2016 = vmul.f32 %v251, %v2000
        %2033 = vrot.lane.b32.xlu0 %v2001, 127
        %v2034 = vpop.permute.xlu0 %2033
        %2035 = vrot.lane.b32.xlu0 %v2002, 127
        %v2036 = vpop.permute.xlu0 %2035
        %2037 = vrot.lane.b32.xlu0 %v2003, 127
        %v2038 = vpop.permute.xlu0 %2037
        %2039 = vrot.lane.b32.xlu0 %v2004, 127
        %v2040 = vpop.permute.xlu0 %2039
        %2041 = vrot.lane.b32.xlu0 %v2005, 127
        %v2042 = vpop.permute.xlu0 %2041
        %2043 = vrot.lane.b32.xlu0 %v2006, 127
        %v2044 = vpop.permute.xlu0 %2043
        %2045 = vrot.lane.b32.xlu0 %v2007, 127
        %v2046 = vpop.permute.xlu0 %2045
        %2047 = vrot.lane.b32.xlu0 %v2008, 127
        %v2048 = vpop.permute.xlu0 %2047
        %2049 = vrot.lane.b32.xlu0 %v2009, 127
        %v2050 = vpop.permute.xlu0 %2049
        %2051 = vrot.lane.b32.xlu0 %v2010, 127
        %v2052 = vpop.permute.xlu0 %2051
        %2053 = vrot.lane.b32.xlu0 %v2011, 127
        %v2054 = vpop.permute.xlu0 %2053
        %2055 = vrot.lane.b32.xlu0 %v2012, 127
        %v2056 = vpop.permute.xlu0 %2055
        %2057 = vrot.lane.b32.xlu0 %v2013, 127
        %v2058 = vpop.permute.xlu0 %2057
        %2059 = vrot.lane.b32.xlu0 %v2014, 127
        %v2060 = vpop.permute.xlu0 %2059
        %2061 = vrot.lane.b32.xlu0 %v2015, 127
        %v2062 = vpop.permute.xlu0 %2061
        %2063 = vrot.lane.b32.xlu0 %v2016, 127
        %v2064 = vpop.permute.xlu0 %2063
        %v2081 = vadd.f32 %v2001, %v2034
        %v2082 = vadd.f32 %v2002, %v2036
        %v2083 = vadd.f32 %v2003, %v2038
        %v2084 = vadd.f32 %v2004, %v2040
        %v2085 = vadd.f32 %v2005, %v2042
        %v2086 = vadd.f32 %v2006, %v2044
        %v2087 = vadd.f32 %v2007, %v2046
        %v2088 = vadd.f32 %v2008, %v2048
        %v2089 = vadd.f32 %v2009, %v2050
        %v2090 = vadd.f32 %v2010, %v2052
        %v2091 = vadd.f32 %v2011, %v2054
        %v2092 = vadd.f32 %v2012, %v2056
        %v2093 = vadd.f32 %v2013, %v2058
        %v2094 = vadd.f32 %v2014, %v2060
        %v2095 = vadd.f32 %v2015, %v2062
        %v2096 = vadd.f32 %v2016, %v2064
        %2097 = vrot.lane.b32.xlu0 %v2001, 126
        %v2098 = vpop.permute.xlu0 %2097
        %2099 = vrot.lane.b32.xlu0 %v2002, 126
        %v2100 = vpop.permute.xlu0 %2099
        %2101 = vrot.lane.b32.xlu0 %v2003, 126
        %v2102 = vpop.permute.xlu0 %2101
        %2103 = vrot.lane.b32.xlu0 %v2004, 126
        %v2104 = vpop.permute.xlu0 %2103
        %2105 = vrot.lane.b32.xlu0 %v2005, 126
        %v2106 = vpop.permute.xlu0 %2105
        %2107 = vrot.lane.b32.xlu0 %v2006, 126
        %v2108 = vpop.permute.xlu0 %2107
        %2109 = vrot.lane.b32.xlu0 %v2007, 126
        %v2110 = vpop.permute.xlu0 %2109
        %2111 = vrot.lane.b32.xlu0 %v2008, 126
        %v2112 = vpop.permute.xlu0 %2111
        %2113 = vrot.lane.b32.xlu0 %v2009, 126
        %v2114 = vpop.permute.xlu0 %2113
        %2115 = vrot.lane.b32.xlu0 %v2010, 126
        %v2116 = vpop.permute.xlu0 %2115
        %2117 = vrot.lane.b32.xlu0 %v2011, 126
        %v2118 = vpop.permute.xlu0 %2117
        %2119 = vrot.lane.b32.xlu0 %v2012, 126
        %v2120 = vpop.permute.xlu0 %2119
        %2121 = vrot.lane.b32.xlu0 %v2013, 126
        %v2122 = vpop.permute.xlu0 %2121
        %2123 = vrot.lane.b32.xlu0 %v2014, 126
        %v2124 = vpop.permute.xlu0 %2123
        %2125 = vrot.lane.b32.xlu0 %v2015, 126
        %v2126 = vpop.permute.xlu0 %2125
        %2127 = vrot.lane.b32.xlu0 %v2016, 126
        %v2128 = vpop.permute.xlu0 %2127
        %v2145 = vadd.f32 %v2081, %v2098
        %v2146 = vadd.f32 %v2082, %v2100
        %v2147 = vadd.f32 %v2083, %v2102
        %v2148 = vadd.f32 %v2084, %v2104
        %v2149 = vadd.f32 %v2085, %v2106
        %v2150 = vadd.f32 %v2086, %v2108
        %v2151 = vadd.f32 %v2087, %v2110
        %v2152 = vadd.f32 %v2088, %v2112
        %v2153 = vadd.f32 %v2089, %v2114
        %v2154 = vadd.f32 %v2090, %v2116
        %v2155 = vadd.f32 %v2091, %v2118
        %v2156 = vadd.f32 %v2092, %v2120
        %v2157 = vadd.f32 %v2093, %v2122
        %v2158 = vadd.f32 %v2094, %v2124
        %v2159 = vadd.f32 %v2095, %v2126
        %v2160 = vadd.f32 %v2096, %v2128
        %v2161 = vmul.f32 %v2145, 2.0
        %v2162 = vmul.f32 %v2146, 2.0
        %v2163 = vmul.f32 %v2147, 2.0
        %v2164 = vmul.f32 %v2148, 2.0
        %v2165 = vmul.f32 %v2149, 2.0
        %v2166 = vmul.f32 %v2150, 2.0
        %v2167 = vmul.f32 %v2151, 2.0
        %v2168 = vmul.f32 %v2152, 2.0
        %v2169 = vmul.f32 %v2153, 2.0
        %v2170 = vmul.f32 %v2154, 2.0
        %v2171 = vmul.f32 %v2155, 2.0
        %v2172 = vmul.f32 %v2156, 2.0
        %v2173 = vmul.f32 %v2157, 2.0
        %v2174 = vmul.f32 %v2158, 2.0
        %v2175 = vmul.f32 %v2159, 2.0
        %v2176 = vmul.f32 %v2160, 2.0
        %v2177 = vlaneseq
        %v2178 = vshrl.u32 %v2177, 7
        %v2179 = vsub.s32 1, %v2178
        %v2180 = vrot.slane %v443, %v2179
        %v2181 = vlaneseq
        %v2182 = vshrl.u32 %v2181, 7
        %v2183 = vsub.s32 1, %v2182
        %v2184 = vrot.slane %v444, %v2183
        %v2185 = vlaneseq
        %v2186 = vshrl.u32 %v2185, 7
        %v2187 = vsub.s32 1, %v2186
        %v2188 = vrot.slane %v445, %v2187
        %v2189 = vadd.f32 %v1265, %v2180
        %v2190 = vadd.f32 %v1266, %v2184
        %v2191 = vadd.f32 %v1267, %v2188
        %v2192 = vadd.f32 %v1268, %v2180
        %v2193 = vadd.f32 %v1269, %v2184
        %v2194 = vadd.f32 %v1270, %v2188
        %v2195 = vadd.f32 %v1271, %v2180
        %v2196 = vadd.f32 %v1272, %v2184
        %v2197 = vadd.f32 %v1273, %v2188
        %v2198 = vadd.f32 %v1274, %v2180
        %v2199 = vadd.f32 %v1275, %v2184
        %v2200 = vadd.f32 %v1276, %v2188
        %v2201 = vadd.f32 %v1277, %v2180
        %v2202 = vadd.f32 %v1278, %v2184
        %v2203 = vadd.f32 %v1279, %v2188
        %v2204 = vadd.f32 %v1280, %v2180
        %v2205 = vadd.f32 %v1281, %v2184
        %v2206 = vadd.f32 %v1282, %v2188
        %v2207 = vadd.f32 %v1283, %v2180
        %v2208 = vadd.f32 %v1284, %v2184
        %v2209 = vadd.f32 %v1285, %v2188
        %v2210 = vadd.f32 %v1286, %v2180
        %v2211 = vadd.f32 %v1287, %v2184
        %v2212 = vadd.f32 %v1288, %v2188
        %v2213 = vadd.f32 %v1289, %v2180
        %v2214 = vadd.f32 %v1290, %v2184
        %v2215 = vadd.f32 %v1291, %v2188
        %v2216 = vadd.f32 %v1292, %v2180
        %v2217 = vadd.f32 %v1293, %v2184
        %v2218 = vadd.f32 %v1294, %v2188
        %v2219 = vadd.f32 %v1295, %v2180
        %v2220 = vadd.f32 %v1296, %v2184
        %v2221 = vadd.f32 %v1297, %v2188
        %v2222 = vadd.f32 %v1298, %v2180
        %v2223 = vadd.f32 %v1299, %v2184
        %v2224 = vadd.f32 %v1300, %v2188
        %v2225 = vadd.f32 %v1301, %v2180
        %v2226 = vadd.f32 %v1302, %v2184
        %v2227 = vadd.f32 %v1303, %v2188
        %v2228 = vadd.f32 %v1304, %v2180
        %v2229 = vadd.f32 %v1305, %v2184
        %v2230 = vadd.f32 %v1306, %v2188
        %v2231 = vadd.f32 %v1307, %v2180
        %v2232 = vadd.f32 %v1308, %v2184
        %v2233 = vadd.f32 %v1309, %v2188
        %v2234 = vadd.f32 %v1310, %v2180
        %v2235 = vadd.f32 %v1311, %v2184
        %v2236 = vadd.f32 %v1312, %v2188
        %2238 = vset.pattern.permute.xlu0 0
        %2239 = vperm.xlu0 %2238, %v2161
        %v2240 = vpop.permute.xlu0 %2239
        %2243 = vset.pattern.permute.xlu0 0
        %2244 = vperm.xlu0 %2243, %v2162
        %v2245 = vpop.permute.xlu0 %2244
        %2248 = vset.pattern.permute.xlu0 0
        %2249 = vperm.xlu0 %2248, %v2163
        %v2250 = vpop.permute.xlu0 %2249
        %2253 = vset.pattern.permute.xlu0 0
        %2254 = vperm.xlu0 %2253, %v2164
        %v2255 = vpop.permute.xlu0 %2254
        %2258 = vset.pattern.permute.xlu0 0
        %2259 = vperm.xlu0 %2258, %v2165
        %v2260 = vpop.permute.xlu0 %2259
        %2263 = vset.pattern.permute.xlu0 0
        %2264 = vperm.xlu0 %2263, %v2166
        %v2265 = vpop.permute.xlu0 %2264
        %2268 = vset.pattern.permute.xlu0 0
        %2269 = vperm.xlu0 %2268, %v2167
        %v2270 = vpop.permute.xlu0 %2269
        %2273 = vset.pattern.permute.xlu0 0
        %2274 = vperm.xlu0 %2273, %v2168
        %v2275 = vpop.permute.xlu0 %2274
        %2278 = vset.pattern.permute.xlu0 0
        %2279 = vperm.xlu0 %2278, %v2169
        %v2280 = vpop.permute.xlu0 %2279
        %2283 = vset.pattern.permute.xlu0 0
        %2284 = vperm.xlu0 %2283, %v2170
        %v2285 = vpop.permute.xlu0 %2284
        %2288 = vset.pattern.permute.xlu0 0
        %2289 = vperm.xlu0 %2288, %v2171
        %v2290 = vpop.permute.xlu0 %2289
        %2293 = vset.pattern.permute.xlu0 0
        %2294 = vperm.xlu0 %2293, %v2172
        %v2295 = vpop.permute.xlu0 %2294
        %2298 = vset.pattern.permute.xlu0 0
        %2299 = vperm.xlu0 %2298, %v2173
        %v2300 = vpop.permute.xlu0 %2299
        %2303 = vset.pattern.permute.xlu0 0
        %2304 = vperm.xlu0 %2303, %v2174
        %v2305 = vpop.permute.xlu0 %2304
        %2308 = vset.pattern.permute.xlu0 0
        %2309 = vperm.xlu0 %2308, %v2175
        %v2310 = vpop.permute.xlu0 %2309
        %2313 = vset.pattern.permute.xlu0 0
        %2314 = vperm.xlu0 %2313, %v2176
        %v2315 = vpop.permute.xlu0 %2314
        %v2317 = vlaneseq
        %v2318 = vshrl.u32 %v2317, 7
        %v2319 = vsub.s32 1, %v2318
        %v2320 = vrot.slane %v397, %v2319
        %v2321 = vlaneseq
        %v2322 = vshrl.u32 %v2321, 7
        %v2323 = vsub.s32 1, %v2322
        %v2324 = vrot.slane %v398, %v2323
        %v2325 = vlaneseq
        %v2326 = vshrl.u32 %v2325, 7
        %v2327 = vsub.s32 1, %v2326
        %v2328 = vrot.slane %v399, %v2327
        %v2329 = vmul.f32 %v2240, %v2320
        %v2330 = vmul.f32 %v2240, %v2324
        %v2331 = vmul.f32 %v2240, %v2328
        %v2332 = vmul.f32 %v2245, %v2320
        %v2333 = vmul.f32 %v2245, %v2324
        %v2334 = vmul.f32 %v2245, %v2328
        %v2335 = vmul.f32 %v2250, %v2320
        %v2336 = vmul.f32 %v2250, %v2324
        %v2337 = vmul.f32 %v2250, %v2328
        %v2338 = vmul.f32 %v2255, %v2320
        %v2339 = vmul.f32 %v2255, %v2324
        %v2340 = vmul.f32 %v2255, %v2328
        %v2341 = vmul.f32 %v2260, %v2320
        %v2342 = vmul.f32 %v2260, %v2324
        %v2343 = vmul.f32 %v2260, %v2328
        %v2344 = vmul.f32 %v2265, %v2320
        %v2345 = vmul.f32 %v2265, %v2324
        %v2346 = vmul.f32 %v2265, %v2328
        %v2347 = vmul.f32 %v2270, %v2320
        %v2348 = vmul.f32 %v2270, %v2324
        %v2349 = vmul.f32 %v2270, %v2328
        %v2350 = vmul.f32 %v2275, %v2320
        %v2351 = vmul.f32 %v2275, %v2324
        %v2352 = vmul.f32 %v2275, %v2328
        %v2353 = vmul.f32 %v2280, %v2320
        %v2354 = vmul.f32 %v2280, %v2324
        %v2355 = vmul.f32 %v2280, %v2328
        %v2356 = vmul.f32 %v2285, %v2320
        %v2357 = vmul.f32 %v2285, %v2324
        %v2358 = vmul.f32 %v2285, %v2328
        %v2359 = vmul.f32 %v2290, %v2320
        %v2360 = vmul.f32 %v2290, %v2324
        %v2361 = vmul.f32 %v2290, %v2328
        %v2362 = vmul.f32 %v2295, %v2320
        %v2363 = vmul.f32 %v2295, %v2324
        %v2364 = vmul.f32 %v2295, %v2328
        %v2365 = vmul.f32 %v2300, %v2320
        %v2366 = vmul.f32 %v2300, %v2324
        %v2367 = vmul.f32 %v2300, %v2328
        %v2368 = vmul.f32 %v2305, %v2320
        %v2369 = vmul.f32 %v2305, %v2324
        %v2370 = vmul.f32 %v2305, %v2328
        %v2371 = vmul.f32 %v2310, %v2320
        %v2372 = vmul.f32 %v2310, %v2324
        %v2373 = vmul.f32 %v2310, %v2328
        %v2374 = vmul.f32 %v2315, %v2320
        %v2375 = vmul.f32 %v2315, %v2324
        %v2376 = vmul.f32 %v2315, %v2328
        %v2377 = vadd.f32 %v2189, %v2329
        %v2378 = vadd.f32 %v2190, %v2330
        %v2379 = vadd.f32 %v2191, %v2331
        %v2380 = vadd.f32 %v2192, %v2332
        %v2381 = vadd.f32 %v2193, %v2333
        %v2382 = vadd.f32 %v2194, %v2334
        %v2383 = vadd.f32 %v2195, %v2335
        %v2384 = vadd.f32 %v2196, %v2336
        %v2385 = vadd.f32 %v2197, %v2337
        %v2386 = vadd.f32 %v2198, %v2338
        %v2387 = vadd.f32 %v2199, %v2339
        %v2388 = vadd.f32 %v2200, %v2340
        %v2389 = vadd.f32 %v2201, %v2341
        %v2390 = vadd.f32 %v2202, %v2342
        %v2391 = vadd.f32 %v2203, %v2343
        %v2392 = vadd.f32 %v2204, %v2344
        %v2393 = vadd.f32 %v2205, %v2345
        %v2394 = vadd.f32 %v2206, %v2346
        %v2395 = vadd.f32 %v2207, %v2347
        %v2396 = vadd.f32 %v2208, %v2348
        %v2397 = vadd.f32 %v2209, %v2349
        %v2398 = vadd.f32 %v2210, %v2350
        %v2399 = vadd.f32 %v2211, %v2351
        %v2400 = vadd.f32 %v2212, %v2352
        %v2401 = vadd.f32 %v2213, %v2353
        %v2402 = vadd.f32 %v2214, %v2354
        %v2403 = vadd.f32 %v2215, %v2355
        %v2404 = vadd.f32 %v2216, %v2356
        %v2405 = vadd.f32 %v2217, %v2357
        %v2406 = vadd.f32 %v2218, %v2358
        %v2407 = vadd.f32 %v2219, %v2359
        %v2408 = vadd.f32 %v2220, %v2360
        %v2409 = vadd.f32 %v2221, %v2361
        %v2410 = vadd.f32 %v2222, %v2362
        %v2411 = vadd.f32 %v2223, %v2363
        %v2412 = vadd.f32 %v2224, %v2364
        %v2413 = vadd.f32 %v2225, %v2365
        %v2414 = vadd.f32 %v2226, %v2366
        %v2415 = vadd.f32 %v2227, %v2367
        %v2416 = vadd.f32 %v2228, %v2368
        %v2417 = vadd.f32 %v2229, %v2369
        %v2418 = vadd.f32 %v2230, %v2370
        %v2419 = vadd.f32 %v2231, %v2371
        %v2420 = vadd.f32 %v2232, %v2372
        %v2421 = vadd.f32 %v2233, %v2373
        %v2422 = vadd.f32 %v2234, %v2374
        %v2423 = vadd.f32 %v2235, %v2375
        %v2424 = vadd.f32 %v2236, %v2376
        %v2425 = vmax.f32 %v2377, 0.0
        %v2426 = vmax.f32 %v2378, 0.0
        %v2427 = vmax.f32 %v2379, 0.0
        %v2428 = vmax.f32 %v2380, 0.0
        %v2429 = vmax.f32 %v2381, 0.0
        %v2430 = vmax.f32 %v2382, 0.0
        %v2431 = vmax.f32 %v2383, 0.0
        %v2432 = vmax.f32 %v2384, 0.0
        %v2433 = vmax.f32 %v2385, 0.0
        %v2434 = vmax.f32 %v2386, 0.0
        %v2435 = vmax.f32 %v2387, 0.0
        %v2436 = vmax.f32 %v2388, 0.0
        %v2437 = vmax.f32 %v2389, 0.0
        %v2438 = vmax.f32 %v2390, 0.0
        %v2439 = vmax.f32 %v2391, 0.0
        %v2440 = vmax.f32 %v2392, 0.0
        %v2441 = vmax.f32 %v2393, 0.0
        %v2442 = vmax.f32 %v2394, 0.0
        %v2443 = vmax.f32 %v2395, 0.0
        %v2444 = vmax.f32 %v2396, 0.0
        %v2445 = vmax.f32 %v2397, 0.0
        %v2446 = vmax.f32 %v2398, 0.0
        %v2447 = vmax.f32 %v2399, 0.0
        %v2448 = vmax.f32 %v2400, 0.0
        %v2449 = vmax.f32 %v2401, 0.0
        %v2450 = vmax.f32 %v2402, 0.0
        %v2451 = vmax.f32 %v2403, 0.0
        %v2452 = vmax.f32 %v2404, 0.0
        %v2453 = vmax.f32 %v2405, 0.0
        %v2454 = vmax.f32 %v2406, 0.0
        %v2455 = vmax.f32 %v2407, 0.0
        %v2456 = vmax.f32 %v2408, 0.0
        %v2457 = vmax.f32 %v2409, 0.0
        %v2458 = vmax.f32 %v2410, 0.0
        %v2459 = vmax.f32 %v2411, 0.0
        %v2460 = vmax.f32 %v2412, 0.0
        %v2461 = vmax.f32 %v2413, 0.0
        %v2462 = vmax.f32 %v2414, 0.0
        %v2463 = vmax.f32 %v2415, 0.0
        %v2464 = vmax.f32 %v2416, 0.0
        %v2465 = vmax.f32 %v2417, 0.0
        %v2466 = vmax.f32 %v2418, 0.0
        %v2467 = vmax.f32 %v2419, 0.0
        %v2468 = vmax.f32 %v2420, 0.0
        %v2469 = vmax.f32 %v2421, 0.0
        %v2470 = vmax.f32 %v2422, 0.0
        %v2471 = vmax.f32 %v2423, 0.0
        %v2472 = vmax.f32 %v2424, 0.0
        %v2473 = vmin.f32 %v2425, %v2426
        %v2474 = vmin.f32 %v2473, %v2427
        %2475 = vmin.xlane.f32.xlu0 %v2474
        %v2476 = vpop.xlane.xlu0 %2475
        %v2477 = vmin.f32 %v2428, %v2429
        %v2478 = vmin.f32 %v2477, %v2430
        %2479 = vmin.xlane.f32.xlu0 %v2478
        %v2480 = vpop.xlane.xlu0 %2479
        %v2481 = vmin.f32 %v2431, %v2432
        %v2482 = vmin.f32 %v2481, %v2433
        %2483 = vmin.xlane.f32.xlu0 %v2482
        %v2484 = vpop.xlane.xlu0 %2483
        %v2485 = vmin.f32 %v2434, %v2435
        %v2486 = vmin.f32 %v2485, %v2436
        %2487 = vmin.xlane.f32.xlu0 %v2486
        %v2488 = vpop.xlane.xlu0 %2487
        %v2489 = vmin.f32 %v2437, %v2438
        %v2490 = vmin.f32 %v2489, %v2439
        %2491 = vmin.xlane.f32.xlu0 %v2490
        %v2492 = vpop.xlane.xlu0 %2491
        %v2493 = vmin.f32 %v2440, %v2441
        %v2494 = vmin.f32 %v2493, %v2442
        %2495 = vmin.xlane.f32.xlu0 %v2494
        %v2496 = vpop.xlane.xlu0 %2495
        %v2497 = vmin.f32 %v2443, %v2444
        %v2498 = vmin.f32 %v2497, %v2445
        %2499 = vmin.xlane.f32.xlu0 %v2498
        %v2500 = vpop.xlane.xlu0 %2499
        %v2501 = vmin.f32 %v2446, %v2447
        %v2502 = vmin.f32 %v2501, %v2448
        %2503 = vmin.xlane.f32.xlu0 %v2502
        %v2504 = vpop.xlane.xlu0 %2503
        %v2505 = vmin.f32 %v2449, %v2450
        %v2506 = vmin.f32 %v2505, %v2451
        %2507 = vmin.xlane.f32.xlu0 %v2506
        %v2508 = vpop.xlane.xlu0 %2507
        %v2509 = vmin.f32 %v2452, %v2453
        %v2510 = vmin.f32 %v2509, %v2454
        %2511 = vmin.xlane.f32.xlu0 %v2510
        %v2512 = vpop.xlane.xlu0 %2511
        %v2513 = vmin.f32 %v2455, %v2456
        %v2514 = vmin.f32 %v2513, %v2457
        %2515 = vmin.xlane.f32.xlu0 %v2514
        %v2516 = vpop.xlane.xlu0 %2515
        %v2517 = vmin.f32 %v2458, %v2459
        %v2518 = vmin.f32 %v2517, %v2460
        %2519 = vmin.xlane.f32.xlu0 %v2518
        %v2520 = vpop.xlane.xlu0 %2519
        %v2521 = vmin.f32 %v2461, %v2462
        %v2522 = vmin.f32 %v2521, %v2463
        %2523 = vmin.xlane.f32.xlu0 %v2522
        %v2524 = vpop.xlane.xlu0 %2523
        %v2525 = vmin.f32 %v2464, %v2465
        %v2526 = vmin.f32 %v2525, %v2466
        %2527 = vmin.xlane.f32.xlu0 %v2526
        %v2528 = vpop.xlane.xlu0 %2527
        %v2529 = vmin.f32 %v2467, %v2468
        %v2530 = vmin.f32 %v2529, %v2469
        %2531 = vmin.xlane.f32.xlu0 %v2530
        %v2532 = vpop.xlane.xlu0 %2531
        %v2533 = vmin.f32 %v2470, %v2471
        %v2534 = vmin.f32 %v2533, %v2472
        %2535 = vmin.xlane.f32.xlu0 %v2534
        %v2536 = vpop.xlane.xlu0 %2535
        %v2537 = vsel %vm1233, %v2476, 0.0
        %v2538 = vsel %vm1234, %v2480, 0.0
        %v2539 = vsel %vm1235, %v2484, 0.0
        %v2540 = vsel %vm1236, %v2488, 0.0
        %v2541 = vsel %vm1237, %v2492, 0.0
        %v2542 = vsel %vm1238, %v2496, 0.0
        %v2543 = vsel %vm1239, %v2500, 0.0
        %v2544 = vsel %vm1240, %v2504, 0.0
        %v2545 = vsel %vm1241, %v2508, 0.0
        %v2546 = vsel %vm1242, %v2512, 0.0
        %v2547 = vsel %vm1243, %v2516, 0.0
        %v2548 = vsel %vm1244, %v2520, 0.0
        %v2549 = vsel %vm1245, %v2524, 0.0
        %v2550 = vsel %vm1246, %v2528, 0.0
        %v2551 = vsel %vm1247, %v2532, 0.0
        %v2552 = vsel %vm1248, %v2536, 0.0
        %v2553 = vadd.f32 %v2537, %v2538
        %v2554 = vadd.f32 %v2553, %v2539
        %v2555 = vadd.f32 %v2554, %v2540
        %v2556 = vadd.f32 %v2555, %v2541
        %v2557 = vadd.f32 %v2556, %v2542
        %v2558 = vadd.f32 %v2557, %v2543
        %v2559 = vadd.f32 %v2558, %v2544
        %v2560 = vadd.f32 %v2559, %v2545
        %v2561 = vadd.f32 %v2560, %v2546
        %v2562 = vadd.f32 %v2561, %v2547
        %v2563 = vadd.f32 %v2562, %v2548
        %v2564 = vadd.f32 %v2563, %v2549
        %v2565 = vadd.f32 %v2564, %v2550
        %v2566 = vadd.f32 %v2565, %v2551
        %v2567 = vadd.f32 %v2566, %v2552
        %v2568 = vrot.slane %v2567, 4
        %v2569 = vadd.f32 %v2567, %v2568
        %v2570 = vrot.slane %v2569, 2
        %v2571 = vadd.f32 %v2569, %v2570
        %v2572 = vrot.slane %v2571, 1
        %v2573 = vadd.f32 %v2571, %v2572
        %v2574 = vadd.f32 %v1898, %v2573
        %v2575 = vmin.f32 %v2425, %v2431
        %v2576 = vmin.f32 %v2428, %v2434
        %v2577 = vmin.f32 %v2575, %v2437
        %v2578 = vmin.f32 %v2576, %v2440
        %v2579 = vmin.f32 %v2577, %v2443
        %v2580 = vmin.f32 %v2578, %v2446
        %v2581 = vmin.f32 %v2579, %v2449
        %v2582 = vmin.f32 %v2580, %v2452
        %v2583 = vmin.f32 %v2581, %v2455
        %v2584 = vmin.f32 %v2582, %v2458
        %v2585 = vmin.f32 %v2583, %v2461
        %v2586 = vmin.f32 %v2584, %v2464
        %v2587 = vmin.f32 %v2585, %v2467
        %v2588 = vmin.f32 %v2586, %v2470
        %v2589 = vmin.f32 %v2587, %v2588
        %v2590 = vrot.slane %v2589, 4
        %v2591 = vmin.f32 %v2589, %v2590
        %v2592 = vrot.slane %v2591, 2
        %v2593 = vmin.f32 %v2591, %v2592
        %v2594 = vrot.slane %v2593, 1
        %v2595 = vmin.f32 %v2593, %v2594
        %v2596 = vmin.f32 %v2426, %v2432
        %v2597 = vmin.f32 %v2429, %v2435
        %v2598 = vmin.f32 %v2596, %v2438
        %v2599 = vmin.f32 %v2597, %v2441
        %v2600 = vmin.f32 %v2598, %v2444
        %v2601 = vmin.f32 %v2599, %v2447
        %v2602 = vmin.f32 %v2600, %v2450
        %v2603 = vmin.f32 %v2601, %v2453
        %v2604 = vmin.f32 %v2602, %v2456
        %v2605 = vmin.f32 %v2603, %v2459
        %v2606 = vmin.f32 %v2604, %v2462
        %v2607 = vmin.f32 %v2605, %v2465
        %v2608 = vmin.f32 %v2606, %v2468
        %v2609 = vmin.f32 %v2607, %v2471
        %v2610 = vmin.f32 %v2608, %v2609
        %v2611 = vrot.slane %v2610, 4
        %v2612 = vmin.f32 %v2610, %v2611
        %v2613 = vrot.slane %v2612, 2
        %v2614 = vmin.f32 %v2612, %v2613
        %v2615 = vrot.slane %v2614, 1
        %v2616 = vmin.f32 %v2614, %v2615
        %v2617 = vmin.f32 %v2427, %v2433
        %v2618 = vmin.f32 %v2430, %v2436
        %v2619 = vmin.f32 %v2617, %v2439
        %v2620 = vmin.f32 %v2618, %v2442
        %v2621 = vmin.f32 %v2619, %v2445
        %v2622 = vmin.f32 %v2620, %v2448
        %v2623 = vmin.f32 %v2621, %v2451
        %v2624 = vmin.f32 %v2622, %v2454
        %v2625 = vmin.f32 %v2623, %v2457
        %v2626 = vmin.f32 %v2624, %v2460
        %v2627 = vmin.f32 %v2625, %v2463
        %v2628 = vmin.f32 %v2626, %v2466
        %v2629 = vmin.f32 %v2627, %v2469
        %v2630 = vmin.f32 %v2628, %v2472
        %v2631 = vmin.f32 %v2629, %v2630
        %v2632 = vrot.slane %v2631, 4
        %v2633 = vmin.f32 %v2631, %v2632
        %v2634 = vrot.slane %v2633, 2
        %v2635 = vmin.f32 %v2633, %v2634
        %v2636 = vrot.slane %v2635, 1
        %v2637 = vmin.f32 %v2635, %v2636
        %s2638 = scalar_lea.vmem [#allocation2], 1
        %v2639 = vld [vmem:[%s2638] ss:$8 sm:$0x7]
        %v2643 = vcombine.low %v2595, %v2616
        %v2645 = vunpack.c.l.s4 1966171168
        %v2646 = vunpack.c.0.s8 %v2645
        %v2647 = vlaneseq
        %v2648 = vshrl.u32 %v2647, 7
        %v2649 = vsub.s32 %v2646, %v2648
        %v2650 = vrot.slane %v2643, %v2649
        %v2652 = vunpack.c.l.s4 1966171168
        %v2653 = vunpack.c.0.s8 %v2652
        %v2654 = vlaneseq
        %v2655 = vshrl.u32 %v2654, 7
        %v2656 = vsub.s32 %v2653, %v2655
        %v2657 = vrot.slane %v2637, %v2656
        %v2658 = vcombine.low %v2650, %v2657
        %v2660 = vunpack.c.l.s4 1966171168
        %v2661 = vunpack.c.0.s8 %v2660
        %v2662 = vlaneseq
        %v2663 = vshrl.u32 %v2662, 7
        %v2664 = vsub.s32 %v2661, %v2663
        %v2665 = vrot.slane %v2658, %v2664
        %v2667 = vmin.f32 %v2639, %v2665
        %2668 = vst.msk [vmem:[%s2638] ss:$8 sm:$0x7] %vm1994, %v2667
        %2669 = vst.msk [vmem:[%s2638] ss:$8 sm:$0x0] %vm1994, %v2667
        %v2670 = vlaneseq
        %v2671 = vshrl.u32 %v2670, 7
        %v2672 = vsub.s32 2, %v2671
        %v2673 = vrot.slane %v233, %v2672
        %v2674 = vmul.f32 %v236, %v2673
        %v2675 = vmul.f32 %v237, %v2673
        %v2676 = vmul.f32 %v238, %v2673
        %v2677 = vmul.f32 %v239, %v2673
        %v2678 = vmul.f32 %v240, %v2673
        %v2679 = vmul.f32 %v241, %v2673
        %v2680 = vmul.f32 %v242, %v2673
        %v2681 = vmul.f32 %v243, %v2673
        %v2682 = vmul.f32 %v244, %v2673
        %v2683 = vmul.f32 %v245, %v2673
        %v2684 = vmul.f32 %v246, %v2673
        %v2685 = vmul.f32 %v247, %v2673
        %v2686 = vmul.f32 %v248, %v2673
        %v2687 = vmul.f32 %v249, %v2673
        %v2688 = vmul.f32 %v250, %v2673
        %v2689 = vmul.f32 %v251, %v2673
        %2706 = vrot.lane.b32.xlu0 %v2674, 127
        %v2707 = vpop.permute.xlu0 %2706
        %2708 = vrot.lane.b32.xlu0 %v2675, 127
        %v2709 = vpop.permute.xlu0 %2708
        %2710 = vrot.lane.b32.xlu0 %v2676, 127
        %v2711 = vpop.permute.xlu0 %2710
        %2712 = vrot.lane.b32.xlu0 %v2677, 127
        %v2713 = vpop.permute.xlu0 %2712
        %2714 = vrot.lane.b32.xlu0 %v2678, 127
        %v2715 = vpop.permute.xlu0 %2714
        %2716 = vrot.lane.b32.xlu0 %v2679, 127
        %v2717 = vpop.permute.xlu0 %2716
        %2718 = vrot.lane.b32.xlu0 %v2680, 127
        %v2719 = vpop.permute.xlu0 %2718
        %2720 = vrot.lane.b32.xlu0 %v2681, 127
        %v2721 = vpop.permute.xlu0 %2720
        %2722 = vrot.lane.b32.xlu0 %v2682, 127
        %v2723 = vpop.permute.xlu0 %2722
        %2724 = vrot.lane.b32.xlu0 %v2683, 127
        %v2725 = vpop.permute.xlu0 %2724
        %2726 = vrot.lane.b32.xlu0 %v2684, 127
        %v2727 = vpop.permute.xlu0 %2726
        %2728 = vrot.lane.b32.xlu0 %v2685, 127
        %v2729 = vpop.permute.xlu0 %2728
        %2730 = vrot.lane.b32.xlu0 %v2686, 127
        %v2731 = vpop.permute.xlu0 %2730
        %2732 = vrot.lane.b32.xlu0 %v2687, 127
        %v2733 = vpop.permute.xlu0 %2732
        %2734 = vrot.lane.b32.xlu0 %v2688, 127
        %v2735 = vpop.permute.xlu0 %2734
        %2736 = vrot.lane.b32.xlu0 %v2689, 127
        %v2737 = vpop.permute.xlu0 %2736
        %v2754 = vadd.f32 %v2674, %v2707
        %v2755 = vadd.f32 %v2675, %v2709
        %v2756 = vadd.f32 %v2676, %v2711
        %v2757 = vadd.f32 %v2677, %v2713
        %v2758 = vadd.f32 %v2678, %v2715
        %v2759 = vadd.f32 %v2679, %v2717
        %v2760 = vadd.f32 %v2680, %v2719
        %v2761 = vadd.f32 %v2681, %v2721
        %v2762 = vadd.f32 %v2682, %v2723
        %v2763 = vadd.f32 %v2683, %v2725
        %v2764 = vadd.f32 %v2684, %v2727
        %v2765 = vadd.f32 %v2685, %v2729
        %v2766 = vadd.f32 %v2686, %v2731
        %v2767 = vadd.f32 %v2687, %v2733
        %v2768 = vadd.f32 %v2688, %v2735
        %v2769 = vadd.f32 %v2689, %v2737
        %2770 = vrot.lane.b32.xlu0 %v2674, 126
        %v2771 = vpop.permute.xlu0 %2770
        %2772 = vrot.lane.b32.xlu0 %v2675, 126
        %v2773 = vpop.permute.xlu0 %2772
        %2774 = vrot.lane.b32.xlu0 %v2676, 126
        %v2775 = vpop.permute.xlu0 %2774
        %2776 = vrot.lane.b32.xlu0 %v2677, 126
        %v2777 = vpop.permute.xlu0 %2776
        %2778 = vrot.lane.b32.xlu0 %v2678, 126
        %v2779 = vpop.permute.xlu0 %2778
        %2780 = vrot.lane.b32.xlu0 %v2679, 126
        %v2781 = vpop.permute.xlu0 %2780
        %2782 = vrot.lane.b32.xlu0 %v2680, 126
        %v2783 = vpop.permute.xlu0 %2782
        %2784 = vrot.lane.b32.xlu0 %v2681, 126
        %v2785 = vpop.permute.xlu0 %2784
        %2786 = vrot.lane.b32.xlu0 %v2682, 126
        %v2787 = vpop.permute.xlu0 %2786
        %2788 = vrot.lane.b32.xlu0 %v2683, 126
        %v2789 = vpop.permute.xlu0 %2788
        %2790 = vrot.lane.b32.xlu0 %v2684, 126
        %v2791 = vpop.permute.xlu0 %2790
        %2792 = vrot.lane.b32.xlu0 %v2685, 126
        %v2793 = vpop.permute.xlu0 %2792
        %2794 = vrot.lane.b32.xlu0 %v2686, 126
        %v2795 = vpop.permute.xlu0 %2794
        %2796 = vrot.lane.b32.xlu0 %v2687, 126
        %v2797 = vpop.permute.xlu0 %2796
        %2798 = vrot.lane.b32.xlu0 %v2688, 126
        %v2799 = vpop.permute.xlu0 %2798
        %2800 = vrot.lane.b32.xlu0 %v2689, 126
        %v2801 = vpop.permute.xlu0 %2800
        %v2818 = vadd.f32 %v2754, %v2771
        %v2819 = vadd.f32 %v2755, %v2773
        %v2820 = vadd.f32 %v2756, %v2775
        %v2821 = vadd.f32 %v2757, %v2777
        %v2822 = vadd.f32 %v2758, %v2779
        %v2823 = vadd.f32 %v2759, %v2781
        %v2824 = vadd.f32 %v2760, %v2783
        %v2825 = vadd.f32 %v2761, %v2785
        %v2826 = vadd.f32 %v2762, %v2787
        %v2827 = vadd.f32 %v2763, %v2789
        %v2828 = vadd.f32 %v2764, %v2791
        %v2829 = vadd.f32 %v2765, %v2793
        %v2830 = vadd.f32 %v2766, %v2795
        %v2831 = vadd.f32 %v2767, %v2797
        %v2832 = vadd.f32 %v2768, %v2799
        %v2833 = vadd.f32 %v2769, %v2801
        %v2834 = vmul.f32 %v2818, 2.0
        %v2835 = vmul.f32 %v2819, 2.0
        %v2836 = vmul.f32 %v2820, 2.0
        %v2837 = vmul.f32 %v2821, 2.0
        %v2838 = vmul.f32 %v2822, 2.0
        %v2839 = vmul.f32 %v2823, 2.0
        %v2840 = vmul.f32 %v2824, 2.0
        %v2841 = vmul.f32 %v2825, 2.0
        %v2842 = vmul.f32 %v2826, 2.0
        %v2843 = vmul.f32 %v2827, 2.0
        %v2844 = vmul.f32 %v2828, 2.0
        %v2845 = vmul.f32 %v2829, 2.0
        %v2846 = vmul.f32 %v2830, 2.0
        %v2847 = vmul.f32 %v2831, 2.0
        %v2848 = vmul.f32 %v2832, 2.0
        %v2849 = vmul.f32 %v2833, 2.0
        %v2850 = vlaneseq
        %v2851 = vshrl.u32 %v2850, 7
        %v2852 = vsub.s32 2, %v2851
        %v2853 = vrot.slane %v443, %v2852
        %v2854 = vlaneseq
        %v2855 = vshrl.u32 %v2854, 7
        %v2856 = vsub.s32 2, %v2855
        %v2857 = vrot.slane %v444, %v2856
        %v2858 = vlaneseq
        %v2859 = vshrl.u32 %v2858, 7
        %v2860 = vsub.s32 2, %v2859
        %v2861 = vrot.slane %v445, %v2860
        %v2862 = vadd.f32 %v1265, %v2853
        %v2863 = vadd.f32 %v1266, %v2857
        %v2864 = vadd.f32 %v1267, %v2861
        %v2865 = vadd.f32 %v1268, %v2853
        %v2866 = vadd.f32 %v1269, %v2857
        %v2867 = vadd.f32 %v1270, %v2861
        %v2868 = vadd.f32 %v1271, %v2853
        %v2869 = vadd.f32 %v1272, %v2857
        %v2870 = vadd.f32 %v1273, %v2861
        %v2871 = vadd.f32 %v1274, %v2853
        %v2872 = vadd.f32 %v1275, %v2857
        %v2873 = vadd.f32 %v1276, %v2861
        %v2874 = vadd.f32 %v1277, %v2853
        %v2875 = vadd.f32 %v1278, %v2857
        %v2876 = vadd.f32 %v1279, %v2861
        %v2877 = vadd.f32 %v1280, %v2853
        %v2878 = vadd.f32 %v1281, %v2857
        %v2879 = vadd.f32 %v1282, %v2861
        %v2880 = vadd.f32 %v1283, %v2853
        %v2881 = vadd.f32 %v1284, %v2857
        %v2882 = vadd.f32 %v1285, %v2861
        %v2883 = vadd.f32 %v1286, %v2853
        %v2884 = vadd.f32 %v1287, %v2857
        %v2885 = vadd.f32 %v1288, %v2861
        %v2886 = vadd.f32 %v1289, %v2853
        %v2887 = vadd.f32 %v1290, %v2857
        %v2888 = vadd.f32 %v1291, %v2861
        %v2889 = vadd.f32 %v1292, %v2853
        %v2890 = vadd.f32 %v1293, %v2857
        %v2891 = vadd.f32 %v1294, %v2861
        %v2892 = vadd.f32 %v1295, %v2853
        %v2893 = vadd.f32 %v1296, %v2857
        %v2894 = vadd.f32 %v1297, %v2861
        %v2895 = vadd.f32 %v1298, %v2853
        %v2896 = vadd.f32 %v1299, %v2857
        %v2897 = vadd.f32 %v1300, %v2861
        %v2898 = vadd.f32 %v1301, %v2853
        %v2899 = vadd.f32 %v1302, %v2857
        %v2900 = vadd.f32 %v1303, %v2861
        %v2901 = vadd.f32 %v1304, %v2853
        %v2902 = vadd.f32 %v1305, %v2857
        %v2903 = vadd.f32 %v1306, %v2861
        %v2904 = vadd.f32 %v1307, %v2853
        %v2905 = vadd.f32 %v1308, %v2857
        %v2906 = vadd.f32 %v1309, %v2861
        %v2907 = vadd.f32 %v1310, %v2853
        %v2908 = vadd.f32 %v1311, %v2857
        %v2909 = vadd.f32 %v1312, %v2861
        %2911 = vset.pattern.permute.xlu0 0
        %2912 = vperm.xlu0 %2911, %v2834
        %v2913 = vpop.permute.xlu0 %2912
        %2916 = vset.pattern.permute.xlu0 0
        %2917 = vperm.xlu0 %2916, %v2835
        %v2918 = vpop.permute.xlu0 %2917
        %2921 = vset.pattern.permute.xlu0 0
        %2922 = vperm.xlu0 %2921, %v2836
        %v2923 = vpop.permute.xlu0 %2922
        %2926 = vset.pattern.permute.xlu0 0
        %2927 = vperm.xlu0 %2926, %v2837
        %v2928 = vpop.permute.xlu0 %2927
        %2931 = vset.pattern.permute.xlu0 0
        %2932 = vperm.xlu0 %2931, %v2838
        %v2933 = vpop.permute.xlu0 %2932
        %2936 = vset.pattern.permute.xlu0 0
        %2937 = vperm.xlu0 %2936, %v2839
        %v2938 = vpop.permute.xlu0 %2937
        %2941 = vset.pattern.permute.xlu0 0
        %2942 = vperm.xlu0 %2941, %v2840
        %v2943 = vpop.permute.xlu0 %2942
        %2946 = vset.pattern.permute.xlu0 0
        %2947 = vperm.xlu0 %2946, %v2841
        %v2948 = vpop.permute.xlu0 %2947
        %2951 = vset.pattern.permute.xlu0 0
        %2952 = vperm.xlu0 %2951, %v2842
        %v2953 = vpop.permute.xlu0 %2952
        %2956 = vset.pattern.permute.xlu0 0
        %2957 = vperm.xlu0 %2956, %v2843
        %v2958 = vpop.permute.xlu0 %2957
        %2961 = vset.pattern.permute.xlu0 0
        %2962 = vperm.xlu0 %2961, %v2844
        %v2963 = vpop.permute.xlu0 %2962
        %2966 = vset.pattern.permute.xlu0 0
        %2967 = vperm.xlu0 %2966, %v2845
        %v2968 = vpop.permute.xlu0 %2967
        %2971 = vset.pattern.permute.xlu0 0
        %2972 = vperm.xlu0 %2971, %v2846
        %v2973 = vpop.permute.xlu0 %2972
        %2976 = vset.pattern.permute.xlu0 0
        %2977 = vperm.xlu0 %2976, %v2847
        %v2978 = vpop.permute.xlu0 %2977
        %2981 = vset.pattern.permute.xlu0 0
        %2982 = vperm.xlu0 %2981, %v2848
        %v2983 = vpop.permute.xlu0 %2982
        %2986 = vset.pattern.permute.xlu0 0
        %2987 = vperm.xlu0 %2986, %v2849
        %v2988 = vpop.permute.xlu0 %2987
        %v2990 = vlaneseq
        %v2991 = vshrl.u32 %v2990, 7
        %v2992 = vsub.s32 2, %v2991
        %v2993 = vrot.slane %v397, %v2992
        %v2994 = vlaneseq
        %v2995 = vshrl.u32 %v2994, 7
        %v2996 = vsub.s32 2, %v2995
        %v2997 = vrot.slane %v398, %v2996
        %v2998 = vlaneseq
        %v2999 = vshrl.u32 %v2998, 7
        %v3000 = vsub.s32 2, %v2999
        %v3001 = vrot.slane %v399, %v3000
        %v3002 = vmul.f32 %v2913, %v2993
        %v3003 = vmul.f32 %v2913, %v2997
        %v3004 = vmul.f32 %v2913, %v3001
        %v3005 = vmul.f32 %v2918, %v2993
        %v3006 = vmul.f32 %v2918, %v2997
        %v3007 = vmul.f32 %v2918, %v3001
        %v3008 = vmul.f32 %v2923, %v2993
        %v3009 = vmul.f32 %v2923, %v2997
        %v3010 = vmul.f32 %v2923, %v3001
        %v3011 = vmul.f32 %v2928, %v2993
        %v3012 = vmul.f32 %v2928, %v2997
        %v3013 = vmul.f32 %v2928, %v3001
        %v3014 = vmul.f32 %v2933, %v2993
        %v3015 = vmul.f32 %v2933, %v2997
        %v3016 = vmul.f32 %v2933, %v3001
        %v3017 = vmul.f32 %v2938, %v2993
        %v3018 = vmul.f32 %v2938, %v2997
        %v3019 = vmul.f32 %v2938, %v3001
        %v3020 = vmul.f32 %v2943, %v2993
        %v3021 = vmul.f32 %v2943, %v2997
        %v3022 = vmul.f32 %v2943, %v3001
        %v3023 = vmul.f32 %v2948, %v2993
        %v3024 = vmul.f32 %v2948, %v2997
        %v3025 = vmul.f32 %v2948, %v3001
        %v3026 = vmul.f32 %v2953, %v2993
        %v3027 = vmul.f32 %v2953, %v2997
        %v3028 = vmul.f32 %v2953, %v3001
        %v3029 = vmul.f32 %v2958, %v2993
        %v3030 = vmul.f32 %v2958, %v2997
        %v3031 = vmul.f32 %v2958, %v3001
        %v3032 = vmul.f32 %v2963, %v2993
        %v3033 = vmul.f32 %v2963, %v2997
        %v3034 = vmul.f32 %v2963, %v3001
        %v3035 = vmul.f32 %v2968, %v2993
        %v3036 = vmul.f32 %v2968, %v2997
        %v3037 = vmul.f32 %v2968, %v3001
        %v3038 = vmul.f32 %v2973, %v2993
        %v3039 = vmul.f32 %v2973, %v2997
        %v3040 = vmul.f32 %v2973, %v3001
        %v3041 = vmul.f32 %v2978, %v2993
        %v3042 = vmul.f32 %v2978, %v2997
        %v3043 = vmul.f32 %v2978, %v3001
        %v3044 = vmul.f32 %v2983, %v2993
        %v3045 = vmul.f32 %v2983, %v2997
        %v3046 = vmul.f32 %v2983, %v3001
        %v3047 = vmul.f32 %v2988, %v2993
        %v3048 = vmul.f32 %v2988, %v2997
        %v3049 = vmul.f32 %v2988, %v3001
        %v3050 = vadd.f32 %v2862, %v3002
        %v3051 = vadd.f32 %v2863, %v3003
        %v3052 = vadd.f32 %v2864, %v3004
        %v3053 = vadd.f32 %v2865, %v3005
        %v3054 = vadd.f32 %v2866, %v3006
        %v3055 = vadd.f32 %v2867, %v3007
        %v3056 = vadd.f32 %v2868, %v3008
        %v3057 = vadd.f32 %v2869, %v3009
        %v3058 = vadd.f32 %v2870, %v3010
        %v3059 = vadd.f32 %v2871, %v3011
        %v3060 = vadd.f32 %v2872, %v3012
        %v3061 = vadd.f32 %v2873, %v3013
        %v3062 = vadd.f32 %v2874, %v3014
        %v3063 = vadd.f32 %v2875, %v3015
        %v3064 = vadd.f32 %v2876, %v3016
        %v3065 = vadd.f32 %v2877, %v3017
        %v3066 = vadd.f32 %v2878, %v3018
        %v3067 = vadd.f32 %v2879, %v3019
        %v3068 = vadd.f32 %v2880, %v3020
        %v3069 = vadd.f32 %v2881, %v3021
        %v3070 = vadd.f32 %v2882, %v3022
        %v3071 = vadd.f32 %v2883, %v3023
        %v3072 = vadd.f32 %v2884, %v3024
        %v3073 = vadd.f32 %v2885, %v3025
        %v3074 = vadd.f32 %v2886, %v3026
        %v3075 = vadd.f32 %v2887, %v3027
        %v3076 = vadd.f32 %v2888, %v3028
        %v3077 = vadd.f32 %v2889, %v3029
        %v3078 = vadd.f32 %v2890, %v3030
        %v3079 = vadd.f32 %v2891, %v3031
        %v3080 = vadd.f32 %v2892, %v3032
        %v3081 = vadd.f32 %v2893, %v3033
        %v3082 = vadd.f32 %v2894, %v3034
        %v3083 = vadd.f32 %v2895, %v3035
        %v3084 = vadd.f32 %v2896, %v3036
        %v3085 = vadd.f32 %v2897, %v3037
        %v3086 = vadd.f32 %v2898, %v3038
        %v3087 = vadd.f32 %v2899, %v3039
        %v3088 = vadd.f32 %v2900, %v3040
        %v3089 = vadd.f32 %v2901, %v3041
        %v3090 = vadd.f32 %v2902, %v3042
        %v3091 = vadd.f32 %v2903, %v3043
        %v3092 = vadd.f32 %v2904, %v3044
        %v3093 = vadd.f32 %v2905, %v3045
        %v3094 = vadd.f32 %v2906, %v3046
        %v3095 = vadd.f32 %v2907, %v3047
        %v3096 = vadd.f32 %v2908, %v3048
        %v3097 = vadd.f32 %v2909, %v3049
        %v3098 = vmax.f32 %v3050, 0.0
        %v3099 = vmax.f32 %v3051, 0.0
        %v3100 = vmax.f32 %v3052, 0.0
        %v3101 = vmax.f32 %v3053, 0.0
        %v3102 = vmax.f32 %v3054, 0.0
        %v3103 = vmax.f32 %v3055, 0.0
        %v3104 = vmax.f32 %v3056, 0.0
        %v3105 = vmax.f32 %v3057, 0.0
        %v3106 = vmax.f32 %v3058, 0.0
        %v3107 = vmax.f32 %v3059, 0.0
        %v3108 = vmax.f32 %v3060, 0.0
        %v3109 = vmax.f32 %v3061, 0.0
        %v3110 = vmax.f32 %v3062, 0.0
        %v3111 = vmax.f32 %v3063, 0.0
        %v3112 = vmax.f32 %v3064, 0.0
        %v3113 = vmax.f32 %v3065, 0.0
        %v3114 = vmax.f32 %v3066, 0.0
        %v3115 = vmax.f32 %v3067, 0.0
        %v3116 = vmax.f32 %v3068, 0.0
        %v3117 = vmax.f32 %v3069, 0.0
        %v3118 = vmax.f32 %v3070, 0.0
        %v3119 = vmax.f32 %v3071, 0.0
        %v3120 = vmax.f32 %v3072, 0.0
        %v3121 = vmax.f32 %v3073, 0.0
        %v3122 = vmax.f32 %v3074, 0.0
        %v3123 = vmax.f32 %v3075, 0.0
        %v3124 = vmax.f32 %v3076, 0.0
        %v3125 = vmax.f32 %v3077, 0.0
        %v3126 = vmax.f32 %v3078, 0.0
        %v3127 = vmax.f32 %v3079, 0.0
        %v3128 = vmax.f32 %v3080, 0.0
        %v3129 = vmax.f32 %v3081, 0.0
        %v3130 = vmax.f32 %v3082, 0.0
        %v3131 = vmax.f32 %v3083, 0.0
        %v3132 = vmax.f32 %v3084, 0.0
        %v3133 = vmax.f32 %v3085, 0.0
        %v3134 = vmax.f32 %v3086, 0.0
        %v3135 = vmax.f32 %v3087, 0.0
        %v3136 = vmax.f32 %v3088, 0.0
        %v3137 = vmax.f32 %v3089, 0.0
        %v3138 = vmax.f32 %v3090, 0.0
        %v3139 = vmax.f32 %v3091, 0.0
        %v3140 = vmax.f32 %v3092, 0.0
        %v3141 = vmax.f32 %v3093, 0.0
        %v3142 = vmax.f32 %v3094, 0.0
        %v3143 = vmax.f32 %v3095, 0.0
        %v3144 = vmax.f32 %v3096, 0.0
        %v3145 = vmax.f32 %v3097, 0.0
        %v3146 = vmin.f32 %v3098, %v3099
        %v3147 = vmin.f32 %v3146, %v3100
        %3148 = vmin.xlane.f32.xlu0 %v3147
        %v3149 = vpop.xlane.xlu0 %3148
        %v3150 = vmin.f32 %v3101, %v3102
        %v3151 = vmin.f32 %v3150, %v3103
        %3152 = vmin.xlane.f32.xlu0 %v3151
        %v3153 = vpop.xlane.xlu0 %3152
        %v3154 = vmin.f32 %v3104, %v3105
        %v3155 = vmin.f32 %v3154, %v3106
        %3156 = vmin.xlane.f32.xlu0 %v3155
        %v3157 = vpop.xlane.xlu0 %3156
        %v3158 = vmin.f32 %v3107, %v3108
        %v3159 = vmin.f32 %v3158, %v3109
        %3160 = vmin.xlane.f32.xlu0 %v3159
        %v3161 = vpop.xlane.xlu0 %3160
        %v3162 = vmin.f32 %v3110, %v3111
        %v3163 = vmin.f32 %v3162, %v3112
        %3164 = vmin.xlane.f32.xlu0 %v3163
        %v3165 = vpop.xlane.xlu0 %3164
        %v3166 = vmin.f32 %v3113, %v3114
        %v3167 = vmin.f32 %v3166, %v3115
        %3168 = vmin.xlane.f32.xlu0 %v3167
        %v3169 = vpop.xlane.xlu0 %3168
        %v3170 = vmin.f32 %v3116, %v3117
        %v3171 = vmin.f32 %v3170, %v3118
        %3172 = vmin.xlane.f32.xlu0 %v3171
        %v3173 = vpop.xlane.xlu0 %3172
        %v3174 = vmin.f32 %v3119, %v3120
        %v3175 = vmin.f32 %v3174, %v3121
        %3176 = vmin.xlane.f32.xlu0 %v3175
        %v3177 = vpop.xlane.xlu0 %3176
        %v3178 = vmin.f32 %v3122, %v3123
        %v3179 = vmin.f32 %v3178, %v3124
        %3180 = vmin.xlane.f32.xlu0 %v3179
        %v3181 = vpop.xlane.xlu0 %3180
        %v3182 = vmin.f32 %v3125, %v3126
        %v3183 = vmin.f32 %v3182, %v3127
        %3184 = vmin.xlane.f32.xlu0 %v3183
        %v3185 = vpop.xlane.xlu0 %3184
        %v3186 = vmin.f32 %v3128, %v3129
        %v3187 = vmin.f32 %v3186, %v3130
        %3188 = vmin.xlane.f32.xlu0 %v3187
        %v3189 = vpop.xlane.xlu0 %3188
        %v3190 = vmin.f32 %v3131, %v3132
        %v3191 = vmin.f32 %v3190, %v3133
        %3192 = vmin.xlane.f32.xlu0 %v3191
        %v3193 = vpop.xlane.xlu0 %3192
        %v3194 = vmin.f32 %v3134, %v3135
        %v3195 = vmin.f32 %v3194, %v3136
        %3196 = vmin.xlane.f32.xlu0 %v3195
        %v3197 = vpop.xlane.xlu0 %3196
        %v3198 = vmin.f32 %v3137, %v3138
        %v3199 = vmin.f32 %v3198, %v3139
        %3200 = vmin.xlane.f32.xlu0 %v3199
        %v3201 = vpop.xlane.xlu0 %3200
        %v3202 = vmin.f32 %v3140, %v3141
        %v3203 = vmin.f32 %v3202, %v3142
        %3204 = vmin.xlane.f32.xlu0 %v3203
        %v3205 = vpop.xlane.xlu0 %3204
        %v3206 = vmin.f32 %v3143, %v3144
        %v3207 = vmin.f32 %v3206, %v3145
        %3208 = vmin.xlane.f32.xlu0 %v3207
        %v3209 = vpop.xlane.xlu0 %3208
        %v3210 = vsel %vm1233, %v3149, 0.0
        %v3211 = vsel %vm1234, %v3153, 0.0
        %v3212 = vsel %vm1235, %v3157, 0.0
        %v3213 = vsel %vm1236, %v3161, 0.0
        %v3214 = vsel %vm1237, %v3165, 0.0
        %v3215 = vsel %vm1238, %v3169, 0.0
        %v3216 = vsel %vm1239, %v3173, 0.0
        %v3217 = vsel %vm1240, %v3177, 0.0
        %v3218 = vsel %vm1241, %v3181, 0.0
        %v3219 = vsel %vm1242, %v3185, 0.0
        %v3220 = vsel %vm1243, %v3189, 0.0
        %v3221 = vsel %vm1244, %v3193, 0.0
        %v3222 = vsel %vm1245, %v3197, 0.0
        %v3223 = vsel %vm1246, %v3201, 0.0
        %v3224 = vsel %vm1247, %v3205, 0.0
        %v3225 = vsel %vm1248, %v3209, 0.0
        %v3226 = vadd.f32 %v3210, %v3211
        %v3227 = vadd.f32 %v3226, %v3212
        %v3228 = vadd.f32 %v3227, %v3213
        %v3229 = vadd.f32 %v3228, %v3214
        %v3230 = vadd.f32 %v3229, %v3215
        %v3231 = vadd.f32 %v3230, %v3216
        %v3232 = vadd.f32 %v3231, %v3217
        %v3233 = vadd.f32 %v3232, %v3218
        %v3234 = vadd.f32 %v3233, %v3219
        %v3235 = vadd.f32 %v3234, %v3220
        %v3236 = vadd.f32 %v3235, %v3221
        %v3237 = vadd.f32 %v3236, %v3222
        %v3238 = vadd.f32 %v3237, %v3223
        %v3239 = vadd.f32 %v3238, %v3224
        %v3240 = vadd.f32 %v3239, %v3225
        %v3241 = vrot.slane %v3240, 4
        %v3242 = vadd.f32 %v3240, %v3241
        %v3243 = vrot.slane %v3242, 2
        %v3244 = vadd.f32 %v3242, %v3243
        %v3245 = vrot.slane %v3244, 1
        %v3246 = vadd.f32 %v3244, %v3245
        %v3247 = vadd.f32 %v2574, %v3246
        %v3248 = vmin.f32 %v3098, %v3104
        %v3249 = vmin.f32 %v3101, %v3107
        %v3250 = vmin.f32 %v3248, %v3110
        %v3251 = vmin.f32 %v3249, %v3113
        %v3252 = vmin.f32 %v3250, %v3116
        %v3253 = vmin.f32 %v3251, %v3119
        %v3254 = vmin.f32 %v3252, %v3122
        %v3255 = vmin.f32 %v3253, %v3125
        %v3256 = vmin.f32 %v3254, %v3128
        %v3257 = vmin.f32 %v3255, %v3131
        %v3258 = vmin.f32 %v3256, %v3134
        %v3259 = vmin.f32 %v3257, %v3137
        %v3260 = vmin.f32 %v3258, %v3140
        %v3261 = vmin.f32 %v3259, %v3143
        %v3262 = vmin.f32 %v3260, %v3261
        %v3263 = vrot.slane %v3262, 4
        %v3264 = vmin.f32 %v3262, %v3263
        %v3265 = vrot.slane %v3264, 2
        %v3266 = vmin.f32 %v3264, %v3265
        %v3267 = vrot.slane %v3266, 1
        %v3268 = vmin.f32 %v3266, %v3267
        %v3269 = vmin.f32 %v3099, %v3105
        %v3270 = vmin.f32 %v3102, %v3108
        %v3271 = vmin.f32 %v3269, %v3111
        %v3272 = vmin.f32 %v3270, %v3114
        %v3273 = vmin.f32 %v3271, %v3117
        %v3274 = vmin.f32 %v3272, %v3120
        %v3275 = vmin.f32 %v3273, %v3123
        %v3276 = vmin.f32 %v3274, %v3126
        %v3277 = vmin.f32 %v3275, %v3129
        %v3278 = vmin.f32 %v3276, %v3132
        %v3279 = vmin.f32 %v3277, %v3135
        %v3280 = vmin.f32 %v3278, %v3138
        %v3281 = vmin.f32 %v3279, %v3141
        %v3282 = vmin.f32 %v3280, %v3144
        %v3283 = vmin.f32 %v3281, %v3282
        %v3284 = vrot.slane %v3283, 4
        %v3285 = vmin.f32 %v3283, %v3284
        %v3286 = vrot.slane %v3285, 2
        %v3287 = vmin.f32 %v3285, %v3286
        %v3288 = vrot.slane %v3287, 1
        %v3289 = vmin.f32 %v3287, %v3288
        %v3290 = vmin.f32 %v3100, %v3106
        %v3291 = vmin.f32 %v3103, %v3109
        %v3292 = vmin.f32 %v3290, %v3112
        %v3293 = vmin.f32 %v3291, %v3115
        %v3294 = vmin.f32 %v3292, %v3118
        %v3295 = vmin.f32 %v3293, %v3121
        %v3296 = vmin.f32 %v3294, %v3124
        %v3297 = vmin.f32 %v3295, %v3127
        %v3298 = vmin.f32 %v3296, %v3130
        %v3299 = vmin.f32 %v3297, %v3133
        %v3300 = vmin.f32 %v3298, %v3136
        %v3301 = vmin.f32 %v3299, %v3139
        %v3302 = vmin.f32 %v3300, %v3142
        %v3303 = vmin.f32 %v3301, %v3145
        %v3304 = vmin.f32 %v3302, %v3303
        %v3305 = vrot.slane %v3304, 4
        %v3306 = vmin.f32 %v3304, %v3305
        %v3307 = vrot.slane %v3306, 2
        %v3308 = vmin.f32 %v3306, %v3307
        %v3309 = vrot.slane %v3308, 1
        %v3310 = vmin.f32 %v3308, %v3309
        %s3311 = scalar_lea.vmem [#allocation2], 2
        %v3312 = vld [vmem:[%s3311] ss:$8 sm:$0x7]
        %v3316 = vcombine.low %v3268, %v3289
        %v3318 = vunpack.c.l.s4 1966171168
        %v3319 = vunpack.c.0.s8 %v3318
        %v3320 = vlaneseq
        %v3321 = vshrl.u32 %v3320, 7
        %v3322 = vsub.s32 %v3319, %v3321
        %v3323 = vrot.slane %v3316, %v3322
        %v3325 = vunpack.c.l.s4 1966171168
        %v3326 = vunpack.c.0.s8 %v3325
        %v3327 = vlaneseq
        %v3328 = vshrl.u32 %v3327, 7
        %v3329 = vsub.s32 %v3326, %v3328
        %v3330 = vrot.slane %v3310, %v3329
        %v3331 = vcombine.low %v3323, %v3330
        %v3333 = vunpack.c.l.s4 1966171168
        %v3334 = vunpack.c.0.s8 %v3333
        %v3335 = vlaneseq
        %v3336 = vshrl.u32 %v3335, 7
        %v3337 = vsub.s32 %v3334, %v3336
        %v3338 = vrot.slane %v3331, %v3337
        %v3340 = vmin.f32 %v3312, %v3338
        %3341 = vst.msk [vmem:[%s3311] ss:$8 sm:$0x7] %vm1994, %v3340
        %3342 = vst.msk [vmem:[%s3311] ss:$8 sm:$0x0] %vm1994, %v3340
        %v3343 = vld [vmem:[%s213] sm:$0x1]
        %v3344 = vadd.f32 %v3343, %v3247
        %3345 = vst [vmem:[%s213] sm:$0x1] %v3344
        %p3346 = scmp.eq.s32.totalorder %s22, 2
        // Predicated region
        $region37: #{tpu_custom_call.1} parent=31 // pred_check
          %p3347 = pneg %p3346
        $region38: #{tpu_custom_call.1} parent=31 // pred_check_branch
          %3349 = sbr.rel (%p3347) target = $region40
        $region39: #{tpu_custom_call.1} parent=31 // pred_region
          %v3350 = vld [vmem:[#allocation2] sm:$0xff]
          %v3351 = vld [vmem:[#allocation2 + $0x8] sm:$0xff]
          %v3352 = vld [vmem:[#allocation2 + $0x10] sm:$0xff]
          %vm3353 = vcmp.lt.s32.totalorder %v1200, 3
          %vm3354 = vmand %vm3353, %vm437
          %vm3355 = vmand %vm3353, %vm438
          %vm3356 = vmand %vm3353, %vm439
          %v3357 = vsel %vm3354, %v3350, 0.0
          %v3358 = vsel %vm3355, %v3351, 0.0
          %v3359 = vsel %vm3356, %v3352, 0.0
          %v3360 = vadd.f32 %v3357, %v3358
          %v3361 = vadd.f32 %v3360, %v3359
          %3362 = vadd.xlane.f32.xlu0 %v3361
          %v3363 = vpop.xlane.xlu0 %3362
          %v3364 = vrot.slane %v3363, 4
          %v3365 = vadd.f32 %v3363, %v3364
          %v3366 = vrot.slane %v3365, 2
          %v3367 = vadd.f32 %v3365, %v3366
          %v3368 = vrot.slane %v3367, 1
          %v3369 = vadd.f32 %v3367, %v3368
          %vm3370 = vcmask 23552
          %v3371 = vsel %vm3370, %v252, 0.0
          %3372 = vadd.xlane.f32.xlu0 %v3371
          %v3373 = vpop.xlane.xlu0 %3372
          %vm3374 = vcmp.gt.f32.partialorder %v3373, 0.0
          %v3375 = vsel %vm3374, %v3373, 1.0
          %v3376 = vrsqrt.pop %v3375
          %v3377 = vmul.f32 %v233, %v3376
          %v3379 = vsel %vm3370, %v3377, 0
          %3381 = vmatprep.subr.mxu0 0.0
          %3382 = vmatpush1.xpose.msra.mxu0 0.0
          %3383 = vmatprep.subr.mxu0 0.0
          %3384 = vmatpush1.xpose.msra.mxu0 0.0
          %3385 = vmatprep.subr.mxu0 0.0
          %3386 = vmatpush1.xpose.msra.mxu0 0.0
          %3387 = vmatprep.subr.mxu0 0.0
          %3388 = vmatpush1.xpose.msra.mxu0 0.0
          %3389 = vmatprep.subr.mxu0 0.0
          %3390 = vmatpush1.xpose.msra.mxu0 0.0
          %3391 = vmatprep.subr.mxu0 0.0
          %3392 = vmatpush1.xpose.msra.mxu0 0.0
          %3393 = vmatprep.subr.mxu0 0.0
          %3394 = vmatpush1.xpose.msra.mxu0 0.0
          %3395 = vmatprep.subr.mxu0 0.0
          %3396 = vmatpush1.xpose.msra.mxu0 0.0
          %3397 = vmatprep.subr.mxu0 0.0
          %3398 = vmatpush1.xpose.msra.mxu0 0.0
          %3399 = vmatprep.subr.mxu0 0.0
          %3400 = vmatpush1.xpose.msra.mxu0 0.0
          %3401 = vmatprep.subr.mxu0 0.0
          %3402 = vmatpush1.xpose.msra.mxu0 0.0
          %3403 = vmatprep.subr.mxu0 0.0
          %3404 = vmatpush1.xpose.msra.mxu0 0.0
          %3405 = vmatprep.subr.mxu0 0.0
          %3406 = vmatpush1.xpose.msra.mxu0 0.0
          %3407 = vmatprep.subr.mxu0 0.0
          %3408 = vmatpush1.xpose.msra.mxu0 0.0
          %3409 = vmatprep.subr.mxu0 0.0
          %3410 = vmatpush1.xpose.msra.mxu0 0.0
          %3411 = vmatprep.subr.mxu0 0.0
          %3412 = vmatpush1.xpose.msra.mxu0 %v3379
          %3413 = vmatprep.subr.mxu0 0.0
          %3414 = vmatpush2.xpose.msra.mxu0 0.0
          %3415 = vmatprep.subr.mxu0 0.0
          %3416 = vmatpush2.xpose.msra.mxu0 0.0
          %3417 = vmatprep.subr.mxu0 0.0
          %3418 = vmatpush2.xpose.msra.mxu0 0.0
          %3419 = vmatprep.subr.mxu0 0.0
          %3420 = vmatpush2.xpose.msra.mxu0 0.0
          %3421 = vmatprep.subr.mxu0 0.0
          %3422 = vmatpush2.xpose.msra.mxu0 0.0
          %3423 = vmatprep.subr.mxu0 0.0
          %3424 = vmatpush2.xpose.msra.mxu0 0.0
          %3425 = vmatprep.subr.mxu0 0.0
          %3426 = vmatpush2.xpose.msra.mxu0 0.0
          %3427 = vmatprep.subr.mxu0 0.0
          %3428 = vmatpush2.xpose.msra.mxu0 0.0
          %3429 = vmatprep.subr.mxu0 0.0
          %3430 = vmatpush2.xpose.msra.mxu0 0.0
          %3431 = vmatprep.subr.mxu0 0.0
          %3432 = vmatpush2.xpose.msra.mxu0 0.0
          %3433 = vmatprep.subr.mxu0 0.0
          %3434 = vmatpush2.xpose.msra.mxu0 0.0
          %3435 = vmatprep.subr.mxu0 0.0
          %3436 = vmatpush2.xpose.msra.mxu0 0.0
          %3437 = vmatprep.subr.mxu0 0.0
          %3438 = vmatpush2.xpose.msra.mxu0 0.0
          %3439 = vmatprep.subr.mxu0 0.0
          %3440 = vmatpush2.xpose.msra.mxu0 0.0
          %3441 = vmatprep.subr.mxu0 0.0
          %3442 = vmatpush2.xpose.msra.mxu0 0.0
          %3443 = vmatprep.subr.mxu0 0.0
          %3444 = vmatpush2.xpose.msra.mxu0 0.0
          %3445 = vmatprep.mubr.f32.mxu0 0.0
          %3446 = vmatmul.mubr.f32.gmra.mxu0 %v3379
          %v3447 = vpop.f32.mrf.mxu0
          %v3448 = vadd.f32 0.0, %v3447
          %v3449 = vpop.f32.mrf.mxu0
          %3450 = vdwg.mxu0
          %vm3451 = vcmp.eq.s32.totalorder %v1200, %v434
          %vm3452 = vmand %vm3451, %vm3353
          %v3453 = vsel %vm3452, 1.0, 0.0
          %v3454 = vsub.f32 %v3448, %v3453
          %v3455 = vmul.f32 %v3454, %v3454
          %vm3456 = vcmask 64512
          %v3457 = vsel %vm3456, %v3455, 0.0
          %3458 = vadd.xlane.f32.xlu0 %v3457
          %v3459 = vpop.xlane.xlu0 %3458
          %v3460 = vrot.slane %v3459, 4
          %v3461 = vadd.f32 %v3459, %v3460
          %v3462 = vrot.slane %v3461, 2
          %v3463 = vadd.f32 %v3461, %v3462
          %v3464 = vrot.slane %v3463, 1
          %v3465 = vadd.f32 %v3463, %v3464
          %v3466 = vrsqrt.pop %v3465
          %v3467 = vmul.f32 %v3465, %v3466
          %vm3468 = vcmp.eq.f32.partialorder %v3465, inf
          %v3469 = vsel %vm3468, %v3465, %v3467
          %vm3470 = vcmp.eq.f32.partialorder %v3465, 0.0
          %v3471 = vand.u32 %v3465, 2147483648
          %v3472 = vsel %vm3470, %v3471, %v3469
          %v3473 = vmul.f32 %v3472, 25.0
          %v3474 = vadd.f32 %v3369, %v3473
          %v3475 = vld [vmem:[%s213] sm:$0x1]
          %v3476 = vadd.f32 %v3475, %v3474
          %3477 = vst [vmem:[%s213] sm:$0x1] %v3476
        $region40: #{tpu_custom_call.1} parent=31 // pred_fallthru
          _
        %s3478 = sand.u32 %s117, 1
        %s3479 = scalar_lea.sflag [#allocation4], %s3478
        %s3480 = sand.u32 %s117, 1
        %s3481 = scalar_lea.vmem [#allocation3], %s3480
        // Predicated region
        $region41: #{tpu_custom_call.1} parent=31 // pred_check
          %p3482 = pneg %p127
        $region42: #{tpu_custom_call.1} parent=31 // pred_check_branch
          %3484 = sbr.rel (%p3482) target = $region44
        $region43: #{tpu_custom_call.1} parent=31 // pred_region
          %s3486 = ssub.s32 16, 16
          %3487 = vsyncadd %s3479, %s3486
          %s3488 = smul.addr %s21, 16
          %s3489 = scalar_lea.hbm %s3, %s3488
          %s3491 = sshll.u32 %s3481, 4
          %s3492 = int_to_ptr.vmem [resolvable:$true] %s3491
          %3494 = dma.vmem_to_hbm [thread:$0]  %s3492, 16, %s3489, %s3479
        $region44: #{tpu_custom_call.1} parent=31 // pred_fallthru
          _
      $region32: #{tpu_custom_call.1} parent=5 // pred_fallthru
        _
      %p3495 = scmp.le.s32.totalorder 2, %s12
      // Predicated region
      $region45: #{tpu_custom_call.1} parent=5 // pred_check
        %p3496 = pneg %p3495
      $region46: #{tpu_custom_call.1} parent=5 // pred_check_branch
        %3498 = sbr.rel (%p3496) target = $region48
      $region47: #{tpu_custom_call.1} parent=5 // pred_region
        %s3499 = ssub.s32 %s12, 2
        // Predicated region
        $region49: #{tpu_custom_call.1} parent=47 // pred_check
          %p3500 = pneg %p133
        $region50: #{tpu_custom_call.1} parent=47 // pred_check_branch
          %3502 = sbr.rel (%p3500) target = $region52
        $region51: #{tpu_custom_call.1} parent=47 // pred_region
          %s3503 = sand.u32 %s118, 1
          %s3504 = scalar_lea.sflag [#allocation4], %s3503
          %s3505 = sand.u32 %s118, 1
          %s3506 = scalar_lea.vmem [#allocation3], %s3505
          %3507 = dma.done %s3504, 16
        $region52: #{tpu_custom_call.1} parent=47 // pred_fallthru
          _
      $region48: #{tpu_custom_call.1} parent=5 // pred_fallthru
        _
    $region6: #{tpu_custom_call.1} parent=1 // loop_footer
      %s16 = sadd.s32 1, %s12
    $region7: #{tpu_custom_call.1} parent=1 // loop_footer_branch
      %11 = sbr.rel target = $region3
    $region8: #{tpu_custom_call.1} parent=1 // loop_exit
      _
    %3508 = vsyncpa [#allocation4], 1
    %s3509 = scalar_lea.sflag [#allocation4], 1
    %3510 = vsyncpa %s3509, 1

</llo_original>
